<compile_context>
chip_gen: v5e
topology: v5e:2x2
jax: 0.10.0
libtpu: 0.0.40
codegen_flags: <defaults>
</compile_context>

<pallas_src>
import math
import functools

import jax
import jax.numpy as jnp
from jax.experimental import pallas as pl
from jax.experimental.pallas import tpu as pltpu


_LN_EPS = 1e-5
_PARALLEL = pltpu.CompilerParams(dimension_semantics=("parallel",))


def _layernorm_f32(y, g, b):
    """LayerNorm over last dim, f32 math.  g/b broadcast from (1, N)."""
    mean = jnp.mean(y, axis=-1, keepdims=True)
    c = y - mean
    var = jnp.mean(c * c, axis=-1, keepdims=True)
    return c * jax.lax.rsqrt(var + _LN_EPS) * g + b


# ----------------------------------------------------------------------------
# Pallas kernels
# ----------------------------------------------------------------------------

def _linear_norm_kernel(x_ref, w_ref, b_ref, g_ref, beta_ref, o_ref):
    # o = LayerNorm(x @ w + b)      (encoder + encoder_norm fused)
    y = jnp.dot(x_ref[...].astype(jnp.bfloat16), w_ref[...],
                preferred_element_type=jnp.float32) + b_ref[...]
    o_ref[...] = _layernorm_f32(y, g_ref[...], beta_ref[...])


def _linear_kernel(x_ref, w_ref, b_ref, o_ref):
    # o = x @ w + b                 (decoder)
    o_ref[...] = jnp.dot(x_ref[...].astype(jnp.bfloat16), w_ref[...],
                         preferred_element_type=jnp.float32) + b_ref[...]


def _ffn_norm_kernel(x_ref, w1_ref, b1_ref, w2_ref, b2_ref, g_ref, beta_ref,
                     o_ref):
    # o = LayerNorm(x + relu(x @ w1 + b1) @ w2 + b2)
    x = x_ref[...]
    h = jnp.dot(x.astype(jnp.bfloat16), w1_ref[...],
                preferred_element_type=jnp.float32) + b1_ref[...]
    h = jnp.maximum(h, 0.0)
    f = jnp.dot(h.astype(jnp.bfloat16), w2_ref[...],
                preferred_element_type=jnp.float32) + b2_ref[...]
    o_ref[...] = _layernorm_f32(x + f, g_ref[...], beta_ref[...])


def _mha_block_kernel(x_ref, wqkv_ref, bqkv_ref, wo_ref, bo_ref, g_ref,
                      beta_ref, o_ref, *, n_heads, scale):
    # One batch element: o = LayerNorm(x + OutProj(MHA(x)))
    x = x_ref[0]                                          # (T, D) f32
    d = x.shape[-1]
    dh = d // n_heads

    qkv = jnp.dot(x.astype(jnp.bfloat16), wqkv_ref[...],
                  preferred_element_type=jnp.float32) + bqkv_ref[...]  # (T, 3D)

    heads = []
    for h in range(n_heads):                              # static unroll
        q = qkv[:, h * dh:(h + 1) * dh] * scale           # fold 1/sqrt(dh) into q
        k = qkv[:, d + h * dh: d + (h + 1) * dh]
        v = qkv[:, 2 * d + h * dh: 2 * d + (h + 1) * dh]
        s = jnp.dot(q.astype(jnp.bfloat16), k.astype(jnp.bfloat16).T,
                    preferred_element_type=jnp.float32)   # (T, T) f32
        s = s - jnp.max(s, axis=-1, keepdims=True)
        p = jnp.exp(s)
        p = p * pl.reciprocal(jnp.sum(p, axis=-1, keepdims=True), approx=True)
        heads.append(jnp.dot(p.astype(jnp.bfloat16), v.astype(jnp.bfloat16),
                             preferred_element_type=jnp.float32))
    attn = jnp.concatenate(heads, axis=-1)                # (T, D) lane-dense

    attn = jnp.dot(attn.astype(jnp.bfloat16), wo_ref[...],
                   preferred_element_type=jnp.float32) + bo_ref[...]
    o_ref[0] = _layernorm_f32(x + attn, g_ref[...], beta_ref[...])


# ----------------------------------------------------------------------------
# Pallas wrappers
# ----------------------------------------------------------------------------

def _row_tile(m, max_tile=256):
    """Row-tile size: full array if small, else 256 (multiple of 8, fits the
    default scoped VMEM limit with double-buffering)."""
    return m if m <= max_tile else max_tile


def fused_linear_layernorm(x2d, w, b, g, beta):
    M, K = x2d.shape
    N = w.shape[1]
    tm = _row_tile(M)
    return pl.pallas_call(
        _linear_norm_kernel,
        out_shape=jax.ShapeDtypeStruct((M, N), jnp.float32),
        grid=(pl.cdiv(M, tm),),
        in_specs=[
            pl.BlockSpec((tm, K), lambda i: (i, 0)),
            pl.BlockSpec((K, N), lambda i: (0, 0)),
            pl.BlockSpec((1, N), lambda i: (0, 0)),
            pl.BlockSpec((1, N), lambda i: (0, 0)),
            pl.BlockSpec((1, N), lambda i: (0, 0)),
        ],
        out_specs=pl.BlockSpec((tm, N), lambda i: (i, 0)),
        compiler_params=_PARALLEL,
    )(x2d, w, b.reshape(1, N), g.reshape(1, N), beta.reshape(1, N))


def linear(x2d, w, b):
    M, K = x2d.shape
    N = w.shape[1]
    tm = _row_tile(M)
    return pl.pallas_call(
        _linear_kernel,
        out_shape=jax.ShapeDtypeStruct((M, N), jnp.float32),
        grid=(pl.cdiv(M, tm),),
        in_specs=[
            pl.BlockSpec((tm, K), lambda i: (i, 0)),
            pl.BlockSpec((K, N), lambda i: (0, 0)),
            pl.BlockSpec((1, N), lambda i: (0, 0)),
        ],
        out_specs=pl.BlockSpec((tm, N), lambda i: (i, 0)),
        compiler_params=_PARALLEL,
    )(x2d, w, b.reshape(1, N))


def fused_ffn_layernorm(x2d, w1, b1, w2, b2, g, beta):
    M, D = x2d.shape
    F = w1.shape[1]
    tm = _row_tile(M)
    return pl.pallas_call(
        _ffn_norm_kernel,
        out_shape=jax.ShapeDtypeStruct((M, D), jnp.float32),
        grid=(pl.cdiv(M, tm),),
        in_specs=[
            pl.BlockSpec((tm, D), lambda i: (i, 0)),
            pl.BlockSpec((D, F), lambda i: (0, 0)),
            pl.BlockSpec((1, F), lambda i: (0, 0)),
            pl.BlockSpec((F, D), lambda i: (0, 0)),
            pl.BlockSpec((1, D), lambda i: (0, 0)),
            pl.BlockSpec((1, D), lambda i: (0, 0)),
            pl.BlockSpec((1, D), lambda i: (0, 0)),
        ],
        out_specs=pl.BlockSpec((tm, D), lambda i: (i, 0)),
        compiler_params=_PARALLEL,
    )(x2d, w1, b1.reshape(1, F), w2, b2.reshape(1, D),
      g.reshape(1, D), beta.reshape(1, D))


def mha_block(x3d, wqkv, bqkv, wo, bo, g, beta, n_heads):
    B, T, D = x3d.shape
    scale = 1.0 / math.sqrt(D // n_heads)
    kern = functools.partial(_mha_block_kernel, n_heads=n_heads, scale=scale)
    return pl.pallas_call(
        kern,
        out_shape=jax.ShapeDtypeStruct((B, T, D), jnp.float32),
        grid=(B,),
        in_specs=[
            pl.BlockSpec((1, T, D), lambda b: (b, 0, 0)),
            pl.BlockSpec((D, 3 * D), lambda b: (0, 0)),
            pl.BlockSpec((1, 3 * D), lambda b: (0, 0)),
            pl.BlockSpec((D, D), lambda b: (0, 0)),
            pl.BlockSpec((1, D), lambda b: (0, 0)),
            pl.BlockSpec((1, D), lambda b: (0, 0)),
            pl.BlockSpec((1, D), lambda b: (0, 0)),
        ],
        out_specs=pl.BlockSpec((1, T, D), lambda b: (b, 0, 0)),
        compiler_params=_PARALLEL,
    )(x3d, wqkv, bqkv.reshape(1, 3 * D), wo, bo.reshape(1, D),
      g.reshape(1, D), beta.reshape(1, D))


# ----------------------------------------------------------------------------
# TransformerModel forward (jitted; n_heads static)
# ----------------------------------------------------------------------------

@functools.partial(jax.jit, static_argnames=("n_heads",))
def transformer_model_forward(params, src, *, n_heads):
    """src: (B, T, in_size) float32.  Returns (B, T, n_speakers) float32."""
    B, T, in_size = src.shape
    d = params["encoder_w"].shape[1]

    # src = self.encoder(src); src = self.encoder_norm(src)   (fused)
    x = fused_linear_layernorm(src.reshape(B * T, in_size),
                               params["encoder_w"], params["encoder_b"],
                               params["enc_norm_g"], params["enc_norm_b"])

    # transformer encoder (post-norm TransformerEncoderLayer, ReLU FFN)
    for lp in params["layers"]:
        # fused MHA sublayer: qkv proj -> attention -> out proj -> +res -> LN
        x = mha_block(x.reshape(B, T, d),
                      lp["in_proj_w"], lp["in_proj_b"],
                      lp["out_proj_w"], lp["out_proj_b"],
                      lp["norm1_g"], lp["norm1_b"], n_heads).reshape(B * T, d)
        # fused FFN sublayer: linear -> relu -> linear -> +res -> LN
        x = fused_ffn_layernorm(x, lp["ffn_w1"], lp["ffn_b1"],
                                lp["ffn_w2"], lp["ffn_b2"],
                                lp["norm2_g"], lp["norm2_b"])

    # output = self.decoder(output)
    out = linear(x, params["decoder_w"], params["decoder_b"])
    return out.reshape(B, T, -1)


# ----------------------------------------------------------------------------
# Deterministic parameter init (shapes follow the PyTorch module __init__)
# ----------------------------------------------------------------------------

def init_params(key, in_size, n_units, n_heads, n_layers,
                dim_feedforward, n_speakers):
    d = n_units
    keys = iter(jax.random.split(key, 4 + 6 * n_layers))

    def unif(k, shape, a=0.1):
        # weights stored in bf16 (MXU-native operands); biases / LN params f32
        return jax.random.uniform(k, shape, jnp.float32,
                                  minval=-a, maxval=a).astype(jnp.bfloat16)

    params = {
        # nn.Linear(in_size, n_units): weight U(-0.1, 0.1), bias 0 (init_weights)
        "encoder_w": unif(next(keys), (in_size, d)),
        "encoder_b": jnp.zeros((d,), jnp.float32),
        "enc_norm_g": jnp.ones((d,), jnp.float32),
        "enc_norm_b": jnp.zeros((d,), jnp.float32),
        # nn.Linear(n_units, n_speakers): weight U(-0.1, 0.1), bias 0
        "decoder_w": unif(next(keys), (d, n_speakers)),
        "decoder_b": jnp.zeros((n_speakers,), jnp.float32),
        "layers": [],
    }

    for _ in range(n_layers):
        lp = {
            "in_proj_w": unif(next(keys), (d, 3 * d)),
            "in_proj_b": jnp.zeros((3 * d,), jnp.float32),
            "out_proj_w": unif(next(keys), (d, d)),
            "out_proj_b": jnp.zeros((d,), jnp.float32),
            "norm1_g": jnp.ones((d,), jnp.float32),
            "norm1_b": jnp.zeros((d,), jnp.float32),
            "ffn_w1": unif(next(keys), (d, dim_feedforward)),
            "ffn_b1": jnp.zeros((dim_feedforward,), jnp.float32),
            "ffn_w2": unif(next(keys), (dim_feedforward, d)),
            "ffn_b2": jnp.zeros((d,), jnp.float32),
            "norm2_g": jnp.ones((d,), jnp.float32),
            "norm2_b": jnp.zeros((d,), jnp.float32),
        }
        params["layers"].append(lp)
        next(keys)  # spare key per layer keeps key consumption deterministic
    return params


# ----------------------------------------------------------------------------
# main
# ----------------------------------------------------------------------------

if __name__ == "__main__":
    # small shapes consistent with TransformerModel(n_speakers, in_size,
    # n_heads, n_units, n_layers, dim_feedforward)
    B, T = 2, 8
    n_speakers, in_size, n_heads, n_units, n_layers, dim_ff = 3, 16, 4, 32, 2, 64

    key = jax.random.PRNGKey(0)
    k_params, k_src = jax.random.split(key)

    params = init_params(k_params, in_size, n_units, n_heads,
                         n_layers, dim_ff, n_speakers)

    # all sequences same length -> pad_sequence(padding_value=-1) is a no-op
    src = jax.random.normal(k_src, (B, T, in_size), jnp.float32)
    ilens = [T] * B

    out = transformer_model_forward(params, src, n_heads=n_heads)  # (B, T, S)
    # output = [out[:ilen] for out, ilen in zip(output, ilens)]
    outputs = [out[b, :ilen] for b, ilen in enumerate(ilens)]

    jax.block_until_ready(outputs)
    assert outputs[0].shape == (T, n_speakers)
    print("KERNEL_OK")
</pallas_src>

<mosaic_0001>
module attributes {stable_mosaic.version = 11 : i64} {
  func.func @_linear_norm_kernel(%arg0: i32, %arg1: memref<16x16xf32, #tpu.memory_space<vmem>>, %arg2: memref<16x32xbf16, #tpu.memory_space<vmem>>, %arg3: memref<1x32xf32, #tpu.memory_space<vmem>>, %arg4: memref<1x32xf32, #tpu.memory_space<vmem>>, %arg5: memref<1x32xf32, #tpu.memory_space<vmem>>, %arg6: memref<16x32xf32, #tpu.memory_space<vmem>>) attributes {dimension_semantics = [#tpu.dimension_semantics<parallel>], iteration_bounds = array<i64: 1>, scalar_prefetch = 0 : i64, scratch_operands = 0 : i64, tpu.core_type = #tpu.core_type<tc>, window_params = [{transform_indices = @transform_0, window_bounds = array<i64: 16, 16>}, {pipeline_mode = #tpu.pipeline_mode<synchronous>, transform_indices = @transform_1, window_bounds = array<i64: 16, 32>}, {pipeline_mode = #tpu.pipeline_mode<synchronous>, transform_indices = @transform_2, window_bounds = array<i64: 1, 32>}, {pipeline_mode = #tpu.pipeline_mode<synchronous>, transform_indices = @transform_3, window_bounds = array<i64: 1, 32>}, {pipeline_mode = #tpu.pipeline_mode<synchronous>, transform_indices = @transform_4, window_bounds = array<i64: 1, 32>}, {transform_indices = @transform_5, window_bounds = array<i64: 16, 32>}]} {
    %c0 = arith.constant 0 : index
    %c0_0 = arith.constant 0 : index
    %0 = vector.load %arg1[%c0, %c0_0] : memref<16x16xf32, #tpu.memory_space<vmem>>, vector<16x16xf32>
    %1 = arith.truncf %0 : vector<16x16xf32> to vector<16x16xbf16>
    %c0_1 = arith.constant 0 : index
    %c0_2 = arith.constant 0 : index
    %2 = vector.load %arg2[%c0_1, %c0_2] : memref<16x32xbf16, #tpu.memory_space<vmem>>, vector<16x32xbf16>
    %cst = arith.constant dense<0.000000e+00> : vector<16x32xf32>
    %3 = tpu.matmul %1, %2, %cst {dimension_numbers = #tpu.dot_dimension_numbers<[1], [0], [0], [1], [0, 0, 1, 1], [], []>} : vector<16x16xbf16>, vector<16x32xbf16>, vector<16x32xf32> -> vector<16x32xf32>
    %c0_3 = arith.constant 0 : index
    %c0_4 = arith.constant 0 : index
    %4 = vector.load %arg3[%c0_3, %c0_4] : memref<1x32xf32, #tpu.memory_space<vmem>>, vector<1x32xf32>
    %5 = vector.broadcast %4 : vector<1x32xf32> to vector<16x32xf32>
    %6 = arith.addf %3, %5 : vector<16x32xf32>
    %c0_5 = arith.constant 0 : index
    %c0_6 = arith.constant 0 : index
    %7 = vector.load %arg4[%c0_5, %c0_6] : memref<1x32xf32, #tpu.memory_space<vmem>>, vector<1x32xf32>
    %c0_7 = arith.constant 0 : index
    %c0_8 = arith.constant 0 : index
    %8 = vector.load %arg5[%c0_7, %c0_8] : memref<1x32xf32, #tpu.memory_space<vmem>>, vector<1x32xf32>
    %cst_9 = arith.constant dense<0.000000e+00> : vector<16xf32>
    %9 = vector.multi_reduction <add>, %6, %cst_9 [1] : vector<16x32xf32> to vector<16xf32>
    %10 = vector.shape_cast %9 : vector<16xf32> to vector<16x1xf32>
    %cst_10 = arith.constant 3.200000e+01 : f32
    %11 = vector.broadcast %cst_10 : f32 to vector<16x1xf32>
    %12 = arith.divf %10, %11 : vector<16x1xf32>
    %13 = vector.broadcast %12 : vector<16x1xf32> to vector<16x32xf32>
    %14 = arith.subf %6, %13 : vector<16x32xf32>
    %15 = arith.mulf %14, %14 : vector<16x32xf32>
    %cst_11 = arith.constant dense<0.000000e+00> : vector<16xf32>
    %16 = vector.multi_reduction <add>, %15, %cst_11 [1] : vector<16x32xf32> to vector<16xf32>
    %17 = vector.shape_cast %16 : vector<16xf32> to vector<16x1xf32>
    %cst_12 = arith.constant 3.200000e+01 : f32
    %18 = vector.broadcast %cst_12 : f32 to vector<16x1xf32>
    %19 = arith.divf %17, %18 : vector<16x1xf32>
    %cst_13 = arith.constant 9.99999974E-6 : f32
    %20 = vector.broadcast %cst_13 : f32 to vector<16x1xf32>
    %21 = arith.addf %19, %20 : vector<16x1xf32>
    %22 = math.rsqrt %21 : vector<16x1xf32>
    %23 = vector.broadcast %22 : vector<16x1xf32> to vector<16x32xf32>
    %24 = arith.mulf %14, %23 : vector<16x32xf32>
    %25 = vector.broadcast %7 : vector<1x32xf32> to vector<16x32xf32>
    %26 = arith.mulf %24, %25 : vector<16x32xf32>
    %27 = vector.broadcast %8 : vector<1x32xf32> to vector<16x32xf32>
    %28 = arith.addf %26, %27 : vector<16x32xf32>
    %c0_14 = arith.constant 0 : index
    %c0_15 = arith.constant 0 : index
    %29 = vector.load %arg6[%c0_14, %c0_15] : memref<16x32xf32, #tpu.memory_space<vmem>>, vector<16x32xf32>
    tpu.vector_store %arg6[%c0_14, %c0_15], %28 {strides = array<i32>} : memref<16x32xf32, #tpu.memory_space<vmem>>, vector<16x32xf32>,
    return
  }
  func.func @transform_0(%arg0: i32) -> (i32, i32) {
    %c0_i32 = arith.constant 0 : i32
    %c0_i32_0 = arith.constant 0 : i32
    return %arg0, %c0_i32 : i32, i32
  }
  func.func @transform_1(%arg0: i32) -> (i32, i32) {
    %c0_i32 = arith.constant 0 : i32
    %c0_i32_0 = arith.constant 0 : i32
    %c0_i32_1 = arith.constant 0 : i32
    return %c0_i32, %c0_i32_0 : i32, i32
  }
  func.func @transform_2(%arg0: i32) -> (i32, i32) {
    %c0_i32 = arith.constant 0 : i32
    %c0_i32_0 = arith.constant 0 : i32
    %c0_i32_1 = arith.constant 0 : i32
    return %c0_i32, %c0_i32_0 : i32, i32
  }
  func.func @transform_3(%arg0: i32) -> (i32, i32) {
    %c0_i32 = arith.constant 0 : i32
    %c0_i32_0 = arith.constant 0 : i32
    %c0_i32_1 = arith.constant 0 : i32
    return %c0_i32, %c0_i32_0 : i32, i32
  }
  func.func @transform_4(%arg0: i32) -> (i32, i32) {
    %c0_i32 = arith.constant 0 : i32
    %c0_i32_0 = arith.constant 0 : i32
    %c0_i32_1 = arith.constant 0 : i32
    return %c0_i32, %c0_i32_0 : i32, i32
  }
  func.func @transform_5(%arg0: i32) -> (i32, i32) {
    %c0_i32 = arith.constant 0 : i32
    %c0_i32_0 = arith.constant 0 : i32
    return %arg0, %c0_i32 : i32, i32
  }
}

module attributes {stable_mosaic.version = 11 : i64} {
  func.func @_ffn_norm_kernel(%arg0: i32, %arg1: memref<16x32xf32, #tpu.memory_space<vmem>>, %arg2: memref<32x64xbf16, #tpu.memory_space<vmem>>, %arg3: memref<1x64xf32, #tpu.memory_space<vmem>>, %arg4: memref<64x32xbf16, #tpu.memory_space<vmem>>, %arg5: memref<1x32xf32, #tpu.memory_space<vmem>>, %arg6: memref<1x32xf32, #tpu.memory_space<vmem>>, %arg7: memref<1x32xf32, #tpu.memory_space<vmem>>, %arg8: memref<16x32xf32, #tpu.memory_space<vmem>>) attributes {dimension_semantics = [#tpu.dimension_semantics<parallel>], iteration_bounds = array<i64: 1>, scalar_prefetch = 0 : i64, scratch_operands = 0 : i64, tpu.core_type = #tpu.core_type<tc>, window_params = [{transform_indices = @transform_0, window_bounds = array<i64: 16, 32>}, {pipeline_mode = #tpu.pipeline_mode<synchronous>, transform_indices = @transform_1, window_bounds = array<i64: 32, 64>}, {pipeline_mode = #tpu.pipeline_mode<synchronous>, transform_indices = @transform_2, window_bounds = array<i64: 1, 64>}, {pipeline_mode = #tpu.pipeline_mode<synchronous>, transform_indices = @transform_3, window_bounds = array<i64: 64, 32>}, {pipeline_mode = #tpu.pipeline_mode<synchronous>, transform_indices = @transform_4, window_bounds = array<i64: 1, 32>}, {pipeline_mode = #tpu.pipeline_mode<synchronous>, transform_indices = @transform_5, window_bounds = array<i64: 1, 32>}, {pipeline_mode = #tpu.pipeline_mode<synchronous>, transform_indices = @transform_6, window_bounds = array<i64: 1, 32>}, {transform_indices = @transform_7, window_bounds = array<i64: 16, 32>}]} {
    %c0 = arith.constant 0 : index
    %c0_0 = arith.constant 0 : index
    %0 = vector.load %arg1[%c0, %c0_0] : memref<16x32xf32, #tpu.memory_space<vmem>>, vector<16x32xf32>
    %1 = arith.truncf %0 : vector<16x32xf32> to vector<16x32xbf16>
    %c0_1 = arith.constant 0 : index
    %c0_2 = arith.constant 0 : index
    %2 = vector.load %arg2[%c0_1, %c0_2] : memref<32x64xbf16, #tpu.memory_space<vmem>>, vector<32x64xbf16>
    %cst = arith.constant dense<0.000000e+00> : vector<16x64xf32>
    %3 = tpu.matmul %1, %2, %cst {dimension_numbers = #tpu.dot_dimension_numbers<[1], [0], [0], [1], [0, 0, 1, 1], [], []>} : vector<16x32xbf16>, vector<32x64xbf16>, vector<16x64xf32> -> vector<16x64xf32>
    %c0_3 = arith.constant 0 : index
    %c0_4 = arith.constant 0 : index
    %4 = vector.load %arg3[%c0_3, %c0_4] : memref<1x64xf32, #tpu.memory_space<vmem>>, vector<1x64xf32>
    %5 = vector.broadcast %4 : vector<1x64xf32> to vector<16x64xf32>
    %6 = arith.addf %3, %5 : vector<16x64xf32>
    %cst_5 = arith.constant 0.000000e+00 : f32
    %7 = vector.broadcast %cst_5 : f32 to vector<16x64xf32>
    %8 = arith.maximumf %6, %7 : vector<16x64xf32>
    %9 = arith.truncf %8 : vector<16x64xf32> to vector<16x64xbf16>
    %c0_6 = arith.constant 0 : index
    %c0_7 = arith.constant 0 : index
    %10 = vector.load %arg4[%c0_6, %c0_7] : memref<64x32xbf16, #tpu.memory_space<vmem>>, vector<64x32xbf16>
    %cst_8 = arith.constant dense<0.000000e+00> : vector<16x32xf32>
    %11 = tpu.matmul %9, %10, %cst_8 {dimension_numbers = #tpu.dot_dimension_numbers<[1], [0], [0], [1], [0, 0, 1, 1], [], []>} : vector<16x64xbf16>, vector<64x32xbf16>, vector<16x32xf32> -> vector<16x32xf32>
    %c0_9 = arith.constant 0 : index
    %c0_10 = arith.constant 0 : index
    %12 = vector.load %arg5[%c0_9, %c0_10] : memref<1x32xf32, #tpu.memory_space<vmem>>, vector<1x32xf32>
    %13 = vector.broadcast %12 : vector<1x32xf32> to vector<16x32xf32>
    %14 = arith.addf %11, %13 : vector<16x32xf32>
    %15 = arith.addf %0, %14 : vector<16x32xf32>
    %c0_11 = arith.constant 0 : index
    %c0_12 = arith.constant 0 : index
    %16 = vector.load %arg6[%c0_11, %c0_12] : memref<1x32xf32, #tpu.memory_space<vmem>>, vector<1x32xf32>
    %c0_13 = arith.constant 0 : index
    %c0_14 = arith.constant 0 : index
    %17 = vector.load %arg7[%c0_13, %c0_14] : memref<1x32xf32, #tpu.memory_space<vmem>>, vector<1x32xf32>
    %cst_15 = arith.constant dense<0.000000e+00> : vector<16xf32>
    %18 = vector.multi_reduction <add>, %15, %cst_15 [1] : vector<16x32xf32> to vector<16xf32>
    %19 = vector.shape_cast %18 : vector<16xf32> to vector<16x1xf32>
    %cst_16 = arith.constant 3.200000e+01 : f32
    %20 = vector.broadcast %cst_16 : f32 to vector<16x1xf32>
    %21 = arith.divf %19, %20 : vector<16x1xf32>
    %22 = vector.broadcast %21 : vector<16x1xf32> to vector<16x32xf32>
    %23 = arith.subf %15, %22 : vector<16x32xf32>
    %24 = arith.mulf %23, %23 : vector<16x32xf32>
    %cst_17 = arith.constant dense<0.000000e+00> : vector<16xf32>
    %25 = vector.multi_reduction <add>, %24, %cst_17 [1] : vector<16x32xf32> to vector<16xf32>
    %26 = vector.shape_cast %25 : vector<16xf32> to vector<16x1xf32>
    %cst_18 = arith.constant 3.200000e+01 : f32
    %27 = vector.broadcast %cst_18 : f32 to vector<16x1xf32>
    %28 = arith.divf %26, %27 : vector<16x1xf32>
    %cst_19 = arith.constant 9.99999974E-6 : f32
    %29 = vector.broadcast %cst_19 : f32 to vector<16x1xf32>
    %30 = arith.addf %28, %29 : vector<16x1xf32>
    %31 = math.rsqrt %30 : vector<16x1xf32>
    %32 = vector.broadcast %31 : vector<16x1xf32> to vector<16x32xf32>
    %33 = arith.mulf %23, %32 : vector<16x32xf32>
    %34 = vector.broadcast %16 : vector<1x32xf32> to vector<16x32xf32>
    %35 = arith.mulf %33, %34 : vector<16x32xf32>
    %36 = vector.broadcast %17 : vector<1x32xf32> to vector<16x32xf32>
    %37 = arith.addf %35, %36 : vector<16x32xf32>
    %c0_20 = arith.constant 0 : index
    %c0_21 = arith.constant 0 : index
    %38 = vector.load %arg8[%c0_20, %c0_21] : memref<16x32xf32, #tpu.memory_space<vmem>>, vector<16x32xf32>
    tpu.vector_store %arg8[%c0_20, %c0_21], %37 {strides = array<i32>} : memref<16x32xf32, #tpu.memory_space<vmem>>, vector<16x32xf32>,
    return
  }
  func.func @transform_0(%arg0: i32) -> (i32, i32) {
    %c0_i32 = arith.constant 0 : i32
    %c0_i32_0 = arith.constant 0 : i32
    return %arg0, %c0_i32 : i32, i32
  }
  func.func @transform_1(%arg0: i32) -> (i32, i32) {
    %c0_i32 = arith.constant 0 : i32
    %c0_i32_0 = arith.constant 0 : i32
    %c0_i32_1 = arith.constant 0 : i32
    return %c0_i32, %c0_i32_0 : i32, i32
  }
  func.func @transform_2(%arg0: i32) -> (i32, i32) {
    %c0_i32 = arith.constant 0 : i32
    %c0_i32_0 = arith.constant 0 : i32
    %c0_i32_1 = arith.constant 0 : i32
    return %c0_i32, %c0_i32_0 : i32, i32
  }
  func.func @transform_3(%arg0: i32) -> (i32, i32) {
    %c0_i32 = arith.constant 0 : i32
    %c0_i32_0 = arith.constant 0 : i32
    %c0_i32_1 = arith.constant 0 : i32
    return %c0_i32, %c0_i32_0 : i32, i32
  }
  func.func @transform_4(%arg0: i32) -> (i32, i32) {
    %c0_i32 = arith.constant 0 : i32
    %c0_i32_0 = arith.constant 0 : i32
    %c0_i32_1 = arith.constant 0 : i32
    return %c0_i32, %c0_i32_0 : i32, i32
  }
  func.func @transform_5(%arg0: i32) -> (i32, i32) {
    %c0_i32 = arith.constant 0 : i32
    %c0_i32_0 = arith.constant 0 : i32
    %c0_i32_1 = arith.constant 0 : i32
    return %c0_i32, %c0_i32_0 : i32, i32
  }
  func.func @transform_6(%arg0: i32) -> (i32, i32) {
    %c0_i32 = arith.constant 0 : i32
    %c0_i32_0 = arith.constant 0 : i32
    %c0_i32_1 = arith.constant 0 : i32
    return %c0_i32, %c0_i32_0 : i32, i32
  }
  func.func @transform_7(%arg0: i32) -> (i32, i32) {
    %c0_i32 = arith.constant 0 : i32
    %c0_i32_0 = arith.constant 0 : i32
    return %arg0, %c0_i32 : i32, i32
  }
}

module attributes {stable_mosaic.version = 11 : i64} {
  func.func @_mha_block_kernel(%arg0: i32, %arg1: memref<1x8x32xf32, #tpu.memory_space<vmem>>, %arg2: memref<32x96xbf16, #tpu.memory_space<vmem>>, %arg3: memref<1x96xf32, #tpu.memory_space<vmem>>, %arg4: memref<32x32xbf16, #tpu.memory_space<vmem>>, %arg5: memref<1x32xf32, #tpu.memory_space<vmem>>, %arg6: memref<1x32xf32, #tpu.memory_space<vmem>>, %arg7: memref<1x32xf32, #tpu.memory_space<vmem>>, %arg8: memref<1x8x32xf32, #tpu.memory_space<vmem>>) attributes {dimension_semantics = [#tpu.dimension_semantics<parallel>], iteration_bounds = array<i64: 2>, scalar_prefetch = 0 : i64, scratch_operands = 0 : i64, tpu.core_type = #tpu.core_type<tc>, window_params = [{transform_indices = @transform_0, window_bounds = array<i64: 1, 8, 32>}, {pipeline_mode = #tpu.pipeline_mode<synchronous>, transform_indices = @transform_1, window_bounds = array<i64: 32, 96>}, {pipeline_mode = #tpu.pipeline_mode<synchronous>, transform_indices = @transform_2, window_bounds = array<i64: 1, 96>}, {pipeline_mode = #tpu.pipeline_mode<synchronous>, transform_indices = @transform_3, window_bounds = array<i64: 32, 32>}, {pipeline_mode = #tpu.pipeline_mode<synchronous>, transform_indices = @transform_4, window_bounds = array<i64: 1, 32>}, {pipeline_mode = #tpu.pipeline_mode<synchronous>, transform_indices = @transform_5, window_bounds = array<i64: 1, 32>}, {pipeline_mode = #tpu.pipeline_mode<synchronous>, transform_indices = @transform_6, window_bounds = array<i64: 1, 32>}, {transform_indices = @transform_7, window_bounds = array<i64: 1, 8, 32>}]} {
    %c0 = arith.constant 0 : index
    %c0_0 = arith.constant 0 : index
    %c0_1 = arith.constant 0 : index
    %0 = vector.load %arg1[%c0, %c0_0, %c0_1] : memref<1x8x32xf32, #tpu.memory_space<vmem>>, vector<1x8x32xf32>
    %1 = vector.shape_cast %0 : vector<1x8x32xf32> to vector<8x32xf32>
    %2 = arith.truncf %1 : vector<8x32xf32> to vector<8x32xbf16>
    %c0_2 = arith.constant 0 : index
    %c0_3 = arith.constant 0 : index
    %3 = vector.load %arg2[%c0_2, %c0_3] : memref<32x96xbf16, #tpu.memory_space<vmem>>, vector<32x96xbf16>
    %cst = arith.constant dense<0.000000e+00> : vector<8x96xf32>
    %4 = tpu.matmul %2, %3, %cst {dimension_numbers = #tpu.dot_dimension_numbers<[1], [0], [0], [1], [0, 0, 1, 1], [], []>} : vector<8x32xbf16>, vector<32x96xbf16>, vector<8x96xf32> -> vector<8x96xf32>
    %c0_4 = arith.constant 0 : index
    %c0_5 = arith.constant 0 : index
    %5 = vector.load %arg3[%c0_4, %c0_5] : memref<1x96xf32, #tpu.memory_space<vmem>>, vector<1x96xf32>
    %6 = vector.broadcast %5 : vector<1x96xf32> to vector<8x96xf32>
    %7 = arith.addf %4, %6 : vector<8x96xf32>
    %8 = vector.extract_strided_slice %7 {offsets = [0, 0], sizes = [8, 8], strides = [1, 1]} : vector<8x96xf32> to vector<8x8xf32>
    %cst_6 = arith.constant 0.353553385 : f32
    %9 = vector.broadcast %cst_6 : f32 to vector<8x8xf32>
    %10 = arith.mulf %8, %9 : vector<8x8xf32>
    %11 = vector.extract_strided_slice %7 {offsets = [0, 32], sizes = [8, 8], strides = [1, 1]} : vector<8x96xf32> to vector<8x8xf32>
    %12 = vector.extract_strided_slice %7 {offsets = [0, 64], sizes = [8, 8], strides = [1, 1]} : vector<8x96xf32> to vector<8x8xf32>
    %13 = arith.truncf %10 : vector<8x8xf32> to vector<8x8xbf16>
    %14 = arith.truncf %11 : vector<8x8xf32> to vector<8x8xbf16>
    %15 = tpu.transpose %14, [1, 0] : vector<8x8xbf16> -> vector<8x8xbf16>
    %cst_7 = arith.constant dense<0.000000e+00> : vector<8x8xf32>
    %16 = tpu.matmul %13, %15, %cst_7 {dimension_numbers = #tpu.dot_dimension_numbers<[1], [0], [0], [1], [0, 0, 1, 1], [], []>} : vector<8x8xbf16>, vector<8x8xbf16>, vector<8x8xf32> -> vector<8x8xf32>
    %cst_8 = arith.constant dense<0xFF800000> : vector<8xf32>
    %17 = vector.multi_reduction <maximumf>, %16, %cst_8 [1] : vector<8x8xf32> to vector<8xf32>
    %18 = vector.shape_cast %17 : vector<8xf32> to vector<8x1xf32>
    %19 = vector.broadcast %18 : vector<8x1xf32> to vector<8x8xf32>
    %20 = arith.subf %16, %19 : vector<8x8xf32>
    %21 = math.exp %20 : vector<8x8xf32>
    %cst_9 = arith.constant dense<0.000000e+00> : vector<8xf32>
    %22 = vector.multi_reduction <add>, %21, %cst_9 [1] : vector<8x8xf32> to vector<8xf32>
    %23 = vector.shape_cast %22 : vector<8xf32> to vector<8x1xf32>
    %24 = tpu.reciprocal %23 {approx = true} : vector<8x1xf32> -> vector<8x1xf32>
    %25 = vector.broadcast %24 : vector<8x1xf32> to vector<8x8xf32>
    %26 = arith.mulf %21, %25 : vector<8x8xf32>
    %27 = arith.truncf %26 : vector<8x8xf32> to vector<8x8xbf16>
    %28 = arith.truncf %12 : vector<8x8xf32> to vector<8x8xbf16>
    %cst_10 = arith.constant dense<0.000000e+00> : vector<8x8xf32>
    %29 = tpu.matmul %27, %28, %cst_10 {dimension_numbers = #tpu.dot_dimension_numbers<[1], [0], [0], [1], [0, 0, 1, 1], [], []>} : vector<8x8xbf16>, vector<8x8xbf16>, vector<8x8xf32> -> vector<8x8xf32>
    %30 = vector.extract_strided_slice %7 {offsets = [0, 8], sizes = [8, 8], strides = [1, 1]} : vector<8x96xf32> to vector<8x8xf32>
    %cst_11 = arith.constant 0.353553385 : f32
    %31 = vector.broadcast %cst_11 : f32 to vector<8x8xf32>
    %32 = arith.mulf %30, %31 : vector<8x8xf32>
    %33 = vector.extract_strided_slice %7 {offsets = [0, 40], sizes = [8, 8], strides = [1, 1]} : vector<8x96xf32> to vector<8x8xf32>
    %34 = vector.extract_strided_slice %7 {offsets = [0, 72], sizes = [8, 8], strides = [1, 1]} : vector<8x96xf32> to vector<8x8xf32>
    %35 = arith.truncf %32 : vector<8x8xf32> to vector<8x8xbf16>
    %36 = arith.truncf %33 : vector<8x8xf32> to vector<8x8xbf16>
    %37 = tpu.transpose %36, [1, 0] : vector<8x8xbf16> -> vector<8x8xbf16>
    %cst_12 = arith.constant dense<0.000000e+00> : vector<8x8xf32>
    %38 = tpu.matmul %35, %37, %cst_12 {dimension_numbers = #tpu.dot_dimension_numbers<[1], [0], [0], [1], [0, 0, 1, 1], [], []>} : vector<8x8xbf16>, vector<8x8xbf16>, vector<8x8xf32> -> vector<8x8xf32>
    %cst_13 = arith.constant dense<0xFF800000> : vector<8xf32>
    %39 = vector.multi_reduction <maximumf>, %38, %cst_13 [1] : vector<8x8xf32> to vector<8xf32>
    %40 = vector.shape_cast %39 : vector<8xf32> to vector<8x1xf32>
    %41 = vector.broadcast %40 : vector<8x1xf32> to vector<8x8xf32>
    %42 = arith.subf %38, %41 : vector<8x8xf32>
    %43 = math.exp %42 : vector<8x8xf32>
    %cst_14 = arith.constant dense<0.000000e+00> : vector<8xf32>
    %44 = vector.multi_reduction <add>, %43, %cst_14 [1] : vector<8x8xf32> to vector<8xf32>
    %45 = vector.shape_cast %44 : vector<8xf32> to vector<8x1xf32>
    %46 = tpu.reciprocal %45 {approx = true} : vector<8x1xf32> -> vector<8x1xf32>
    %47 = vector.broadcast %46 : vector<8x1xf32> to vector<8x8xf32>
    %48 = arith.mulf %43, %47 : vector<8x8xf32>
    %49 = arith.truncf %48 : vector<8x8xf32> to vector<8x8xbf16>
    %50 = arith.truncf %34 : vector<8x8xf32> to vector<8x8xbf16>
    %cst_15 = arith.constant dense<0.000000e+00> : vector<8x8xf32>
    %51 = tpu.matmul %49, %50, %cst_15 {dimension_numbers = #tpu.dot_dimension_numbers<[1], [0], [0], [1], [0, 0, 1, 1], [], []>} : vector<8x8xbf16>, vector<8x8xbf16>, vector<8x8xf32> -> vector<8x8xf32>
    %52 = vector.extract_strided_slice %7 {offsets = [0, 16], sizes = [8, 8], strides = [1, 1]} : vector<8x96xf32> to vector<8x8xf32>
    %cst_16 = arith.constant 0.353553385 : f32
    %53 = vector.broadcast %cst_16 : f32 to vector<8x8xf32>
    %54 = arith.mulf %52, %53 : vector<8x8xf32>
    %55 = vector.extract_strided_slice %7 {offsets = [0, 48], sizes = [8, 8], strides = [1, 1]} : vector<8x96xf32> to vector<8x8xf32>
    %56 = vector.extract_strided_slice %7 {offsets = [0, 80], sizes = [8, 8], strides = [1, 1]} : vector<8x96xf32> to vector<8x8xf32>
    %57 = arith.truncf %54 : vector<8x8xf32> to vector<8x8xbf16>
    %58 = arith.truncf %55 : vector<8x8xf32> to vector<8x8xbf16>
    %59 = tpu.transpose %58, [1, 0] : vector<8x8xbf16> -> vector<8x8xbf16>
    %cst_17 = arith.constant dense<0.000000e+00> : vector<8x8xf32>
    %60 = tpu.matmul %57, %59, %cst_17 {dimension_numbers = #tpu.dot_dimension_numbers<[1], [0], [0], [1], [0, 0, 1, 1], [], []>} : vector<8x8xbf16>, vector<8x8xbf16>, vector<8x8xf32> -> vector<8x8xf32>
    %cst_18 = arith.constant dense<0xFF800000> : vector<8xf32>
    %61 = vector.multi_reduction <maximumf>, %60, %cst_18 [1] : vector<8x8xf32> to vector<8xf32>
    %62 = vector.shape_cast %61 : vector<8xf32> to vector<8x1xf32>
    %63 = vector.broadcast %62 : vector<8x1xf32> to vector<8x8xf32>
    %64 = arith.subf %60, %63 : vector<8x8xf32>
    %65 = math.exp %64 : vector<8x8xf32>
    %cst_19 = arith.constant dense<0.000000e+00> : vector<8xf32>
    %66 = vector.multi_reduction <add>, %65, %cst_19 [1] : vector<8x8xf32> to vector<8xf32>
    %67 = vector.shape_cast %66 : vector<8xf32> to vector<8x1xf32>
    %68 = tpu.reciprocal %67 {approx = true} : vector<8x1xf32> -> vector<8x1xf32>
    %69 = vector.broadcast %68 : vector<8x1xf32> to vector<8x8xf32>
    %70 = arith.mulf %65, %69 : vector<8x8xf32>
    %71 = arith.truncf %70 : vector<8x8xf32> to vector<8x8xbf16>
    %72 = arith.truncf %56 : vector<8x8xf32> to vector<8x8xbf16>
    %cst_20 = arith.constant dense<0.000000e+00> : vector<8x8xf32>
    %73 = tpu.matmul %71, %72, %cst_20 {dimension_numbers = #tpu.dot_dimension_numbers<[1], [0], [0], [1], [0, 0, 1, 1], [], []>} : vector<8x8xbf16>, vector<8x8xbf16>, vector<8x8xf32> -> vector<8x8xf32>
    %74 = vector.extract_strided_slice %7 {offsets = [0, 24], sizes = [8, 8], strides = [1, 1]} : vector<8x96xf32> to vector<8x8xf32>
    %cst_21 = arith.constant 0.353553385 : f32
    %75 = vector.broadcast %cst_21 : f32 to vector<8x8xf32>
    %76 = arith.mulf %74, %75 : vector<8x8xf32>
    %77 = vector.extract_strided_slice %7 {offsets = [0, 56], sizes = [8, 8], strides = [1, 1]} : vector<8x96xf32> to vector<8x8xf32>
    %78 = vector.extract_strided_slice %7 {offsets = [0, 88], sizes = [8, 8], strides = [1, 1]} : vector<8x96xf32> to vector<8x8xf32>
    %79 = arith.truncf %76 : vector<8x8xf32> to vector<8x8xbf16>
    %80 = arith.truncf %77 : vector<8x8xf32> to vector<8x8xbf16>
    %81 = tpu.transpose %80, [1, 0] : vector<8x8xbf16> -> vector<8x8xbf16>
    %cst_22 = arith.constant dense<0.000000e+00> : vector<8x8xf32>
    %82 = tpu.matmul %79, %81, %cst_22 {dimension_numbers = #tpu.dot_dimension_numbers<[1], [0], [0], [1], [0, 0, 1, 1], [], []>} : vector<8x8xbf16>, vector<8x8xbf16>, vector<8x8xf32> -> vector<8x8xf32>
    %cst_23 = arith.constant dense<0xFF800000> : vector<8xf32>
    %83 = vector.multi_reduction <maximumf>, %82, %cst_23 [1] : vector<8x8xf32> to vector<8xf32>
    %84 = vector.shape_cast %83 : vector<8xf32> to vector<8x1xf32>
    %85 = vector.broadcast %84 : vector<8x1xf32> to vector<8x8xf32>
    %86 = arith.subf %82, %85 : vector<8x8xf32>
    %87 = math.exp %86 : vector<8x8xf32>
    %cst_24 = arith.constant dense<0.000000e+00> : vector<8xf32>
    %88 = vector.multi_reduction <add>, %87, %cst_24 [1] : vector<8x8xf32> to vector<8xf32>
    %89 = vector.shape_cast %88 : vector<8xf32> to vector<8x1xf32>
    %90 = tpu.reciprocal %89 {approx = true} : vector<8x1xf32> -> vector<8x1xf32>
    %91 = vector.broadcast %90 : vector<8x1xf32> to vector<8x8xf32>
    %92 = arith.mulf %87, %91 : vector<8x8xf32>
    %93 = arith.truncf %92 : vector<8x8xf32> to vector<8x8xbf16>
    %94 = arith.truncf %78 : vector<8x8xf32> to vector<8x8xbf16>
    %cst_25 = arith.constant dense<0.000000e+00> : vector<8x8xf32>
    %95 = tpu.matmul %93, %94, %cst_25 {dimension_numbers = #tpu.dot_dimension_numbers<[1], [0], [0], [1], [0, 0, 1, 1], [], []>} : vector<8x8xbf16>, vector<8x8xbf16>, vector<8x8xf32> -> vector<8x8xf32>
    %96 = tpu.concatenate %29, %51, %73, %95 in 1 : vector<8x8xf32>, vector<8x8xf32>, vector<8x8xf32>, vector<8x8xf32> -> vector<8x32xf32>
    %97 = arith.truncf %96 : vector<8x32xf32> to vector<8x32xbf16>
    %c0_26 = arith.constant 0 : index
    %c0_27 = arith.constant 0 : index
    %98 = vector.load %arg4[%c0_26, %c0_27] : memref<32x32xbf16, #tpu.memory_space<vmem>>, vector<32x32xbf16>
    %cst_28 = arith.constant dense<0.000000e+00> : vector<8x32xf32>
    %99 = tpu.matmul %97, %98, %cst_28 {dimension_numbers = #tpu.dot_dimension_numbers<[1], [0], [0], [1], [0, 0, 1, 1], [], []>} : vector<8x32xbf16>, vector<32x32xbf16>, vector<8x32xf32> -> vector<8x32xf32>
    %c0_29 = arith.constant 0 : index
    %c0_30 = arith.constant 0 : index
    %100 = vector.load %arg5[%c0_29, %c0_30] : memref<1x32xf32, #tpu.memory_space<vmem>>, vector<1x32xf32>
    %101 = vector.broadcast %100 : vector<1x32xf32> to vector<8x32xf32>
    %102 = arith.addf %99, %101 : vector<8x32xf32>
    %103 = arith.addf %1, %102 : vector<8x32xf32>
    %c0_31 = arith.constant 0 : index
    %c0_32 = arith.constant 0 : index
    %104 = vector.load %arg6[%c0_31, %c0_32] : memref<1x32xf32, #tpu.memory_space<vmem>>, vector<1x32xf32>
    %c0_33 = arith.constant 0 : index
    %c0_34 = arith.constant 0 : index
    %105 = vector.load %arg7[%c0_33, %c0_34] : memref<1x32xf32, #tpu.memory_space<vmem>>, vector<1x32xf32>
    %cst_35 = arith.constant dense<0.000000e+00> : vector<8xf32>
    %106 = vector.multi_reduction <add>, %103, %cst_35 [1] : vector<8x32xf32> to vector<8xf32>
    %107 = vector.shape_cast %106 : vector<8xf32> to vector<8x1xf32>
    %cst_36 = arith.constant 3.200000e+01 : f32
    %108 = vector.broadcast %cst_36 : f32 to vector<8x1xf32>
    %109 = arith.divf %107, %108 : vector<8x1xf32>
    %110 = vector.broadcast %109 : vector<8x1xf32> to vector<8x32xf32>
    %111 = arith.subf %103, %110 : vector<8x32xf32>
    %112 = arith.mulf %111, %111 : vector<8x32xf32>
    %cst_37 = arith.constant dense<0.000000e+00> : vector<8xf32>
    %113 = vector.multi_reduction <add>, %112, %cst_37 [1] : vector<8x32xf32> to vector<8xf32>
    %114 = vector.shape_cast %113 : vector<8xf32> to vector<8x1xf32>
    %cst_38 = arith.constant 3.200000e+01 : f32
    %115 = vector.broadcast %cst_38 : f32 to vector<8x1xf32>
    %116 = arith.divf %114, %115 : vector<8x1xf32>
    %cst_39 = arith.constant 9.99999974E-6 : f32
    %117 = vector.broadcast %cst_39 : f32 to vector<8x1xf32>
    %118 = arith.addf %116, %117 : vector<8x1xf32>
    %119 = math.rsqrt %118 : vector<8x1xf32>
    %120 = vector.broadcast %119 : vector<8x1xf32> to vector<8x32xf32>
    %121 = arith.mulf %111, %120 : vector<8x32xf32>
    %122 = vector.broadcast %104 : vector<1x32xf32> to vector<8x32xf32>
    %123 = arith.mulf %121, %122 : vector<8x32xf32>
    %124 = vector.broadcast %105 : vector<1x32xf32> to vector<8x32xf32>
    %125 = arith.addf %123, %124 : vector<8x32xf32>
    %c0_40 = arith.constant 0 : index
    %c0_41 = arith.constant 0 : index
    %c0_42 = arith.constant 0 : index
    %126 = vector.load %arg8[%c0_40, %c0_41, %c0_42] : memref<1x8x32xf32, #tpu.memory_space<vmem>>, vector<1x8x32xf32>
    %127 = vector.shape_cast %126 : vector<1x8x32xf32> to vector<8x32xf32>
    %128 = vector.shape_cast %125 : vector<8x32xf32> to vector<1x8x32xf32>
    tpu.vector_store %arg8[%c0_40, %c0_41, %c0_42], %128 {strides = array<i32>} : memref<1x8x32xf32, #tpu.memory_space<vmem>>, vector<1x8x32xf32>,
    return
  }
  func.func @transform_0(%arg0: i32) -> (i32, i32, i32) {
    %c0_i32 = arith.constant 0 : i32
    %c0_i32_0 = arith.constant 0 : i32
    %c0_i32_1 = arith.constant 0 : i32
    return %arg0, %c0_i32, %c0_i32_0 : i32, i32, i32
  }
  func.func @transform_1(%arg0: i32) -> (i32, i32) {
    %c0_i32 = arith.constant 0 : i32
    %c0_i32_0 = arith.constant 0 : i32
    %c0_i32_1 = arith.constant 0 : i32
    return %c0_i32, %c0_i32_0 : i32, i32
  }
  func.func @transform_2(%arg0: i32) -> (i32, i32) {
    %c0_i32 = arith.constant 0 : i32
    %c0_i32_0 = arith.constant 0 : i32
    %c0_i32_1 = arith.constant 0 : i32
    return %c0_i32, %c0_i32_0 : i32, i32
  }
  func.func @transform_3(%arg0: i32) -> (i32, i32) {
    %c0_i32 = arith.constant 0 : i32
    %c0_i32_0 = arith.constant 0 : i32
    %c0_i32_1 = arith.constant 0 : i32
    return %c0_i32, %c0_i32_0 : i32, i32
  }
  func.func @transform_4(%arg0: i32) -> (i32, i32) {
    %c0_i32 = arith.constant 0 : i32
    %c0_i32_0 = arith.constant 0 : i32
    %c0_i32_1 = arith.constant 0 : i32
    return %c0_i32, %c0_i32_0 : i32, i32
  }
  func.func @transform_5(%arg0: i32) -> (i32, i32) {
    %c0_i32 = arith.constant 0 : i32
    %c0_i32_0 = arith.constant 0 : i32
    %c0_i32_1 = arith.constant 0 : i32
    return %c0_i32, %c0_i32_0 : i32, i32
  }
  func.func @transform_6(%arg0: i32) -> (i32, i32) {
    %c0_i32 = arith.constant 0 : i32
    %c0_i32_0 = arith.constant 0 : i32
    %c0_i32_1 = arith.constant 0 : i32
    return %c0_i32, %c0_i32_0 : i32, i32
  }
  func.func @transform_7(%arg0: i32) -> (i32, i32, i32) {
    %c0_i32 = arith.constant 0 : i32
    %c0_i32_0 = arith.constant 0 : i32
    %c0_i32_1 = arith.constant 0 : i32
    return %arg0, %c0_i32, %c0_i32_0 : i32, i32, i32
  }
}

module attributes {stable_mosaic.version = 11 : i64} {
  func.func @_mha_block_kernel(%arg0: i32, %arg1: memref<1x8x32xf32, #tpu.memory_space<vmem>>, %arg2: memref<32x96xbf16, #tpu.memory_space<vmem>>, %arg3: memref<1x96xf32, #tpu.memory_space<vmem>>, %arg4: memref<32x32xbf16, #tpu.memory_space<vmem>>, %arg5: memref<1x32xf32, #tpu.memory_space<vmem>>, %arg6: memref<1x32xf32, #tpu.memory_space<vmem>>, %arg7: memref<1x32xf32, #tpu.memory_space<vmem>>, %arg8: memref<1x8x32xf32, #tpu.memory_space<vmem>>) attributes {dimension_semantics = [#tpu.dimension_semantics<parallel>], iteration_bounds = array<i64: 2>, scalar_prefetch = 0 : i64, scratch_operands = 0 : i64, tpu.core_type = #tpu.core_type<tc>, window_params = [{transform_indices = @transform_0, window_bounds = array<i64: 1, 8, 32>}, {pipeline_mode = #tpu.pipeline_mode<synchronous>, transform_indices = @transform_1, window_bounds = array<i64: 32, 96>}, {pipeline_mode = #tpu.pipeline_mode<synchronous>, transform_indices = @transform_2, window_bounds = array<i64: 1, 96>}, {pipeline_mode = #tpu.pipeline_mode<synchronous>, transform_indices = @transform_3, window_bounds = array<i64: 32, 32>}, {pipeline_mode = #tpu.pipeline_mode<synchronous>, transform_indices = @transform_4, window_bounds = array<i64: 1, 32>}, {pipeline_mode = #tpu.pipeline_mode<synchronous>, transform_indices = @transform_5, window_bounds = array<i64: 1, 32>}, {pipeline_mode = #tpu.pipeline_mode<synchronous>, transform_indices = @transform_6, window_bounds = array<i64: 1, 32>}, {transform_indices = @transform_7, window_bounds = array<i64: 1, 8, 32>}]} {
    %c0 = arith.constant 0 : index
    %c0_0 = arith.constant 0 : index
    %c0_1 = arith.constant 0 : index
    %0 = vector.load %arg1[%c0, %c0_0, %c0_1] : memref<1x8x32xf32, #tpu.memory_space<vmem>>, vector<1x8x32xf32>
    %1 = vector.shape_cast %0 : vector<1x8x32xf32> to vector<8x32xf32>
    %2 = arith.truncf %1 : vector<8x32xf32> to vector<8x32xbf16>
    %c0_2 = arith.constant 0 : index
    %c0_3 = arith.constant 0 : index
    %3 = vector.load %arg2[%c0_2, %c0_3] : memref<32x96xbf16, #tpu.memory_space<vmem>>, vector<32x96xbf16>
    %cst = arith.constant dense<0.000000e+00> : vector<8x96xf32>
    %4 = tpu.matmul %2, %3, %cst {dimension_numbers = #tpu.dot_dimension_numbers<[1], [0], [0], [1], [0, 0, 1, 1], [], []>} : vector<8x32xbf16>, vector<32x96xbf16>, vector<8x96xf32> -> vector<8x96xf32>
    %c0_4 = arith.constant 0 : index
    %c0_5 = arith.constant 0 : index
    %5 = vector.load %arg3[%c0_4, %c0_5] : memref<1x96xf32, #tpu.memory_space<vmem>>, vector<1x96xf32>
    %6 = vector.broadcast %5 : vector<1x96xf32> to vector<8x96xf32>
    %7 = arith.addf %4, %6 : vector<8x96xf32>
    %8 = vector.extract_strided_slice %7 {offsets = [0, 0], sizes = [8, 8], strides = [1, 1]} : vector<8x96xf32> to vector<8x8xf32>
    %cst_6 = arith.constant 0.353553385 : f32
    %9 = vector.broadcast %cst_6 : f32 to vector<8x8xf32>
    %10 = arith.mulf %8, %9 : vector<8x8xf32>
    %11 = vector.extract_strided_slice %7 {offsets = [0, 32], sizes = [8, 8], strides = [1, 1]} : vector<8x96xf32> to vector<8x8xf32>
    %12 = vector.extract_strided_slice %7 {offsets = [0, 64], sizes = [8, 8], strides = [1, 1]} : vector<8x96xf32> to vector<8x8xf32>
    %13 = arith.truncf %10 : vector<8x8xf32> to vector<8x8xbf16>
    %14 = arith.truncf %11 : vector<8x8xf32> to vector<8x8xbf16>
    %15 = tpu.transpose %14, [1, 0] : vector<8x8xbf16> -> vector<8x8xbf16>
    %cst_7 = arith.constant dense<0.000000e+00> : vector<8x8xf32>
    %16 = tpu.matmul %13, %15, %cst_7 {dimension_numbers = #tpu.dot_dimension_numbers<[1], [0], [0], [1], [0, 0, 1, 1], [], []>} : vector<8x8xbf16>, vector<8x8xbf16>, vector<8x8xf32> -> vector<8x8xf32>
    %cst_8 = arith.constant dense<0xFF800000> : vector<8xf32>
    %17 = vector.multi_reduction <maximumf>, %16, %cst_8 [1] : vector<8x8xf32> to vector<8xf32>
    %18 = vector.shape_cast %17 : vector<8xf32> to vector<8x1xf32>
    %19 = vector.broadcast %18 : vector<8x1xf32> to vector<8x8xf32>
    %20 = arith.subf %16, %19 : vector<8x8xf32>
    %21 = math.exp %20 : vector<8x8xf32>
    %cst_9 = arith.constant dense<0.000000e+00> : vector<8xf32>
    %22 = vector.multi_reduction <add>, %21, %cst_9 [1] : vector<8x8xf32> to vector<8xf32>
    %23 = vector.shape_cast %22 : vector<8xf32> to vector<8x1xf32>
    %24 = tpu.reciprocal %23 {approx = true} : vector<8x1xf32> -> vector<8x1xf32>
    %25 = vector.broadcast %24 : vector<8x1xf32> to vector<8x8xf32>
    %26 = arith.mulf %21, %25 : vector<8x8xf32>
    %27 = arith.truncf %26 : vector<8x8xf32> to vector<8x8xbf16>
    %28 = arith.truncf %12 : vector<8x8xf32> to vector<8x8xbf16>
    %cst_10 = arith.constant dense<0.000000e+00> : vector<8x8xf32>
    %29 = tpu.matmul %27, %28, %cst_10 {dimension_numbers = #tpu.dot_dimension_numbers<[1], [0], [0], [1], [0, 0, 1, 1], [], []>} : vector<8x8xbf16>, vector<8x8xbf16>, vector<8x8xf32> -> vector<8x8xf32>
    %30 = vector.extract_strided_slice %7 {offsets = [0, 8], sizes = [8, 8], strides = [1, 1]} : vector<8x96xf32> to vector<8x8xf32>
    %cst_11 = arith.constant 0.353553385 : f32
    %31 = vector.broadcast %cst_11 : f32 to vector<8x8xf32>
    %32 = arith.mulf %30, %31 : vector<8x8xf32>
    %33 = vector.extract_strided_slice %7 {offsets = [0, 40], sizes = [8, 8], strides = [1, 1]} : vector<8x96xf32> to vector<8x8xf32>
    %34 = vector.extract_strided_slice %7 {offsets = [0, 72], sizes = [8, 8], strides = [1, 1]} : vector<8x96xf32> to vector<8x8xf32>
    %35 = arith.truncf %32 : vector<8x8xf32> to vector<8x8xbf16>
    %36 = arith.truncf %33 : vector<8x8xf32> to vector<8x8xbf16>
    %37 = tpu.transpose %36, [1, 0] : vector<8x8xbf16> -> vector<8x8xbf16>
    %cst_12 = arith.constant dense<0.000000e+00> : vector<8x8xf32>
    %38 = tpu.matmul %35, %37, %cst_12 {dimension_numbers = #tpu.dot_dimension_numbers<[1], [0], [0], [1], [0, 0, 1, 1], [], []>} : vector<8x8xbf16>, vector<8x8xbf16>, vector<8x8xf32> -> vector<8x8xf32>
    %cst_13 = arith.constant dense<0xFF800000> : vector<8xf32>
    %39 = vector.multi_reduction <maximumf>, %38, %cst_13 [1] : vector<8x8xf32> to vector<8xf32>
    %40 = vector.shape_cast %39 : vector<8xf32> to vector<8x1xf32>
    %41 = vector.broadcast %40 : vector<8x1xf32> to vector<8x8xf32>
    %42 = arith.subf %38, %41 : vector<8x8xf32>
    %43 = math.exp %42 : vector<8x8xf32>
    %cst_14 = arith.constant dense<0.000000e+00> : vector<8xf32>
    %44 = vector.multi_reduction <add>, %43, %cst_14 [1] : vector<8x8xf32> to vector<8xf32>
    %45 = vector.shape_cast %44 : vector<8xf32> to vector<8x1xf32>
    %46 = tpu.reciprocal %45 {approx = true} : vector<8x1xf32> -> vector<8x1xf32>
    %47 = vector.broadcast %46 : vector<8x1xf32> to vector<8x8xf32>
    %48 = arith.mulf %43, %47 : vector<8x8xf32>
    %49 = arith.truncf %48 : vector<8x8xf32> to vector<8x8xbf16>
    %50 = arith.truncf %34 : vector<8x8xf32> to vector<8x8xbf16>
    %cst_15 = arith.constant dense<0.000000e+00> : vector<8x8xf32>
    %51 = tpu.matmul %49, %50, %cst_15 {dimension_numbers = #tpu.dot_dimension_numbers<[1], [0], [0], [1], [0, 0, 1, 1], [], []>} : vector<8x8xbf16>, vector<8x8xbf16>, vector<8x8xf32> -> vector<8x8xf32>
    %52 = vector.extract_strided_slice %7 {offsets = [0, 16], sizes = [8, 8], strides = [1, 1]} : vector<8x96xf32> to vector<8x8xf32>
    %cst_16 = arith.constant 0.353553385 : f32
    %53 = vector.broadcast %cst_16 : f32 to vector<8x8xf32>
    %54 = arith.mulf %52, %53 : vector<8x8xf32>
    %55 = vector.extract_strided_slice %7 {offsets = [0, 48], sizes = [8, 8], strides = [1, 1]} : vector<8x96xf32> to vector<8x8xf32>
    %56 = vector.extract_strided_slice %7 {offsets = [0, 80], sizes = [8, 8], strides = [1, 1]} : vector<8x96xf32> to vector<8x8xf32>
    %57 = arith.truncf %54 : vector<8x8xf32> to vector<8x8xbf16>
    %58 = arith.truncf %55 : vector<8x8xf32> to vector<8x8xbf16>
    %59 = tpu.transpose %58, [1, 0] : vector<8x8xbf16> -> vector<8x8xbf16>
    %cst_17 = arith.constant dense<0.000000e+00> : vector<8x8xf32>
    %60 = tpu.matmul %57, %59, %cst_17 {dimension_numbers = #tpu.dot_dimension_numbers<[1], [0], [0], [1], [0, 0, 1, 1], [], []>} : vector<8x8xbf16>, vector<8x8xbf16>, vector<8x8xf32> -> vector<8x8xf32>
    %cst_18 = arith.constant dense<0xFF800000> : vector<8xf32>
    %61 = vector.multi_reduction <maximumf>, %60, %cst_18 [1] : vector<8x8xf32> to vector<8xf32>
    %62 = vector.shape_cast %61 : vector<8xf32> to vector<8x1xf32>
    %63 = vector.broadcast %62 : vector<8x1xf32> to vector<8x8xf32>
    %64 = arith.subf %60, %63 : vector<8x8xf32>
    %65 = math.exp %64 : vector<8x8xf32>
    %cst_19 = arith.constant dense<0.000000e+00> : vector<8xf32>
    %66 = vector.multi_reduction <add>, %65, %cst_19 [1] : vector<8x8xf32> to vector<8xf32>
    %67 = vector.shape_cast %66 : vector<8xf32> to vector<8x1xf32>
    %68 = tpu.reciprocal %67 {approx = true} : vector<8x1xf32> -> vector<8x1xf32>
    %69 = vector.broadcast %68 : vector<8x1xf32> to vector<8x8xf32>
    %70 = arith.mulf %65, %69 : vector<8x8xf32>
    %71 = arith.truncf %70 : vector<8x8xf32> to vector<8x8xbf16>
    %72 = arith.truncf %56 : vector<8x8xf32> to vector<8x8xbf16>
    %cst_20 = arith.constant dense<0.000000e+00> : vector<8x8xf32>
    %73 = tpu.matmul %71, %72, %cst_20 {dimension_numbers = #tpu.dot_dimension_numbers<[1], [0], [0], [1], [0, 0, 1, 1], [], []>} : vector<8x8xbf16>, vector<8x8xbf16>, vector<8x8xf32> -> vector<8x8xf32>
    %74 = vector.extract_strided_slice %7 {offsets = [0, 24], sizes = [8, 8], strides = [1, 1]} : vector<8x96xf32> to vector<8x8xf32>
    %cst_21 = arith.constant 0.353553385 : f32
    %75 = vector.broadcast %cst_21 : f32 to vector<8x8xf32>
    %76 = arith.mulf %74, %75 : vector<8x8xf32>
    %77 = vector.extract_strided_slice %7 {offsets = [0, 56], sizes = [8, 8], strides = [1, 1]} : vector<8x96xf32> to vector<8x8xf32>
    %78 = vector.extract_strided_slice %7 {offsets = [0, 88], sizes = [8, 8], strides = [1, 1]} : vector<8x96xf32> to vector<8x8xf32>
    %79 = arith.truncf %76 : vector<8x8xf32> to vector<8x8xbf16>
    %80 = arith.truncf %77 : vector<8x8xf32> to vector<8x8xbf16>
    %81 = tpu.transpose %80, [1, 0] : vector<8x8xbf16> -> vector<8x8xbf16>
    %cst_22 = arith.constant dense<0.000000e+00> : vector<8x8xf32>
    %82 = tpu.matmul %79, %81, %cst_22 {dimension_numbers = #tpu.dot_dimension_numbers<[1], [0], [0], [1], [0, 0, 1, 1], [], []>} : vector<8x8xbf16>, vector<8x8xbf16>, vector<8x8xf32> -> vector<8x8xf32>
    %cst_23 = arith.constant dense<0xFF800000> : vector<8xf32>
    %83 = vector.multi_reduction <maximumf>, %82, %cst_23 [1] : vector<8x8xf32> to vector<8xf32>
    %84 = vector.shape_cast %83 : vector<8xf32> to vector<8x1xf32>
    %85 = vector.broadcast %84 : vector<8x1xf32> to vector<8x8xf32>
    %86 = arith.subf %82, %85 : vector<8x8xf32>
    %87 = math.exp %86 : vector<8x8xf32>
    %cst_24 = arith.constant dense<0.000000e+00> : vector<8xf32>
    %88 = vector.multi_reduction <add>, %87, %cst_24 [1] : vector<8x8xf32> to vector<8xf32>
    %89 = vector.shape_cast %88 : vector<8xf32> to vector<8x1xf32>
    %90 = tpu.reciprocal %89 {approx = true} : vector<8x1xf32> -> vector<8x1xf32>
    %91 = vector.broadcast %90 : vector<8x1xf32> to vector<8x8xf32>
    %92 = arith.mulf %87, %91 : vector<8x8xf32>
    %93 = arith.truncf %92 : vector<8x8xf32> to vector<8x8xbf16>
    %94 = arith.truncf %78 : vector<8x8xf32> to vector<8x8xbf16>
    %cst_25 = arith.constant dense<0.000000e+00> : vector<8x8xf32>
    %95 = tpu.matmul %93, %94, %cst_25 {dimension_numbers = #tpu.dot_dimension_numbers<[1], [0], [0], [1], [0, 0, 1, 1], [], []>} : vector<8x8xbf16>, vector<8x8xbf16>, vector<8x8xf32> -> vector<8x8xf32>
    %96 = tpu.concatenate %29, %51, %73, %95 in 1 : vector<8x8xf32>, vector<8x8xf32>, vector<8x8xf32>, vector<8x8xf32> -> vector<8x32xf32>
    %97 = arith.truncf %96 : vector<8x32xf32> to vector<8x32xbf16>
    %c0_26 = arith.constant 0 : index
    %c0_27 = arith.constant 0 : index
    %98 = vector.load %arg4[%c0_26, %c0_27] : memref<32x32xbf16, #tpu.memory_space<vmem>>, vector<32x32xbf16>
    %cst_28 = arith.constant dense<0.000000e+00> : vector<8x32xf32>
    %99 = tpu.matmul %97, %98, %cst_28 {dimension_numbers = #tpu.dot_dimension_numbers<[1], [0], [0], [1], [0, 0, 1, 1], [], []>} : vector<8x32xbf16>, vector<32x32xbf16>, vector<8x32xf32> -> vector<8x32xf32>
    %c0_29 = arith.constant 0 : index
    %c0_30 = arith.constant 0 : index
    %100 = vector.load %arg5[%c0_29, %c0_30] : memref<1x32xf32, #tpu.memory_space<vmem>>, vector<1x32xf32>
    %101 = vector.broadcast %100 : vector<1x32xf32> to vector<8x32xf32>
    %102 = arith.addf %99, %101 : vector<8x32xf32>
    %103 = arith.addf %1, %102 : vector<8x32xf32>
    %c0_31 = arith.constant 0 : index
    %c0_32 = arith.constant 0 : index
    %104 = vector.load %arg6[%c0_31, %c0_32] : memref<1x32xf32, #tpu.memory_space<vmem>>, vector<1x32xf32>
    %c0_33 = arith.constant 0 : index
    %c0_34 = arith.constant 0 : index
    %105 = vector.load %arg7[%c0_33, %c0_34] : memref<1x32xf32, #tpu.memory_space<vmem>>, vector<1x32xf32>
    %cst_35 = arith.constant dense<0.000000e+00> : vector<8xf32>
    %106 = vector.multi_reduction <add>, %103, %cst_35 [1] : vector<8x32xf32> to vector<8xf32>
    %107 = vector.shape_cast %106 : vector<8xf32> to vector<8x1xf32>
    %cst_36 = arith.constant 3.200000e+01 : f32
    %108 = vector.broadcast %cst_36 : f32 to vector<8x1xf32>
    %109 = arith.divf %107, %108 : vector<8x1xf32>
    %110 = vector.broadcast %109 : vector<8x1xf32> to vector<8x32xf32>
    %111 = arith.subf %103, %110 : vector<8x32xf32>
    %112 = arith.mulf %111, %111 : vector<8x32xf32>
    %cst_37 = arith.constant dense<0.000000e+00> : vector<8xf32>
    %113 = vector.multi_reduction <add>, %112, %cst_37 [1] : vector<8x32xf32> to vector<8xf32>
    %114 = vector.shape_cast %113 : vector<8xf32> to vector<8x1xf32>
    %cst_38 = arith.constant 3.200000e+01 : f32
    %115 = vector.broadcast %cst_38 : f32 to vector<8x1xf32>
    %116 = arith.divf %114, %115 : vector<8x1xf32>
    %cst_39 = arith.constant 9.99999974E-6 : f32
    %117 = vector.broadcast %cst_39 : f32 to vector<8x1xf32>
    %118 = arith.addf %116, %117 : vector<8x1xf32>
    %119 = math.rsqrt %118 : vector<8x1xf32>
    %120 = vector.broadcast %119 : vector<8x1xf32> to vector<8x32xf32>
    %121 = arith.mulf %111, %120 : vector<8x32xf32>
    %122 = vector.broadcast %104 : vector<1x32xf32> to vector<8x32xf32>
    %123 = arith.mulf %121, %122 : vector<8x32xf32>
    %124 = vector.broadcast %105 : vector<1x32xf32> to vector<8x32xf32>
    %125 = arith.addf %123, %124 : vector<8x32xf32>
    %c0_40 = arith.constant 0 : index
    %c0_41 = arith.constant 0 : index
    %c0_42 = arith.constant 0 : index
    %126 = vector.load %arg8[%c0_40, %c0_41, %c0_42] : memref<1x8x32xf32, #tpu.memory_space<vmem>>, vector<1x8x32xf32>
    %127 = vector.shape_cast %126 : vector<1x8x32xf32> to vector<8x32xf32>
    %128 = vector.shape_cast %125 : vector<8x32xf32> to vector<1x8x32xf32>
    tpu.vector_store %arg8[%c0_40, %c0_41, %c0_42], %128 {strides = array<i32>} : memref<1x8x32xf32, #tpu.memory_space<vmem>>, vector<1x8x32xf32>,
    return
  }
  func.func @transform_0(%arg0: i32) -> (i32, i32, i32) {
    %c0_i32 = arith.constant 0 : i32
    %c0_i32_0 = arith.constant 0 : i32
    %c0_i32_1 = arith.constant 0 : i32
    return %arg0, %c0_i32, %c0_i32_0 : i32, i32, i32
  }
  func.func @transform_1(%arg0: i32) -> (i32, i32) {
    %c0_i32 = arith.constant 0 : i32
    %c0_i32_0 = arith.constant 0 : i32
    %c0_i32_1 = arith.constant 0 : i32
    return %c0_i32, %c0_i32_0 : i32, i32
  }
  func.func @transform_2(%arg0: i32) -> (i32, i32) {
    %c0_i32 = arith.constant 0 : i32
    %c0_i32_0 = arith.constant 0 : i32
    %c0_i32_1 = arith.constant 0 : i32
    return %c0_i32, %c0_i32_0 : i32, i32
  }
  func.func @transform_3(%arg0: i32) -> (i32, i32) {
    %c0_i32 = arith.constant 0 : i32
    %c0_i32_0 = arith.constant 0 : i32
    %c0_i32_1 = arith.constant 0 : i32
    return %c0_i32, %c0_i32_0 : i32, i32
  }
  func.func @transform_4(%arg0: i32) -> (i32, i32) {
    %c0_i32 = arith.constant 0 : i32
    %c0_i32_0 = arith.constant 0 : i32
    %c0_i32_1 = arith.constant 0 : i32
    return %c0_i32, %c0_i32_0 : i32, i32
  }
  func.func @transform_5(%arg0: i32) -> (i32, i32) {
    %c0_i32 = arith.constant 0 : i32
    %c0_i32_0 = arith.constant 0 : i32
    %c0_i32_1 = arith.constant 0 : i32
    return %c0_i32, %c0_i32_0 : i32, i32
  }
  func.func @transform_6(%arg0: i32) -> (i32, i32) {
    %c0_i32 = arith.constant 0 : i32
    %c0_i32_0 = arith.constant 0 : i32
    %c0_i32_1 = arith.constant 0 : i32
    return %c0_i32, %c0_i32_0 : i32, i32
  }
  func.func @transform_7(%arg0: i32) -> (i32, i32, i32) {
    %c0_i32 = arith.constant 0 : i32
    %c0_i32_0 = arith.constant 0 : i32
    %c0_i32_1 = arith.constant 0 : i32
    return %arg0, %c0_i32, %c0_i32_0 : i32, i32, i32
  }
}

module attributes {stable_mosaic.version = 11 : i64} {
  func.func @_ffn_norm_kernel(%arg0: i32, %arg1: memref<16x32xf32, #tpu.memory_space<vmem>>, %arg2: memref<32x64xbf16, #tpu.memory_space<vmem>>, %arg3: memref<1x64xf32, #tpu.memory_space<vmem>>, %arg4: memref<64x32xbf16, #tpu.memory_space<vmem>>, %arg5: memref<1x32xf32, #tpu.memory_space<vmem>>, %arg6: memref<1x32xf32, #tpu.memory_space<vmem>>, %arg7: memref<1x32xf32, #tpu.memory_space<vmem>>, %arg8: memref<16x32xf32, #tpu.memory_space<vmem>>) attributes {dimension_semantics = [#tpu.dimension_semantics<parallel>], iteration_bounds = array<i64: 1>, scalar_prefetch = 0 : i64, scratch_operands = 0 : i64, tpu.core_type = #tpu.core_type<tc>, window_params = [{transform_indices = @transform_0, window_bounds = array<i64: 16, 32>}, {pipeline_mode = #tpu.pipeline_mode<synchronous>, transform_indices = @transform_1, window_bounds = array<i64: 32, 64>}, {pipeline_mode = #tpu.pipeline_mode<synchronous>, transform_indices = @transform_2, window_bounds = array<i64: 1, 64>}, {pipeline_mode = #tpu.pipeline_mode<synchronous>, transform_indices = @transform_3, window_bounds = array<i64: 64, 32>}, {pipeline_mode = #tpu.pipeline_mode<synchronous>, transform_indices = @transform_4, window_bounds = array<i64: 1, 32>}, {pipeline_mode = #tpu.pipeline_mode<synchronous>, transform_indices = @transform_5, window_bounds = array<i64: 1, 32>}, {pipeline_mode = #tpu.pipeline_mode<synchronous>, transform_indices = @transform_6, window_bounds = array<i64: 1, 32>}, {transform_indices = @transform_7, window_bounds = array<i64: 16, 32>}]} {
    %c0 = arith.constant 0 : index
    %c0_0 = arith.constant 0 : index
    %0 = vector.load %arg1[%c0, %c0_0] : memref<16x32xf32, #tpu.memory_space<vmem>>, vector<16x32xf32>
    %1 = arith.truncf %0 : vector<16x32xf32> to vector<16x32xbf16>
    %c0_1 = arith.constant 0 : index
    %c0_2 = arith.constant 0 : index
    %2 = vector.load %arg2[%c0_1, %c0_2] : memref<32x64xbf16, #tpu.memory_space<vmem>>, vector<32x64xbf16>
    %cst = arith.constant dense<0.000000e+00> : vector<16x64xf32>
    %3 = tpu.matmul %1, %2, %cst {dimension_numbers = #tpu.dot_dimension_numbers<[1], [0], [0], [1], [0, 0, 1, 1], [], []>} : vector<16x32xbf16>, vector<32x64xbf16>, vector<16x64xf32> -> vector<16x64xf32>
    %c0_3 = arith.constant 0 : index
    %c0_4 = arith.constant 0 : index
    %4 = vector.load %arg3[%c0_3, %c0_4] : memref<1x64xf32, #tpu.memory_space<vmem>>, vector<1x64xf32>
    %5 = vector.broadcast %4 : vector<1x64xf32> to vector<16x64xf32>
    %6 = arith.addf %3, %5 : vector<16x64xf32>
    %cst_5 = arith.constant 0.000000e+00 : f32
    %7 = vector.broadcast %cst_5 : f32 to vector<16x64xf32>
    %8 = arith.maximumf %6, %7 : vector<16x64xf32>
    %9 = arith.truncf %8 : vector<16x64xf32> to vector<16x64xbf16>
    %c0_6 = arith.constant 0 : index
    %c0_7 = arith.constant 0 : index
    %10 = vector.load %arg4[%c0_6, %c0_7] : memref<64x32xbf16, #tpu.memory_space<vmem>>, vector<64x32xbf16>
    %cst_8 = arith.constant dense<0.000000e+00> : vector<16x32xf32>
    %11 = tpu.matmul %9, %10, %cst_8 {dimension_numbers = #tpu.dot_dimension_numbers<[1], [0], [0], [1], [0, 0, 1, 1], [], []>} : vector<16x64xbf16>, vector<64x32xbf16>, vector<16x32xf32> -> vector<16x32xf32>
    %c0_9 = arith.constant 0 : index
    %c0_10 = arith.constant 0 : index
    %12 = vector.load %arg5[%c0_9, %c0_10] : memref<1x32xf32, #tpu.memory_space<vmem>>, vector<1x32xf32>
    %13 = vector.broadcast %12 : vector<1x32xf32> to vector<16x32xf32>
    %14 = arith.addf %11, %13 : vector<16x32xf32>
    %15 = arith.addf %0, %14 : vector<16x32xf32>
    %c0_11 = arith.constant 0 : index
    %c0_12 = arith.constant 0 : index
    %16 = vector.load %arg6[%c0_11, %c0_12] : memref<1x32xf32, #tpu.memory_space<vmem>>, vector<1x32xf32>
    %c0_13 = arith.constant 0 : index
    %c0_14 = arith.constant 0 : index
    %17 = vector.load %arg7[%c0_13, %c0_14] : memref<1x32xf32, #tpu.memory_space<vmem>>, vector<1x32xf32>
    %cst_15 = arith.constant dense<0.000000e+00> : vector<16xf32>
    %18 = vector.multi_reduction <add>, %15, %cst_15 [1] : vector<16x32xf32> to vector<16xf32>
    %19 = vector.shape_cast %18 : vector<16xf32> to vector<16x1xf32>
    %cst_16 = arith.constant 3.200000e+01 : f32
    %20 = vector.broadcast %cst_16 : f32 to vector<16x1xf32>
    %21 = arith.divf %19, %20 : vector<16x1xf32>
    %22 = vector.broadcast %21 : vector<16x1xf32> to vector<16x32xf32>
    %23 = arith.subf %15, %22 : vector<16x32xf32>
    %24 = arith.mulf %23, %23 : vector<16x32xf32>
    %cst_17 = arith.constant dense<0.000000e+00> : vector<16xf32>
    %25 = vector.multi_reduction <add>, %24, %cst_17 [1] : vector<16x32xf32> to vector<16xf32>
    %26 = vector.shape_cast %25 : vector<16xf32> to vector<16x1xf32>
    %cst_18 = arith.constant 3.200000e+01 : f32
    %27 = vector.broadcast %cst_18 : f32 to vector<16x1xf32>
    %28 = arith.divf %26, %27 : vector<16x1xf32>
    %cst_19 = arith.constant 9.99999974E-6 : f32
    %29 = vector.broadcast %cst_19 : f32 to vector<16x1xf32>
    %30 = arith.addf %28, %29 : vector<16x1xf32>
    %31 = math.rsqrt %30 : vector<16x1xf32>
    %32 = vector.broadcast %31 : vector<16x1xf32> to vector<16x32xf32>
    %33 = arith.mulf %23, %32 : vector<16x32xf32>
    %34 = vector.broadcast %16 : vector<1x32xf32> to vector<16x32xf32>
    %35 = arith.mulf %33, %34 : vector<16x32xf32>
    %36 = vector.broadcast %17 : vector<1x32xf32> to vector<16x32xf32>
    %37 = arith.addf %35, %36 : vector<16x32xf32>
    %c0_20 = arith.constant 0 : index
    %c0_21 = arith.constant 0 : index
    %38 = vector.load %arg8[%c0_20, %c0_21] : memref<16x32xf32, #tpu.memory_space<vmem>>, vector<16x32xf32>
    tpu.vector_store %arg8[%c0_20, %c0_21], %37 {strides = array<i32>} : memref<16x32xf32, #tpu.memory_space<vmem>>, vector<16x32xf32>,
    return
  }
  func.func @transform_0(%arg0: i32) -> (i32, i32) {
    %c0_i32 = arith.constant 0 : i32
    %c0_i32_0 = arith.constant 0 : i32
    return %arg0, %c0_i32 : i32, i32
  }
  func.func @transform_1(%arg0: i32) -> (i32, i32) {
    %c0_i32 = arith.constant 0 : i32
    %c0_i32_0 = arith.constant 0 : i32
    %c0_i32_1 = arith.constant 0 : i32
    return %c0_i32, %c0_i32_0 : i32, i32
  }
  func.func @transform_2(%arg0: i32) -> (i32, i32) {
    %c0_i32 = arith.constant 0 : i32
    %c0_i32_0 = arith.constant 0 : i32
    %c0_i32_1 = arith.constant 0 : i32
    return %c0_i32, %c0_i32_0 : i32, i32
  }
  func.func @transform_3(%arg0: i32) -> (i32, i32) {
    %c0_i32 = arith.constant 0 : i32
    %c0_i32_0 = arith.constant 0 : i32
    %c0_i32_1 = arith.constant 0 : i32
    return %c0_i32, %c0_i32_0 : i32, i32
  }
  func.func @transform_4(%arg0: i32) -> (i32, i32) {
    %c0_i32 = arith.constant 0 : i32
    %c0_i32_0 = arith.constant 0 : i32
    %c0_i32_1 = arith.constant 0 : i32
    return %c0_i32, %c0_i32_0 : i32, i32
  }
  func.func @transform_5(%arg0: i32) -> (i32, i32) {
    %c0_i32 = arith.constant 0 : i32
    %c0_i32_0 = arith.constant 0 : i32
    %c0_i32_1 = arith.constant 0 : i32
    return %c0_i32, %c0_i32_0 : i32, i32
  }
  func.func @transform_6(%arg0: i32) -> (i32, i32) {
    %c0_i32 = arith.constant 0 : i32
    %c0_i32_0 = arith.constant 0 : i32
    %c0_i32_1 = arith.constant 0 : i32
    return %c0_i32, %c0_i32_0 : i32, i32
  }
  func.func @transform_7(%arg0: i32) -> (i32, i32) {
    %c0_i32 = arith.constant 0 : i32
    %c0_i32_0 = arith.constant 0 : i32
    return %arg0, %c0_i32 : i32, i32
  }
}

module attributes {stable_mosaic.version = 11 : i64} {
  func.func @_linear_kernel(%arg0: i32, %arg1: memref<16x32xf32, #tpu.memory_space<vmem>>, %arg2: memref<32x3xbf16, #tpu.memory_space<vmem>>, %arg3: memref<1x3xf32, #tpu.memory_space<vmem>>, %arg4: memref<16x3xf32, #tpu.memory_space<vmem>>) attributes {dimension_semantics = [#tpu.dimension_semantics<parallel>], iteration_bounds = array<i64: 1>, scalar_prefetch = 0 : i64, scratch_operands = 0 : i64, tpu.core_type = #tpu.core_type<tc>, window_params = [{transform_indices = @transform_0, window_bounds = array<i64: 16, 32>}, {pipeline_mode = #tpu.pipeline_mode<synchronous>, transform_indices = @transform_1, window_bounds = array<i64: 32, 3>}, {pipeline_mode = #tpu.pipeline_mode<synchronous>, transform_indices = @transform_2, window_bounds = array<i64: 1, 3>}, {transform_indices = @transform_3, window_bounds = array<i64: 16, 3>}]} {
    %c0 = arith.constant 0 : index
    %c0_0 = arith.constant 0 : index
    %0 = vector.load %arg1[%c0, %c0_0] : memref<16x32xf32, #tpu.memory_space<vmem>>, vector<16x32xf32>
    %1 = arith.truncf %0 : vector<16x32xf32> to vector<16x32xbf16>
    %c0_1 = arith.constant 0 : index
    %c0_2 = arith.constant 0 : index
    %2 = vector.load %arg2[%c0_1, %c0_2] : memref<32x3xbf16, #tpu.memory_space<vmem>>, vector<32x3xbf16>
    %cst = arith.constant dense<0.000000e+00> : vector<16x3xf32>
    %3 = tpu.matmul %1, %2, %cst {dimension_numbers = #tpu.dot_dimension_numbers<[1], [0], [0], [1], [0, 0, 1, 1], [], []>} : vector<16x32xbf16>, vector<32x3xbf16>, vector<16x3xf32> -> vector<16x3xf32>
    %c0_3 = arith.constant 0 : index
    %c0_4 = arith.constant 0 : index
    %4 = vector.load %arg3[%c0_3, %c0_4] : memref<1x3xf32, #tpu.memory_space<vmem>>, vector<1x3xf32>
    %5 = vector.broadcast %4 : vector<1x3xf32> to vector<16x3xf32>
    %6 = arith.addf %3, %5 : vector<16x3xf32>
    %c0_5 = arith.constant 0 : index
    %c0_6 = arith.constant 0 : index
    %7 = vector.load %arg4[%c0_5, %c0_6] : memref<16x3xf32, #tpu.memory_space<vmem>>, vector<16x3xf32>
    tpu.vector_store %arg4[%c0_5, %c0_6], %6 {strides = array<i32>} : memref<16x3xf32, #tpu.memory_space<vmem>>, vector<16x3xf32>,
    return
  }
  func.func @transform_0(%arg0: i32) -> (i32, i32) {
    %c0_i32 = arith.constant 0 : i32
    %c0_i32_0 = arith.constant 0 : i32
    return %arg0, %c0_i32 : i32, i32
  }
  func.func @transform_1(%arg0: i32) -> (i32, i32) {
    %c0_i32 = arith.constant 0 : i32
    %c0_i32_0 = arith.constant 0 : i32
    %c0_i32_1 = arith.constant 0 : i32
    return %c0_i32, %c0_i32_0 : i32, i32
  }
  func.func @transform_2(%arg0: i32) -> (i32, i32) {
    %c0_i32 = arith.constant 0 : i32
    %c0_i32_0 = arith.constant 0 : i32
    %c0_i32_1 = arith.constant 0 : i32
    return %c0_i32, %c0_i32_0 : i32, i32
  }
  func.func @transform_3(%arg0: i32) -> (i32, i32) {
    %c0_i32 = arith.constant 0 : i32
    %c0_i32_0 = arith.constant 0 : i32
    return %arg0, %c0_i32 : i32, i32
  }
}

</mosaic_0001>

<llo_original>
// kernel: transformer_model_forward.8
$region0: #{transformer_model_forward.8}
  #allocation0 [shape = 'u32[]', space=smem, size = 0x4, offset = 0x4, fixed_abs, tag = 'smem constant byte address 0x4 - core index']
  #allocation1 [shape = 'u32[72,128]{1,0:T(1,128)}', space=vmem, size = 0x9000, scoped, tag = 'internal scratch']
  %s0 = inlined_call_operand.vmem [shape: f32[16,32], index: 0, kind: input, shape index: {}]
  %s1 = inlined_call_operand.vmem [shape: bf16[32,64], index: 1, kind: input, shape index: {}]
  %s2 = inlined_call_operand.hbm [shape: f32[1,64], index: 2, kind: input, shape index: {}]
  %s3 = inlined_call_operand.vmem [shape: bf16[64,32], index: 3, kind: input, shape index: {}]
  %s4 = inlined_call_operand.hbm [shape: f32[1,32], index: 4, kind: input, shape index: {}]
  %s5 = inlined_call_operand.hbm [shape: f32[1,32], index: 5, kind: input, shape index: {}]
  %s6 = inlined_call_operand.hbm [shape: f32[1,32], index: 6, kind: input, shape index: {}]
  %s7 = inlined_call_operand.vmem [shape: f32[16,32], index: 7, kind: output, shape index: {}]
  %s8 = sld [smem:[#allocation0]]
  $region54: #{transformer_model_forward.8} parent=0
    _
  %s10 = ssub.s32 1, %s8
  %s11 = scalar_select 0, %s10, %s8
  $region1: #{transformer_model_forward.8} parent=0
    #allocation2 [shape = 'u8[512]{0}', space=vmem, size = 0x400, scoped, tag = 'input window, operand 2, single buffered']
    #allocation3 [shape = 's32[1]{0}', space=sflag, size = 0x4, scoped, tag = 'scoped memory for transformer_model_forward.8']
    #allocation4 [shape = 'u8[512]{0}', space=vmem, size = 0x400, scoped, tag = 'input window, operand 4, single buffered']
    #allocation5 [shape = 's32[1]{0}', space=sflag, size = 0x4, scoped, tag = 'scoped memory for transformer_model_forward.8']
    #allocation6 [shape = 'u8[512]{0}', space=vmem, size = 0x400, scoped, tag = 'input window, operand 5, single buffered']
    #allocation7 [shape = 'u8[512]{0}', space=vmem, size = 0x400, scoped, tag = 'input window, operand 6, single buffered']
    #allocation8 [shape = 's32[1]{0}', space=sflag, size = 0x4, scoped, tag = 'scoped memory for transformer_model_forward.8']
    %12 = vsyncpa [#allocation3], 0
    %13 = vsyncpa [#allocation5], 0
    %14 = vsyncpa [#allocation8], 0
    // Predicated region
    $region2: #{transformer_model_forward.8} parent=1 // pred_check
      _
    $region3: #{transformer_model_forward.8} parent=1 // pred_check_branch
      %16 = sbr.rel (0) target = $region5
    $region4: #{transformer_model_forward.8} parent=1 // pred_region
      _
    $region5: #{transformer_model_forward.8} parent=1 // pred_fallthru
      _
    // Predicated region
    $region6: #{transformer_model_forward.8} parent=1 // pred_check
      _
    $region7: #{transformer_model_forward.8} parent=1 // pred_check_branch
      %18 = sbr.rel (0) target = $region9
    $region8: #{transformer_model_forward.8} parent=1 // pred_region
      _
    $region9: #{transformer_model_forward.8} parent=1 // pred_fallthru
      _
    // Predicated region
    $region10: #{transformer_model_forward.8} parent=1 // pred_check
      _
    $region11: #{transformer_model_forward.8} parent=1 // pred_check_branch
      %20 = sbr.rel (0) target = $region13
    $region12: #{transformer_model_forward.8} parent=1 // pred_region
      %22 = vsyncadd [#allocation3], 0
      %s24 = sshll.u32 %s2, 4
      %s25 = int_to_ptr.hbm [resolvable:$true] %s24
      %s26 = sshll.u32 [#allocation2], 4
      %s27 = int_to_ptr.vmem [resolvable:$true] %s26
      %29 = dma.hbm_to_vmem [thread:$0]  %s25, 16, %s27, [#allocation3]
    $region13: #{transformer_model_forward.8} parent=1 // pred_fallthru
      _
    // Predicated region
    $region14: #{transformer_model_forward.8} parent=1 // pred_check
      _
    $region15: #{transformer_model_forward.8} parent=1 // pred_check_branch
      %31 = sbr.rel (0) target = $region17
    $region16: #{transformer_model_forward.8} parent=1 // pred_region
      _
    $region17: #{transformer_model_forward.8} parent=1 // pred_fallthru
      _
    // Predicated region
    $region18: #{transformer_model_forward.8} parent=1 // pred_check
      _
    $region19: #{transformer_model_forward.8} parent=1 // pred_check_branch
      %33 = sbr.rel (0) target = $region21
    $region20: #{transformer_model_forward.8} parent=1 // pred_region
      %35 = vsyncadd [#allocation5], 0
      %s37 = sshll.u32 %s4, 4
      %s38 = int_to_ptr.hbm [resolvable:$true] %s37
      %s39 = sshll.u32 [#allocation4], 4
      %s40 = int_to_ptr.vmem [resolvable:$true] %s39
      %42 = dma.hbm_to_vmem [thread:$0]  %s38, 16, %s40, [#allocation5]
    $region21: #{transformer_model_forward.8} parent=1 // pred_fallthru
      _
    // Predicated region
    $region22: #{transformer_model_forward.8} parent=1 // pred_check
      _
    $region23: #{transformer_model_forward.8} parent=1 // pred_check_branch
      %44 = sbr.rel (0) target = $region25
    $region24: #{transformer_model_forward.8} parent=1 // pred_region
      %46 = vsyncadd [#allocation5], 0
      %s48 = sshll.u32 %s5, 4
      %s49 = int_to_ptr.hbm [resolvable:$true] %s48
      %s50 = sshll.u32 [#allocation6], 4
      %s51 = int_to_ptr.vmem [resolvable:$true] %s50
      %53 = dma.hbm_to_vmem [thread:$0]  %s49, 16, %s51, [#allocation5]
    $region25: #{transformer_model_forward.8} parent=1 // pred_fallthru
      _
    // Predicated region
    $region26: #{transformer_model_forward.8} parent=1 // pred_check
      _
    $region27: #{transformer_model_forward.8} parent=1 // pred_check_branch
      %55 = sbr.rel (0) target = $region29
    $region28: #{transformer_model_forward.8} parent=1 // pred_region
      %57 = vsyncadd [#allocation8], 0
      %s59 = sshll.u32 %s6, 4
      %s60 = int_to_ptr.hbm [resolvable:$true] %s59
      %s61 = sshll.u32 [#allocation7], 4
      %s62 = int_to_ptr.vmem [resolvable:$true] %s61
      %64 = dma.hbm_to_vmem [thread:$0]  %s60, 16, %s62, [#allocation8]
    $region29: #{transformer_model_forward.8} parent=1 // pred_fallthru
      _
    // Predicated region
    $region30: #{transformer_model_forward.8} parent=1 // pred_check
      _
    $region31: #{transformer_model_forward.8} parent=1 // pred_check_branch
      %66 = sbr.rel (0) target = $region33
    $region32: #{transformer_model_forward.8} parent=1 // pred_region
      %68 = dma.done [#allocation3], 16
    $region33: #{transformer_model_forward.8} parent=1 // pred_fallthru
      _
    // Predicated region
    $region34: #{transformer_model_forward.8} parent=1 // pred_check
      _
    $region35: #{transformer_model_forward.8} parent=1 // pred_check_branch
      %70 = sbr.rel (0) target = $region37
    $region36: #{transformer_model_forward.8} parent=1 // pred_region
      %72 = dma.done [#allocation5], 16
    $region37: #{transformer_model_forward.8} parent=1 // pred_fallthru
      _
    // Predicated region
    $region38: #{transformer_model_forward.8} parent=1 // pred_check
      _
    $region39: #{transformer_model_forward.8} parent=1 // pred_check_branch
      %74 = sbr.rel (0) target = $region41
    $region40: #{transformer_model_forward.8} parent=1 // pred_region
      %76 = dma.done [#allocation5], 16
    $region41: #{transformer_model_forward.8} parent=1 // pred_fallthru
      _
    // Predicated region
    $region42: #{transformer_model_forward.8} parent=1 // pred_check
      _
    $region43: #{transformer_model_forward.8} parent=1 // pred_check_branch
      %78 = sbr.rel (0) target = $region45
    $region44: #{transformer_model_forward.8} parent=1 // pred_region
      %80 = dma.done [#allocation8], 16
    $region45: #{transformer_model_forward.8} parent=1 // pred_fallthru
      _
    %v82 = vld [vmem:[%s0] sm:$0xff]
    %v83 = vld [vmem:[%s0 + $0x8] sm:$0xff]
    %v84 = vpack.c.bf16 %v83, %v82
    %v85 = vld [vmem:[%s1] sm:$0xf]
    %v86 = vld [vmem:[%s1 + $0x4] sm:$0xf]
    %v87 = vld [vmem:[%s1 + $0x8] sm:$0xf]
    %v88 = vld [vmem:[%s1 + $0xc] sm:$0xf]
    %v89 = vld [vmem:[#allocation2] sm:$0x1]
    %v91 = vperm.slane %v89, 0
    %v97 = vunpack.c.l.b16 %v85
    %v98 = vunpack.c.l.b16 %v86
    %v99 = vunpack.c.l.b16 %v87
    %v100 = vunpack.c.l.b16 %v88
    %v101 = vpack.c.b16 %v98, %v97
    %v102 = vpack.c.b16 %v100, %v99
    %vm105 = vcmask 261120
    %v107 = vsel %vm105, %v84, 0
    %109 = vmatpush.bf16.msra.mxu0 0
    %110 = vmatpush.bf16.msra.mxu0 0
    %111 = vmatpush.bf16.msra.mxu0 0
    %112 = vmatpush.bf16.msra.mxu0 0
    %113 = vmatpush.bf16.msra.mxu0 0
    %114 = vmatpush.bf16.msra.mxu0 0
    %115 = vmatpush.bf16.msra.mxu0 %v102
    %116 = vmatpush.bf16.msra.mxu0 %v101
    %117 = vmatmul.bf16.gmra.mxu0 %v107
    %v118 = vpop.f32.mrf.mxu0
    %v119 = vadd.f32 %v91, %v118
    %v120 = vpop.f32.mrf.mxu0
    %v121 = vadd.f32 %v91, %v120
    %122 = vdwg.mxu0
    %v123 = vmax.f32 %v119, 0.0
    %v124 = vmax.f32 %v121, 0.0
    %v125 = vpack.c.bf16 %v124, %v123
    %v126 = vld [vmem:[%s3] sm:$0xf]
    %v127 = vld [vmem:[%s3 + $0x4] sm:$0xf]
    %v128 = vld [vmem:[%s3 + $0x8] sm:$0xf]
    %v129 = vld [vmem:[%s3 + $0xc] sm:$0xf]
    %v130 = vld [vmem:[%s3 + $0x10] sm:$0xf]
    %v131 = vld [vmem:[%s3 + $0x14] sm:$0xf]
    %v132 = vld [vmem:[%s3 + $0x18] sm:$0xf]
    %v133 = vld [vmem:[%s3 + $0x1c] sm:$0xf]
    %v134 = vld [vmem:[#allocation4] sm:$0x1]
    %v136 = vperm.slane %v134, 0
    %v146 = vunpack.c.l.b16 %v126
    %v147 = vunpack.c.l.b16 %v127
    %v148 = vunpack.c.l.b16 %v128
    %v149 = vunpack.c.l.b16 %v129
    %v150 = vunpack.c.l.b16 %v130
    %v151 = vunpack.c.l.b16 %v131
    %v152 = vunpack.c.l.b16 %v132
    %v153 = vunpack.c.l.b16 %v133
    %v154 = vpack.c.b16 %v147, %v146
    %v155 = vpack.c.b16 %v149, %v148
    %v156 = vpack.c.b16 %v151, %v150
    %v157 = vpack.c.b16 %v153, %v152
    %vm162 = vcmask 523264
    %v164 = vsel %vm162, %v125, 0
    %166 = vmatpush.bf16.msra.mxu0 0
    %167 = vmatpush.bf16.msra.mxu0 0
    %168 = vmatpush.bf16.msra.mxu0 0
    %169 = vmatpush.bf16.msra.mxu0 0
    %170 = vmatpush.bf16.msra.mxu0 %v157
    %171 = vmatpush.bf16.msra.mxu0 %v156
    %172 = vmatpush.bf16.msra.mxu0 %v155
    %173 = vmatpush.bf16.msra.mxu0 %v154
    %174 = vmatmul.bf16.gmra.mxu0 %v164
    %v175 = vpop.f32.mrf.mxu0
    %v176 = vadd.f32 %v136, %v175
    %v177 = vpop.f32.mrf.mxu0
    %v178 = vadd.f32 %v136, %v177
    %179 = vdwg.mxu0
    %v180 = vadd.f32 %v82, %v176
    %v181 = vadd.f32 %v83, %v178
    %v182 = vld [vmem:[#allocation6] sm:$0x1]
    %v183 = vld [vmem:[#allocation7] sm:$0x1]
    %v184 = vsel %vm105, %v180, 0.0
    %185 = vadd.xlane.f32.xlu0 %v184
    %v186 = vpop.xlane.xlu0 %185
    %v187 = vsel %vm105, %v181, 0.0
    %188 = vadd.xlane.f32.xlu0 %v187
    %v189 = vpop.xlane.xlu0 %188
    %v190 = vrcp.pop 32.0
    %v191 = vmul.f32 32.0, %v190
    %v192 = vsub.f32 1.0, %v191
    %v193 = vmul.f32 %v190, %v192
    %v194 = vadd.f32 %v190, %v193
    %vm195 = vweird.f32 %v190
    %v196 = vsel %vm195, %v190, %v194
    %v197 = vmul.f32 %v186, %v196
    %v198 = vmul.f32 %v189, %v196
    %v199 = vsub.f32 %v180, %v197
    %v200 = vsub.f32 %v181, %v198
    %v201 = vmul.f32 %v199, %v199
    %v202 = vmul.f32 %v200, %v200
    %v203 = vsel %vm105, %v201, 0.0
    %204 = vadd.xlane.f32.xlu0 %v203
    %v205 = vpop.xlane.xlu0 %204
    %v206 = vsel %vm105, %v202, 0.0
    %207 = vadd.xlane.f32.xlu0 %v206
    %v208 = vpop.xlane.xlu0 %207
    %v209 = vmul.f32 %v205, %v196
    %v210 = vmul.f32 %v208, %v196
    %v211 = vadd.f32 %v209, 1e-05
    %v212 = vadd.f32 %v210, 1e-05
    %v213 = vrsqrt.pop %v211
    %v214 = vmul.f32 %v213, %v211
    %v215 = vmul.f32 %v214, %v213
    %v216 = vmul.f32 0.5, %v215
    %v217 = vsub.f32 1.5, %v216
    %v218 = vmul.f32 %v213, %v217
    %vm219 = vweird.f32 %v211
    %vm220 = vweird.f32 %v213
    %vm221 = vmor %vm219, %vm220
    %v222 = vsel %vm221, %v213, %v218
    %v223 = vrsqrt.pop %v212
    %v224 = vmul.f32 %v223, %v212
    %v225 = vmul.f32 %v224, %v223
    %v226 = vmul.f32 0.5, %v225
    %v227 = vsub.f32 1.5, %v226
    %v228 = vmul.f32 %v223, %v227
    %vm229 = vweird.f32 %v212
    %vm230 = vweird.f32 %v223
    %vm231 = vmor %vm229, %vm230
    %v232 = vsel %vm231, %v223, %v228
    %v233 = vmul.f32 %v199, %v222
    %v234 = vmul.f32 %v200, %v232
    %v236 = vperm.slane %v182, 0
    %v238 = vmul.f32 %v233, %v236
    %v239 = vmul.f32 %v234, %v236
    %v241 = vperm.slane %v183, 0
    %v243 = vadd.f32 %v238, %v241
    %v244 = vadd.f32 %v239, %v241
    %245 = vst.msk [vmem:[%s7] sm:$0xff] %vm105, %v243
    %246 = vst.msk [vmem:[%s7 + $0x8] sm:$0xff] %vm105, %v244
    // Predicated region
    $region46: #{transformer_model_forward.8} parent=1 // pred_check
      _
    $region47: #{transformer_model_forward.8} parent=1 // pred_check_branch
      %248 = sbr.rel (0) target = $region49
    $region48: #{transformer_model_forward.8} parent=1 // pred_region
      _
    $region49: #{transformer_model_forward.8} parent=1 // pred_fallthru
      _
    // Predicated region
    $region50: #{transformer_model_forward.8} parent=1 // pred_check
      _
    $region51: #{transformer_model_forward.8} parent=1 // pred_check_branch
      %250 = sbr.rel (0) target = $region53
    $region52: #{transformer_model_forward.8} parent=1 // pred_region
      _
    $region53: #{transformer_model_forward.8} parent=1 // pred_fallthru
      _
    %251 = vsyncpa [#allocation3], 1
    %252 = vsyncpa [#allocation5], 1
    %253 = vsyncpa [#allocation8], 1

// kernel: transformer_model_forward.6
$region0: #{transformer_model_forward.6}
  #allocation0 [shape = 'u32[]', space=smem, size = 0x4, offset = 0x4, fixed_abs, tag = 'smem constant byte address 0x4 - core index']
  #allocation1 [shape = 'u32[72,128]{1,0:T(1,128)}', space=vmem, size = 0x9000, scoped, tag = 'internal scratch']
  %s0 = inlined_call_operand.vmem [shape: f32[16,16], index: 0, kind: input, shape index: {}]
  %s1 = inlined_call_operand.hbm [shape: bf16[16,32], index: 1, kind: input, shape index: {}]
  %s2 = inlined_call_operand.hbm [shape: f32[1,32], index: 2, kind: input, shape index: {}]
  %s3 = inlined_call_operand.hbm [shape: f32[1,32], index: 3, kind: input, shape index: {}]
  %s4 = inlined_call_operand.hbm [shape: f32[1,32], index: 4, kind: input, shape index: {}]
  %s5 = inlined_call_operand.vmem [shape: f32[16,32], index: 5, kind: output, shape index: {}]
  %s6 = sld [smem:[#allocation0]]
  $region46: #{transformer_model_forward.6} parent=0
    _
  %s8 = ssub.s32 1, %s6
  %s9 = scalar_select 0, %s8, %s6
  $region1: #{transformer_model_forward.6} parent=0
    #allocation2 [shape = 'u8[4096]{0}', space=vmem, size = 0x1000, scoped, tag = 'input window, operand 1, single buffered']
    #allocation3 [shape = 's32[1]{0}', space=sflag, size = 0x4, scoped, tag = 'scoped memory for transformer_model_forward.6']
    #allocation4 [shape = 'u8[512]{0}', space=vmem, size = 0x400, scoped, tag = 'input window, operand 2, single buffered']
    #allocation5 [shape = 's32[1]{0}', space=sflag, size = 0x4, scoped, tag = 'scoped memory for transformer_model_forward.6']
    #allocation6 [shape = 'u8[512]{0}', space=vmem, size = 0x400, scoped, tag = 'input window, operand 3, single buffered']
    #allocation7 [shape = 'u8[512]{0}', space=vmem, size = 0x400, scoped, tag = 'input window, operand 4, single buffered']
    #allocation8 [shape = 's32[1]{0}', space=sflag, size = 0x4, scoped, tag = 'scoped memory for transformer_model_forward.6']
    %10 = vsyncpa [#allocation3], 0
    %11 = vsyncpa [#allocation5], 0
    %12 = vsyncpa [#allocation8], 0
    // Predicated region
    $region2: #{transformer_model_forward.6} parent=1 // pred_check
      _
    $region3: #{transformer_model_forward.6} parent=1 // pred_check_branch
      %14 = sbr.rel (0) target = $region5
    $region4: #{transformer_model_forward.6} parent=1 // pred_region
      _
    $region5: #{transformer_model_forward.6} parent=1 // pred_fallthru
      _
    // Predicated region
    $region6: #{transformer_model_forward.6} parent=1 // pred_check
      _
    $region7: #{transformer_model_forward.6} parent=1 // pred_check_branch
      %16 = sbr.rel (0) target = $region9
    $region8: #{transformer_model_forward.6} parent=1 // pred_region
      %18 = vsyncadd [#allocation3], 0
      %s19 = sshll.u32 %s1, 4
      %s20 = int_to_ptr.hbm [resolvable:$true] %s19
      %s21 = sshll.u32 [#allocation2], 4
      %s22 = int_to_ptr.vmem [resolvable:$true] %s21
      %27 = dma.hbm_to_vmem [thread:$0]  %s20, 128, %s22, [#allocation3], 64, 64, 4
    $region9: #{transformer_model_forward.6} parent=1 // pred_fallthru
      _
    // Predicated region
    $region10: #{transformer_model_forward.6} parent=1 // pred_check
      _
    $region11: #{transformer_model_forward.6} parent=1 // pred_check_branch
      %29 = sbr.rel (0) target = $region13
    $region12: #{transformer_model_forward.6} parent=1 // pred_region
      %31 = vsyncadd [#allocation5], 0
      %s33 = sshll.u32 %s2, 4
      %s34 = int_to_ptr.hbm [resolvable:$true] %s33
      %s35 = sshll.u32 [#allocation4], 4
      %s36 = int_to_ptr.vmem [resolvable:$true] %s35
      %38 = dma.hbm_to_vmem [thread:$0]  %s34, 16, %s36, [#allocation5]
    $region13: #{transformer_model_forward.6} parent=1 // pred_fallthru
      _
    // Predicated region
    $region14: #{transformer_model_forward.6} parent=1 // pred_check
      _
    $region15: #{transformer_model_forward.6} parent=1 // pred_check_branch
      %40 = sbr.rel (0) target = $region17
    $region16: #{transformer_model_forward.6} parent=1 // pred_region
      %42 = vsyncadd [#allocation5], 0
      %s44 = sshll.u32 %s3, 4
      %s45 = int_to_ptr.hbm [resolvable:$true] %s44
      %s46 = sshll.u32 [#allocation6], 4
      %s47 = int_to_ptr.vmem [resolvable:$true] %s46
      %49 = dma.hbm_to_vmem [thread:$0]  %s45, 16, %s47, [#allocation5]
    $region17: #{transformer_model_forward.6} parent=1 // pred_fallthru
      _
    // Predicated region
    $region18: #{transformer_model_forward.6} parent=1 // pred_check
      _
    $region19: #{transformer_model_forward.6} parent=1 // pred_check_branch
      %51 = sbr.rel (0) target = $region21
    $region20: #{transformer_model_forward.6} parent=1 // pred_region
      %53 = vsyncadd [#allocation8], 0
      %s55 = sshll.u32 %s4, 4
      %s56 = int_to_ptr.hbm [resolvable:$true] %s55
      %s57 = sshll.u32 [#allocation7], 4
      %s58 = int_to_ptr.vmem [resolvable:$true] %s57
      %60 = dma.hbm_to_vmem [thread:$0]  %s56, 16, %s58, [#allocation8]
    $region21: #{transformer_model_forward.6} parent=1 // pred_fallthru
      _
    // Predicated region
    $region22: #{transformer_model_forward.6} parent=1 // pred_check
      _
    $region23: #{transformer_model_forward.6} parent=1 // pred_check_branch
      %62 = sbr.rel (0) target = $region25
    $region24: #{transformer_model_forward.6} parent=1 // pred_region
      %64 = dma.done [#allocation3], 128
    $region25: #{transformer_model_forward.6} parent=1 // pred_fallthru
      _
    // Predicated region
    $region26: #{transformer_model_forward.6} parent=1 // pred_check
      _
    $region27: #{transformer_model_forward.6} parent=1 // pred_check_branch
      %66 = sbr.rel (0) target = $region29
    $region28: #{transformer_model_forward.6} parent=1 // pred_region
      %68 = dma.done [#allocation5], 16
    $region29: #{transformer_model_forward.6} parent=1 // pred_fallthru
      _
    // Predicated region
    $region30: #{transformer_model_forward.6} parent=1 // pred_check
      _
    $region31: #{transformer_model_forward.6} parent=1 // pred_check_branch
      %70 = sbr.rel (0) target = $region33
    $region32: #{transformer_model_forward.6} parent=1 // pred_region
      %72 = dma.done [#allocation5], 16
    $region33: #{transformer_model_forward.6} parent=1 // pred_fallthru
      _
    // Predicated region
    $region34: #{transformer_model_forward.6} parent=1 // pred_check
      _
    $region35: #{transformer_model_forward.6} parent=1 // pred_check_branch
      %74 = sbr.rel (0) target = $region37
    $region36: #{transformer_model_forward.6} parent=1 // pred_region
      %76 = dma.done [#allocation8], 16
    $region37: #{transformer_model_forward.6} parent=1 // pred_fallthru
      _
    %v78 = vld [vmem:[%s0] sm:$0xff]
    %v79 = vld [vmem:[%s0 + $0x8] sm:$0xff]
    %v80 = vpack.c.bf16 %v79, %v78
    %v81 = vld [vmem:[#allocation2] sm:$0xf]
    %v82 = vld [vmem:[#allocation2 + $0x4] sm:$0xf]
    %v83 = vld [vmem:[#allocation4] sm:$0x1]
    %v85 = vperm.slane %v83, 0
    %v89 = vunpack.c.l.b16 %v81
    %v90 = vunpack.c.l.b16 %v82
    %v91 = vpack.c.b16 %v90, %v89
    %vm93 = vcmask 130048
    %v95 = vsel %vm93, %v80, 0
    %97 = vmatpush.bf16.msra.mxu0 0
    %98 = vmatpush.bf16.msra.mxu0 0
    %99 = vmatpush.bf16.msra.mxu0 0
    %100 = vmatpush.bf16.msra.mxu0 0
    %101 = vmatpush.bf16.msra.mxu0 0
    %102 = vmatpush.bf16.msra.mxu0 0
    %103 = vmatpush.bf16.msra.mxu0 0
    %104 = vmatpush.bf16.msra.mxu0 %v91
    %105 = vmatmul.bf16.gmra.mxu0 %v95
    %v106 = vpop.f32.mrf.mxu0
    %v107 = vadd.f32 %v85, %v106
    %v108 = vpop.f32.mrf.mxu0
    %v109 = vadd.f32 %v85, %v108
    %110 = vdwg.mxu0
    %v111 = vld [vmem:[#allocation6] sm:$0x1]
    %v112 = vld [vmem:[#allocation7] sm:$0x1]
    %vm113 = vcmask 261120
    %v114 = vsel %vm113, %v107, 0.0
    %115 = vadd.xlane.f32.xlu0 %v114
    %v116 = vpop.xlane.xlu0 %115
    %v117 = vsel %vm113, %v109, 0.0
    %118 = vadd.xlane.f32.xlu0 %v117
    %v119 = vpop.xlane.xlu0 %118
    %v120 = vrcp.pop 32.0
    %v121 = vmul.f32 32.0, %v120
    %v122 = vsub.f32 1.0, %v121
    %v123 = vmul.f32 %v120, %v122
    %v124 = vadd.f32 %v120, %v123
    %vm125 = vweird.f32 %v120
    %v126 = vsel %vm125, %v120, %v124
    %v127 = vmul.f32 %v116, %v126
    %v128 = vmul.f32 %v119, %v126
    %v129 = vsub.f32 %v107, %v127
    %v130 = vsub.f32 %v109, %v128
    %v131 = vmul.f32 %v129, %v129
    %v132 = vmul.f32 %v130, %v130
    %v133 = vsel %vm113, %v131, 0.0
    %134 = vadd.xlane.f32.xlu0 %v133
    %v135 = vpop.xlane.xlu0 %134
    %v136 = vsel %vm113, %v132, 0.0
    %137 = vadd.xlane.f32.xlu0 %v136
    %v138 = vpop.xlane.xlu0 %137
    %v139 = vmul.f32 %v135, %v126
    %v140 = vmul.f32 %v138, %v126
    %v141 = vadd.f32 %v139, 1e-05
    %v142 = vadd.f32 %v140, 1e-05
    %v143 = vrsqrt.pop %v141
    %v144 = vmul.f32 %v143, %v141
    %v145 = vmul.f32 %v144, %v143
    %v146 = vmul.f32 0.5, %v145
    %v147 = vsub.f32 1.5, %v146
    %v148 = vmul.f32 %v143, %v147
    %vm149 = vweird.f32 %v141
    %vm150 = vweird.f32 %v143
    %vm151 = vmor %vm149, %vm150
    %v152 = vsel %vm151, %v143, %v148
    %v153 = vrsqrt.pop %v142
    %v154 = vmul.f32 %v153, %v142
    %v155 = vmul.f32 %v154, %v153
    %v156 = vmul.f32 0.5, %v155
    %v157 = vsub.f32 1.5, %v156
    %v158 = vmul.f32 %v153, %v157
    %vm159 = vweird.f32 %v142
    %vm160 = vweird.f32 %v153
    %vm161 = vmor %vm159, %vm160
    %v162 = vsel %vm161, %v153, %v158
    %v163 = vmul.f32 %v129, %v152
    %v164 = vmul.f32 %v130, %v162
    %v166 = vperm.slane %v111, 0
    %v168 = vmul.f32 %v163, %v166
    %v169 = vmul.f32 %v164, %v166
    %v171 = vperm.slane %v112, 0
    %v173 = vadd.f32 %v168, %v171
    %v174 = vadd.f32 %v169, %v171
    %175 = vst.msk [vmem:[%s5] sm:$0xff] %vm113, %v173
    %176 = vst.msk [vmem:[%s5 + $0x8] sm:$0xff] %vm113, %v174
    // Predicated region
    $region38: #{transformer_model_forward.6} parent=1 // pred_check
      _
    $region39: #{transformer_model_forward.6} parent=1 // pred_check_branch
      %178 = sbr.rel (0) target = $region41
    $region40: #{transformer_model_forward.6} parent=1 // pred_region
      _
    $region41: #{transformer_model_forward.6} parent=1 // pred_fallthru
      _
    // Predicated region
    $region42: #{transformer_model_forward.6} parent=1 // pred_check
      _
    $region43: #{transformer_model_forward.6} parent=1 // pred_check_branch
      %180 = sbr.rel (0) target = $region45
    $region44: #{transformer_model_forward.6} parent=1 // pred_region
      _
    $region45: #{transformer_model_forward.6} parent=1 // pred_fallthru
      _
    %181 = vsyncpa [#allocation3], 1
    %182 = vsyncpa [#allocation5], 1
    %183 = vsyncpa [#allocation8], 1

// kernel: transformer_model_forward.7
$region0: #{transformer_model_forward.7}
  #allocation0 [shape = 'u32[]', space=smem, size = 0x4, offset = 0x4, fixed_abs, tag = 'smem constant byte address 0x4 - core index']
  #allocation1 [shape = 'u32[72,128]{1,0:T(1,128)}', space=vmem, size = 0x9000, scoped, tag = 'internal scratch']
  %s0 = inlined_call_operand.vmem [shape: f32[2,8,32], index: 0, kind: input, shape index: {}]
  %s1 = inlined_call_operand.hbm [shape: bf16[32,96], index: 1, kind: input, shape index: {}]
  %s2 = inlined_call_operand.hbm [shape: f32[1,96], index: 2, kind: input, shape index: {}]
  %s3 = inlined_call_operand.hbm [shape: bf16[32,32], index: 3, kind: input, shape index: {}]
  %s4 = inlined_call_operand.hbm [shape: f32[1,32], index: 4, kind: input, shape index: {}]
  %s5 = inlined_call_operand.hbm [shape: f32[1,32], index: 5, kind: input, shape index: {}]
  %s6 = inlined_call_operand.hbm [shape: f32[1,32], index: 6, kind: input, shape index: {}]
  %s7 = inlined_call_operand.vmem [shape: f32[2,8,32], index: 7, kind: output, shape index: {}]
  %s8 = sld [smem:[#allocation0]]
  $region85: #{transformer_model_forward.7} parent=0
    _
  %s10 = ssub.s32 1, %s8
  %s11 = scalar_select 0, %s10, %s8
  $region1: #{transformer_model_forward.7} parent=0
    #allocation2 [shape = 'u8[8192]{0}', space=vmem, size = 0x2000, scoped, tag = 'input window, operand 1, single buffered']
    #allocation3 [shape = 's32[2]{0}', space=sflag, size = 0x8, scoped, tag = 'scoped memory for transformer_model_forward.7']
    #allocation4 [shape = 'u8[512]{0}', space=vmem, size = 0x400, scoped, tag = 'input window, operand 2, single buffered']
    #allocation5 [shape = 's32[1]{0}', space=sflag, size = 0x4, scoped, tag = 'scoped memory for transformer_model_forward.7']
    #allocation6 [shape = 'u8[8192]{0}', space=vmem, size = 0x2000, scoped, tag = 'input window, operand 3, single buffered']
    #allocation7 [shape = 'u8[512]{0}', space=vmem, size = 0x400, scoped, tag = 'input window, operand 4, single buffered']
    #allocation8 [shape = 's32[1]{0}', space=sflag, size = 0x4, scoped, tag = 'scoped memory for transformer_model_forward.7']
    #allocation9 [shape = 'u8[512]{0}', space=vmem, size = 0x400, scoped, tag = 'input window, operand 5, single buffered']
    #allocation10 [shape = 'u8[512]{0}', space=vmem, size = 0x400, scoped, tag = 'input window, operand 6, single buffered']
    #allocation11 [shape = 's32[1]{0}', space=sflag, size = 0x4, scoped, tag = 'scoped memory for transformer_model_forward.7']
    %12 = vsyncpa [#allocation3], 0
    %13 = vsyncpa [#allocation5], 0
    %14 = vsyncpa [#allocation8], 0
    %15 = vsyncpa [#allocation11], 0
    loop: start=0, step=1, limit=4
    $region2: #{transformer_model_forward.7} parent=1 // loop_pre_header
      _
    $region3: #{transformer_model_forward.7} parent=1 // loop_header
      %s17 = sphi 0, %s21
      %p18 = scmp.ge.s32.totalorder %s17, 4
      %s27 = sphi 0, %s29
      %s30 = sphi 0, %s27
      %s31 = sphi 0, %s30
      %s47 = sphi 0, %s31
      %s51 = sphi 0, %s51
      %s53 = sphi 0, %s51
      %s54 = sphi 0, %s53
      %s68 = sphi 0, %s54
      %s72 = sphi 0, %s72
      %s74 = sphi 0, %s72
      %s75 = sphi 0, %s74
      %s89 = sphi 0, %s75
      %s93 = sphi 0, %s93
      %s95 = sphi 0, %s93
      %s96 = sphi 0, %s95
      %s110 = sphi 0, %s96
      %s114 = sphi 0, %s114
      %s116 = sphi 0, %s114
      %s117 = sphi 0, %s116
      %s131 = sphi 0, %s117
      %s135 = sphi 0, %s135
      %s137 = sphi 0, %s135
      %s138 = sphi 0, %s137
      %s152 = sphi 0, %s138
      %s156 = sphi 0, %s156
      %s158 = sphi 0, %s156
      %s159 = sphi 0, %s158
      %s173 = sphi 0, %s159
      %s179 = sphi 0, %s181
      %s182 = sphi 0, %s179
      %s183 = sphi 0, %s182
      %s199 = sphi 0, %s183
    $region4: #{transformer_model_forward.7} parent=1 // loop_header_branch
      %20 = sbr.rel (%p18) target = $region8
    $region5: #{transformer_model_forward.7} parent=1 // loop_body
      %s22 = ssub.s32 %s17, 1
      %s23 = ssub.s32 %s17, 2
      %s24 = sadd.s32 %s17, 1
      %s25 = ssub.s32 %s17, %s24
      %p26 = scmp.eq.s32.totalorder %s25, 0
      %s28 = sadd.s32 %s27, 1
      %s29 = scalar_select %p26, %s27, %s28
      %p32 = pneg %p26
      %p33 = scmp.eq.s32.totalorder %s17, 1
      %p34 = por %p32, %p33
      %p35 = scmp.ne.s32.totalorder %s27, %s30
      %p36 = scmp.eq.s32.totalorder %s17, 0
      %p37 = por %p35, %p36
      %p38 = scmp.ne.s32.totalorder %s27, %s30
      %p39 = scmp.eq.s32.totalorder %s22, 1
      %p40 = por %p38, %p39
      %p41 = scmp.ne.s32.totalorder %s30, %s31
      %p42 = scmp.eq.s32.totalorder %s22, 0
      %p43 = por %p41, %p42
      %p44 = scmp.ne.s32.totalorder %s30, %s31
      %p45 = scmp.eq.s32.totalorder %s23, 1
      %p46 = por %p44, %p45
      %p48 = scmp.ne.s32.totalorder %s31, %s47
      %p49 = scmp.eq.s32.totalorder %s23, 0
      %p50 = por %p48, %p49
      %s52 = sadd.s32 %s51, 1
      %p55 = scmp.eq.s32.totalorder %s17, 1
      %p56 = scmp.ne.s32.totalorder %s51, %s53
      %p57 = scmp.eq.s32.totalorder %s17, 0
      %p58 = por %p56, %p57
      %p59 = scmp.ne.s32.totalorder %s51, %s53
      %p60 = scmp.eq.s32.totalorder %s22, 1
      %p61 = por %p59, %p60
      %p62 = scmp.ne.s32.totalorder %s53, %s54
      %p63 = scmp.eq.s32.totalorder %s22, 0
      %p64 = por %p62, %p63
      %p65 = scmp.ne.s32.totalorder %s53, %s54
      %p66 = scmp.eq.s32.totalorder %s23, 1
      %p67 = por %p65, %p66
      %p69 = scmp.ne.s32.totalorder %s54, %s68
      %p70 = scmp.eq.s32.totalorder %s23, 0
      %p71 = por %p69, %p70
      %s73 = sadd.s32 %s72, 1
      %p76 = scmp.eq.s32.totalorder %s17, 1
      %p77 = scmp.ne.s32.totalorder %s72, %s74
      %p78 = scmp.eq.s32.totalorder %s17, 0
      %p79 = por %p77, %p78
      %p80 = scmp.ne.s32.totalorder %s72, %s74
      %p81 = scmp.eq.s32.totalorder %s22, 1
      %p82 = por %p80, %p81
      %p83 = scmp.ne.s32.totalorder %s74, %s75
      %p84 = scmp.eq.s32.totalorder %s22, 0
      %p85 = por %p83, %p84
      %p86 = scmp.ne.s32.totalorder %s74, %s75
      %p87 = scmp.eq.s32.totalorder %s23, 1
      %p88 = por %p86, %p87
      %p90 = scmp.ne.s32.totalorder %s75, %s89
      %p91 = scmp.eq.s32.totalorder %s23, 0
      %p92 = por %p90, %p91
      %s94 = sadd.s32 %s93, 1
      %p97 = scmp.eq.s32.totalorder %s17, 1
      %p98 = scmp.ne.s32.totalorder %s93, %s95
      %p99 = scmp.eq.s32.totalorder %s17, 0
      %p100 = por %p98, %p99
      %p101 = scmp.ne.s32.totalorder %s93, %s95
      %p102 = scmp.eq.s32.totalorder %s22, 1
      %p103 = por %p101, %p102
      %p104 = scmp.ne.s32.totalorder %s95, %s96
      %p105 = scmp.eq.s32.totalorder %s22, 0
      %p106 = por %p104, %p105
      %p107 = scmp.ne.s32.totalorder %s95, %s96
      %p108 = scmp.eq.s32.totalorder %s23, 1
      %p109 = por %p107, %p108
      %p111 = scmp.ne.s32.totalorder %s96, %s110
      %p112 = scmp.eq.s32.totalorder %s23, 0
      %p113 = por %p111, %p112
      %s115 = sadd.s32 %s114, 1
      %p118 = scmp.eq.s32.totalorder %s17, 1
      %p119 = scmp.ne.s32.totalorder %s114, %s116
      %p120 = scmp.eq.s32.totalorder %s17, 0
      %p121 = por %p119, %p120
      %p122 = scmp.ne.s32.totalorder %s114, %s116
      %p123 = scmp.eq.s32.totalorder %s22, 1
      %p124 = por %p122, %p123
      %p125 = scmp.ne.s32.totalorder %s116, %s117
      %p126 = scmp.eq.s32.totalorder %s22, 0
      %p127 = por %p125, %p126
      %p128 = scmp.ne.s32.totalorder %s116, %s117
      %p129 = scmp.eq.s32.totalorder %s23, 1
      %p130 = por %p128, %p129
      %p132 = scmp.ne.s32.totalorder %s117, %s131
      %p133 = scmp.eq.s32.totalorder %s23, 0
      %p134 = por %p132, %p133
      %s136 = sadd.s32 %s135, 1
      %p139 = scmp.eq.s32.totalorder %s17, 1
      %p140 = scmp.ne.s32.totalorder %s135, %s137
      %p141 = scmp.eq.s32.totalorder %s17, 0
      %p142 = por %p140, %p141
      %p143 = scmp.ne.s32.totalorder %s135, %s137
      %p144 = scmp.eq.s32.totalorder %s22, 1
      %p145 = por %p143, %p144
      %p146 = scmp.ne.s32.totalorder %s137, %s138
      %p147 = scmp.eq.s32.totalorder %s22, 0
      %p148 = por %p146, %p147
      %p149 = scmp.ne.s32.totalorder %s137, %s138
      %p150 = scmp.eq.s32.totalorder %s23, 1
      %p151 = por %p149, %p150
      %p153 = scmp.ne.s32.totalorder %s138, %s152
      %p154 = scmp.eq.s32.totalorder %s23, 0
      %p155 = por %p153, %p154
      %s157 = sadd.s32 %s156, 1
      %p160 = scmp.eq.s32.totalorder %s17, 1
      %p161 = scmp.ne.s32.totalorder %s156, %s158
      %p162 = scmp.eq.s32.totalorder %s17, 0
      %p163 = por %p161, %p162
      %p164 = scmp.ne.s32.totalorder %s156, %s158
      %p165 = scmp.eq.s32.totalorder %s22, 1
      %p166 = por %p164, %p165
      %p167 = scmp.ne.s32.totalorder %s158, %s159
      %p168 = scmp.eq.s32.totalorder %s22, 0
      %p169 = por %p167, %p168
      %p170 = scmp.ne.s32.totalorder %s158, %s159
      %p171 = scmp.eq.s32.totalorder %s23, 1
      %p172 = por %p170, %p171
      %p174 = scmp.ne.s32.totalorder %s159, %s173
      %p175 = scmp.eq.s32.totalorder %s23, 0
      %p176 = por %p174, %p175
      %s177 = ssub.s32 %s17, %s24
      %p178 = scmp.eq.s32.totalorder %s177, 0
      %s180 = sadd.s32 %s179, 1
      %s181 = scalar_select %p178, %s179, %s180
      %p184 = pneg %p178
      %p185 = scmp.eq.s32.totalorder %s17, 1
      %p186 = por %p184, %p185
      %p187 = scmp.ne.s32.totalorder %s179, %s182
      %p188 = scmp.eq.s32.totalorder %s17, 0
      %p189 = por %p187, %p188
      %p190 = scmp.ne.s32.totalorder %s179, %s182
      %p191 = scmp.eq.s32.totalorder %s22, 1
      %p192 = por %p190, %p191
      %p193 = scmp.ne.s32.totalorder %s182, %s183
      %p194 = scmp.eq.s32.totalorder %s22, 0
      %p195 = por %p193, %p194
      %p196 = scmp.ne.s32.totalorder %s182, %s183
      %p197 = scmp.eq.s32.totalorder %s23, 1
      %p198 = por %p196, %p197
      %p200 = scmp.ne.s32.totalorder %s183, %s199
      %p201 = scmp.eq.s32.totalorder %s23, 0
      %p202 = por %p200, %p201
      %p203 = scmp.le.s32.totalorder 1, %s17
      %p204 = scmp.lt.s32.totalorder %s17, 3
      %p205 = pnand %p203, %p204
      %p206 = pneg %p205
      // Predicated region
      $region9: #{transformer_model_forward.7} parent=5 // pred_check
        _
      $region10: #{transformer_model_forward.7} parent=5 // pred_check_branch
        %208 = sbr.rel (%p205) target = $region12
      $region11: #{transformer_model_forward.7} parent=5 // pred_region
        %s209 = ssub.s32 %s17, 1
        // Predicated region
        $region13: #{transformer_model_forward.7} parent=11 // pred_check
          %p210 = pneg %p64
        $region14: #{transformer_model_forward.7} parent=11 // pred_check_branch
          %212 = sbr.rel (%p210) target = $region16
        $region15: #{transformer_model_forward.7} parent=11 // pred_region
          %214 = vsyncadd [#allocation3], 0
          %s215 = sshll.u32 %s1, 4
          %s216 = int_to_ptr.hbm [resolvable:$true] %s215
          %s217 = sshll.u32 [#allocation2], 4
          %s218 = int_to_ptr.vmem [resolvable:$true] %s217
          %223 = dma.hbm_to_vmem [thread:$0]  %s216, 256, %s218, [#allocation3], 64, 64, 4
        $region16: #{transformer_model_forward.7} parent=11 // pred_fallthru
          _
        // Predicated region
        $region17: #{transformer_model_forward.7} parent=11 // pred_check
          %p224 = pneg %p85
        $region18: #{transformer_model_forward.7} parent=11 // pred_check_branch
          %226 = sbr.rel (%p224) target = $region20
        $region19: #{transformer_model_forward.7} parent=11 // pred_region
          %228 = vsyncadd [#allocation5], 0
          %s230 = sshll.u32 %s2, 4
          %s231 = int_to_ptr.hbm [resolvable:$true] %s230
          %s232 = sshll.u32 [#allocation4], 4
          %s233 = int_to_ptr.vmem [resolvable:$true] %s232
          %235 = dma.hbm_to_vmem [thread:$0]  %s231, 16, %s233, [#allocation5]
        $region20: #{transformer_model_forward.7} parent=11 // pred_fallthru
          _
        // Predicated region
        $region21: #{transformer_model_forward.7} parent=11 // pred_check
          %p236 = pneg %p106
        $region22: #{transformer_model_forward.7} parent=11 // pred_check_branch
          %238 = sbr.rel (%p236) target = $region24
        $region23: #{transformer_model_forward.7} parent=11 // pred_region
          %240 = vsyncadd [#allocation5], 0
          %s241 = sshll.u32 %s3, 4
          %s242 = int_to_ptr.hbm [resolvable:$true] %s241
          %s243 = sshll.u32 [#allocation6], 4
          %s244 = int_to_ptr.vmem [resolvable:$true] %s243
          %249 = dma.hbm_to_vmem [thread:$0]  %s242, 256, %s244, [#allocation5], 64, 64, 4
        $region24: #{transformer_model_forward.7} parent=11 // pred_fallthru
          _
        // Predicated region
        $region25: #{transformer_model_forward.7} parent=11 // pred_check
          %p250 = pneg %p127
        $region26: #{transformer_model_forward.7} parent=11 // pred_check_branch
          %252 = sbr.rel (%p250) target = $region28
        $region27: #{transformer_model_forward.7} parent=11 // pred_region
          %254 = vsyncadd [#allocation8], 0
          %s256 = sshll.u32 %s4, 4
          %s257 = int_to_ptr.hbm [resolvable:$true] %s256
          %s258 = sshll.u32 [#allocation7], 4
          %s259 = int_to_ptr.vmem [resolvable:$true] %s258
          %261 = dma.hbm_to_vmem [thread:$0]  %s257, 16, %s259, [#allocation8]
        $region28: #{transformer_model_forward.7} parent=11 // pred_fallthru
          _
        // Predicated region
        $region29: #{transformer_model_forward.7} parent=11 // pred_check
          %p262 = pneg %p148
        $region30: #{transformer_model_forward.7} parent=11 // pred_check_branch
          %264 = sbr.rel (%p262) target = $region32
        $region31: #{transformer_model_forward.7} parent=11 // pred_region
          %266 = vsyncadd [#allocation8], 0
          %s268 = sshll.u32 %s5, 4
          %s269 = int_to_ptr.hbm [resolvable:$true] %s268
          %s270 = sshll.u32 [#allocation9], 4
          %s271 = int_to_ptr.vmem [resolvable:$true] %s270
          %273 = dma.hbm_to_vmem [thread:$0]  %s269, 16, %s271, [#allocation8]
        $region32: #{transformer_model_forward.7} parent=11 // pred_fallthru
          _
        // Predicated region
        $region33: #{transformer_model_forward.7} parent=11 // pred_check
          %p274 = pneg %p169
        $region34: #{transformer_model_forward.7} parent=11 // pred_check_branch
          %276 = sbr.rel (%p274) target = $region36
        $region35: #{transformer_model_forward.7} parent=11 // pred_region
          %278 = vsyncadd [#allocation11], 0
          %s280 = sshll.u32 %s6, 4
          %s281 = int_to_ptr.hbm [resolvable:$true] %s280
          %s282 = sshll.u32 [#allocation10], 4
          %s283 = int_to_ptr.vmem [resolvable:$true] %s282
          %285 = dma.hbm_to_vmem [thread:$0]  %s281, 16, %s283, [#allocation11]
        $region36: #{transformer_model_forward.7} parent=11 // pred_fallthru
          _
      $region12: #{transformer_model_forward.7} parent=5 // pred_fallthru
        _
      %p286 = scmp.lt.s32.totalorder %s17, 2
      // Predicated region
      $region37: #{transformer_model_forward.7} parent=5 // pred_check
        %p287 = pneg %p286
      $region38: #{transformer_model_forward.7} parent=5 // pred_check_branch
        %289 = sbr.rel (%p287) target = $region40
      $region39: #{transformer_model_forward.7} parent=5 // pred_region
        // Predicated region
        $region41: #{transformer_model_forward.7} parent=39 // pred_check
          %p290 = pneg %p37
        $region42: #{transformer_model_forward.7} parent=39 // pred_check_branch
          %292 = sbr.rel (%p290) target = $region44
        $region43: #{transformer_model_forward.7} parent=39 // pred_region
          %p293 = scmp.lt.s32.totalorder %s17, 1
          %s294 = scalar_select %p293, %s17, 1
          %s295 = smul.addr %s294, 8
          %s296 = scalar_lea.vmem %s0, %s295
        $region44: #{transformer_model_forward.7} parent=39 // pred_fallthru
          _
      $region40: #{transformer_model_forward.7} parent=5 // pred_fallthru
        _
      %p297 = scmp.le.s32.totalorder 1, %s17
      %p298 = scmp.lt.s32.totalorder %s17, 3
      %p299 = pnand %p297, %p298
      %p300 = pneg %p299
      // Predicated region
      $region45: #{transformer_model_forward.7} parent=5 // pred_check
        _
      $region46: #{transformer_model_forward.7} parent=5 // pred_check_branch
        %302 = sbr.rel (%p299) target = $region48
      $region47: #{transformer_model_forward.7} parent=5 // pred_region
        %s303 = ssub.s32 %s17, 1
        // Predicated region
        $region49: #{transformer_model_forward.7} parent=47 // pred_check
          %p304 = pneg %p64
        $region50: #{transformer_model_forward.7} parent=47 // pred_check_branch
          %306 = sbr.rel (%p304) target = $region52
        $region51: #{transformer_model_forward.7} parent=47 // pred_region
          %308 = dma.done [#allocation3], 256
        $region52: #{transformer_model_forward.7} parent=47 // pred_fallthru
          _
        // Predicated region
        $region53: #{transformer_model_forward.7} parent=47 // pred_check
          %p309 = pneg %p85
        $region54: #{transformer_model_forward.7} parent=47 // pred_check_branch
          %311 = sbr.rel (%p309) target = $region56
        $region55: #{transformer_model_forward.7} parent=47 // pred_region
          %313 = dma.done [#allocation5], 16
        $region56: #{transformer_model_forward.7} parent=47 // pred_fallthru
          _
        // Predicated region
        $region57: #{transformer_model_forward.7} parent=47 // pred_check
          %p314 = pneg %p106
        $region58: #{transformer_model_forward.7} parent=47 // pred_check_branch
          %316 = sbr.rel (%p314) target = $region60
        $region59: #{transformer_model_forward.7} parent=47 // pred_region
          %318 = dma.done [#allocation5], 256
        $region60: #{transformer_model_forward.7} parent=47 // pred_fallthru
          _
        // Predicated region
        $region61: #{transformer_model_forward.7} parent=47 // pred_check
          %p319 = pneg %p127
        $region62: #{transformer_model_forward.7} parent=47 // pred_check_branch
          %321 = sbr.rel (%p319) target = $region64
        $region63: #{transformer_model_forward.7} parent=47 // pred_region
          %323 = dma.done [#allocation8], 16
        $region64: #{transformer_model_forward.7} parent=47 // pred_fallthru
          _
        // Predicated region
        $region65: #{transformer_model_forward.7} parent=47 // pred_check
          %p324 = pneg %p148
        $region66: #{transformer_model_forward.7} parent=47 // pred_check_branch
          %326 = sbr.rel (%p324) target = $region68
        $region67: #{transformer_model_forward.7} parent=47 // pred_region
          %328 = dma.done [#allocation8], 16
        $region68: #{transformer_model_forward.7} parent=47 // pred_fallthru
          _
        // Predicated region
        $region69: #{transformer_model_forward.7} parent=47 // pred_check
          %p329 = pneg %p169
        $region70: #{transformer_model_forward.7} parent=47 // pred_check_branch
          %331 = sbr.rel (%p329) target = $region72
        $region71: #{transformer_model_forward.7} parent=47 // pred_region
          %333 = dma.done [#allocation11], 16
        $region72: #{transformer_model_forward.7} parent=47 // pred_fallthru
          _
        %p334 = scmp.lt.s32.totalorder %s22, 1
        %s335 = scalar_select %p334, %s22, 1
        %s336 = smul.addr %s335, 8
        %s337 = scalar_lea.vmem %s0, %s336
        %p338 = pneg %p43
        %p339 = pneg %p40
        %p340 = pneg %p64
        %p341 = pneg %p61
        %p342 = pneg %p85
        %p343 = pneg %p82
        %p344 = pneg %p106
        %p345 = pneg %p103
        %p346 = pneg %p127
        %p347 = pneg %p124
        %p348 = pneg %p148
        %p349 = pneg %p145
        %p350 = pneg %p169
        %p351 = pneg %p166
        %p352 = pneg %p195
        %p353 = pneg %p192
        %p354 = scmp.lt.s32.totalorder %s22, 1
        %s355 = scalar_select %p354, %s22, 1
        %s356 = smul.addr %s355, 8
        %s357 = scalar_lea.vmem %s7, %s356
        %p358 = scmp.lt.s32.totalorder %s22, 1
        %s359 = scalar_select %p358, %s22, 1
        %s360 = smul.addr %s359, 8
        %s361 = scalar_lea.vmem %s0, %s360
        %p362 = scmp.lt.s32.totalorder %s22, 1
        %s363 = scalar_select %p362, %s22, 1
        %s364 = smul.addr %s363, 8
        %s365 = scalar_lea.vmem %s7, %s364
        %v367 = vld [vmem:[%s361] sm:$0xff]
        %v368 = vpack.c.bf16 %v367, %v367
        %v369 = vld [vmem:[#allocation2] sm:$0xf]
        %v370 = vld [vmem:[#allocation2 + $0x4] sm:$0xf]
        %v371 = vld [vmem:[#allocation2 + $0x8] sm:$0xf]
        %v372 = vld [vmem:[#allocation2 + $0xc] sm:$0xf]
        %v373 = vld [vmem:[#allocation4] sm:$0x1]
        %v375 = vperm.slane %v373, 0
        %v381 = vunpack.c.l.b16 %v369
        %v382 = vunpack.c.l.b16 %v370
        %v383 = vunpack.c.l.b16 %v371
        %v384 = vunpack.c.l.b16 %v372
        %v385 = vpack.c.b16 %v382, %v381
        %v386 = vpack.c.b16 %v384, %v383
        %vm389 = vcmask 261120
        %v391 = vsel %vm389, %v368, 0
        %393 = vmatpush.bf16.msra.mxu0 0
        %394 = vmatpush.bf16.msra.mxu0 0
        %395 = vmatpush.bf16.msra.mxu0 0
        %396 = vmatpush.bf16.msra.mxu0 0
        %397 = vmatpush.bf16.msra.mxu0 0
        %398 = vmatpush.bf16.msra.mxu0 0
        %399 = vmatpush.bf16.msra.mxu0 %v386
        %400 = vmatpush.bf16.msra.mxu0 %v385
        %401 = vmatmul.bf16.gmra.mxu0 %v391
        %v402 = vpop.f32.mrf.mxu0
        %v403 = vadd.f32 %v375, %v402
        %v404 = vpop.f32.mrf.mxu0
        %405 = vdwg.mxu0
        %v406 = vmul.f32 %v403, 0.35355338
        %v407 = vpack.c.bf16 %v406, %v406
        %v408 = vpack.c.bf16 %v403, %v403
        %410 = vrot.lane.b32.xlu0 %v408, 96
        %v411 = vpop.permute.xlu0 %410
        %vm412 = vcmask 64512
        %v414 = vsel %vm412, %v407, 0
        %v417 = vsel %vm412, %v411, 0
        %419 = vmatpush.bf16.xpose.msra.mxu0 0
        %420 = vmatpush.bf16.xpose.msra.mxu0 0
        %421 = vmatpush.bf16.xpose.msra.mxu0 0
        %422 = vmatpush.bf16.xpose.msra.mxu0 0
        %423 = vmatpush.bf16.xpose.msra.mxu0 0
        %424 = vmatpush.bf16.xpose.msra.mxu0 0
        %425 = vmatpush.bf16.xpose.msra.mxu0 0
        %426 = vmatpush.bf16.xpose.msra.mxu0 %v417
        %427 = vmatmul.bf16.gmra.mxu0 %v414
        %v428 = vpop.f32.mrf.mxu0
        %v429 = vadd.f32 0.0, %v428
        %v430 = vpop.f32.mrf.mxu0
        %431 = vdwg.mxu0
        %v432 = vsel %vm412, %v429, -inf
        %433 = vmax.xlane.f32.xlu0 %v432
        %v434 = vpop.xlane.xlu0 %433
        %v435 = vsub.f32 %v429, %v434
        %v436 = vmul.f32 %v435, 1.442695
        %v437 = vpow.pop %v436
        %v438 = vsel %vm412, %v437, 0.0
        %439 = vadd.xlane.f32.xlu0 %v438
        %v440 = vpop.xlane.xlu0 %439
        %v441 = vrcp.pop %v440
        %v442 = vmul.f32 %v437, %v441
        %v443 = vpack.c.bf16 %v442, %v442
        %444 = vrot.lane.b32.xlu0 %v408, 64
        %v445 = vpop.permute.xlu0 %444
        %v447 = vsel %vm412, %v443, 0
        %vm449 = vcmask 1043456
        %v451 = vsel %vm449, %v445, 0
        %453 = vmatpush.bf16.msra.mxu0 0
        %454 = vmatpush.bf16.msra.mxu0 0
        %455 = vmatpush.bf16.msra.mxu0 0
        %456 = vmatpush.bf16.msra.mxu0 0
        %457 = vmatpush.bf16.msra.mxu0 0
        %458 = vmatpush.bf16.msra.mxu0 0
        %459 = vmatpush.bf16.msra.mxu0 0
        %460 = vmatpush.bf16.msra.mxu0 %v451
        %461 = vmatmul.bf16.gmra.mxu0 %v447
        %v462 = vpop.f32.mrf.mxu0
        %v463 = vadd.f32 0.0, %v462
        %v464 = vpop.f32.mrf.mxu0
        %465 = vdwg.mxu0
        %467 = vrot.lane.b32.xlu0 %v407, 120
        %v468 = vpop.permute.xlu0 %467
        %469 = vrot.lane.b32.xlu0 %v408, 88
        %v470 = vpop.permute.xlu0 %469
        %v472 = vsel %vm412, %v468, 0
        %v475 = vsel %vm412, %v470, 0
        %477 = vmatpush.bf16.xpose.msra.mxu0 0
        %478 = vmatpush.bf16.xpose.msra.mxu0 0
        %479 = vmatpush.bf16.xpose.msra.mxu0 0
        %480 = vmatpush.bf16.xpose.msra.mxu0 0
        %481 = vmatpush.bf16.xpose.msra.mxu0 0
        %482 = vmatpush.bf16.xpose.msra.mxu0 0
        %483 = vmatpush.bf16.xpose.msra.mxu0 0
        %484 = vmatpush.bf16.xpose.msra.mxu0 %v475
        %485 = vmatmul.bf16.gmra.mxu0 %v472
        %v486 = vpop.f32.mrf.mxu0
        %v487 = vadd.f32 0.0, %v486
        %v488 = vpop.f32.mrf.mxu0
        %489 = vdwg.mxu0
        %v490 = vsel %vm412, %v487, -inf
        %491 = vmax.xlane.f32.xlu0 %v490
        %v492 = vpop.xlane.xlu0 %491
        %v493 = vsub.f32 %v487, %v492
        %v494 = vmul.f32 %v493, 1.442695
        %v495 = vpow.pop %v494
        %v496 = vsel %vm412, %v495, 0.0
        %497 = vadd.xlane.f32.xlu0 %v496
        %v498 = vpop.xlane.xlu0 %497
        %v499 = vrcp.pop %v498
        %v500 = vmul.f32 %v495, %v499
        %v501 = vpack.c.bf16 %v500, %v500
        %502 = vrot.lane.b32.xlu0 %v408, 56
        %v503 = vpop.permute.xlu0 %502
        %v505 = vsel %vm412, %v501, 0
        %v508 = vsel %vm449, %v503, 0
        %510 = vmatpush.bf16.msra.mxu0 0
        %511 = vmatpush.bf16.msra.mxu0 0
        %512 = vmatpush.bf16.msra.mxu0 0
        %513 = vmatpush.bf16.msra.mxu0 0
        %514 = vmatpush.bf16.msra.mxu0 0
        %515 = vmatpush.bf16.msra.mxu0 0
        %516 = vmatpush.bf16.msra.mxu0 0
        %517 = vmatpush.bf16.msra.mxu0 %v508
        %518 = vmatmul.bf16.gmra.mxu0 %v505
        %v519 = vpop.f32.mrf.mxu0
        %v520 = vadd.f32 0.0, %v519
        %v521 = vpop.f32.mrf.mxu0
        %522 = vdwg.mxu0
        %523 = vrot.lane.b32.xlu0 %v407, 112
        %v524 = vpop.permute.xlu0 %523
        %525 = vrot.lane.b32.xlu0 %v408, 80
        %v526 = vpop.permute.xlu0 %525
        %v528 = vsel %vm412, %v524, 0
        %v531 = vsel %vm412, %v526, 0
        %533 = vmatpush.bf16.xpose.msra.mxu0 0
        %534 = vmatpush.bf16.xpose.msra.mxu0 0
        %535 = vmatpush.bf16.xpose.msra.mxu0 0
        %536 = vmatpush.bf16.xpose.msra.mxu0 0
        %537 = vmatpush.bf16.xpose.msra.mxu0 0
        %538 = vmatpush.bf16.xpose.msra.mxu0 0
        %539 = vmatpush.bf16.xpose.msra.mxu0 0
        %540 = vmatpush.bf16.xpose.msra.mxu0 %v531
        %541 = vmatmul.bf16.gmra.mxu0 %v528
        %v542 = vpop.f32.mrf.mxu0
        %v543 = vadd.f32 0.0, %v542
        %v544 = vpop.f32.mrf.mxu0
        %545 = vdwg.mxu0
        %v546 = vsel %vm412, %v543, -inf
        %547 = vmax.xlane.f32.xlu0 %v546
        %v548 = vpop.xlane.xlu0 %547
        %v549 = vsub.f32 %v543, %v548
        %v550 = vmul.f32 %v549, 1.442695
        %v551 = vpow.pop %v550
        %v552 = vsel %vm412, %v551, 0.0
        %553 = vadd.xlane.f32.xlu0 %v552
        %v554 = vpop.xlane.xlu0 %553
        %v555 = vrcp.pop %v554
        %v556 = vmul.f32 %v551, %v555
        %v557 = vpack.c.bf16 %v556, %v556
        %558 = vrot.lane.b32.xlu0 %v408, 48
        %v559 = vpop.permute.xlu0 %558
        %v561 = vsel %vm412, %v557, 0
        %v564 = vsel %vm449, %v559, 0
        %566 = vmatpush.bf16.msra.mxu0 0
        %567 = vmatpush.bf16.msra.mxu0 0
        %568 = vmatpush.bf16.msra.mxu0 0
        %569 = vmatpush.bf16.msra.mxu0 0
        %570 = vmatpush.bf16.msra.mxu0 0
        %571 = vmatpush.bf16.msra.mxu0 0
        %572 = vmatpush.bf16.msra.mxu0 0
        %573 = vmatpush.bf16.msra.mxu0 %v564
        %574 = vmatmul.bf16.gmra.mxu0 %v561
        %v575 = vpop.f32.mrf.mxu0
        %v576 = vadd.f32 0.0, %v575
        %v577 = vpop.f32.mrf.mxu0
        %578 = vdwg.mxu0
        %579 = vrot.lane.b32.xlu0 %v407, 104
        %v580 = vpop.permute.xlu0 %579
        %581 = vrot.lane.b32.xlu0 %v408, 72
        %v582 = vpop.permute.xlu0 %581
        %v584 = vsel %vm412, %v580, 0
        %v587 = vsel %vm412, %v582, 0
        %589 = vmatpush.bf16.xpose.msra.mxu0 0
        %590 = vmatpush.bf16.xpose.msra.mxu0 0
        %591 = vmatpush.bf16.xpose.msra.mxu0 0
        %592 = vmatpush.bf16.xpose.msra.mxu0 0
        %593 = vmatpush.bf16.xpose.msra.mxu0 0
        %594 = vmatpush.bf16.xpose.msra.mxu0 0
        %595 = vmatpush.bf16.xpose.msra.mxu0 0
        %596 = vmatpush.bf16.xpose.msra.mxu0 %v587
        %597 = vmatmul.bf16.gmra.mxu0 %v584
        %v598 = vpop.f32.mrf.mxu0
        %v599 = vadd.f32 0.0, %v598
        %v600 = vpop.f32.mrf.mxu0
        %601 = vdwg.mxu0
        %v602 = vsel %vm412, %v599, -inf
        %603 = vmax.xlane.f32.xlu0 %v602
        %v604 = vpop.xlane.xlu0 %603
        %v605 = vsub.f32 %v599, %v604
        %v606 = vmul.f32 %v605, 1.442695
        %v607 = vpow.pop %v606
        %v608 = vsel %vm412, %v607, 0.0
        %609 = vadd.xlane.f32.xlu0 %v608
        %v610 = vpop.xlane.xlu0 %609
        %v611 = vrcp.pop %v610
        %v612 = vmul.f32 %v607, %v611
        %v613 = vpack.c.bf16 %v612, %v612
        %614 = vrot.lane.b32.xlu0 %v408, 40
        %v615 = vpop.permute.xlu0 %614
        %v617 = vsel %vm412, %v613, 0
        %v620 = vsel %vm449, %v615, 0
        %622 = vmatpush.bf16.msra.mxu0 0
        %623 = vmatpush.bf16.msra.mxu0 0
        %624 = vmatpush.bf16.msra.mxu0 0
        %625 = vmatpush.bf16.msra.mxu0 0
        %626 = vmatpush.bf16.msra.mxu0 0
        %627 = vmatpush.bf16.msra.mxu0 0
        %628 = vmatpush.bf16.msra.mxu0 0
        %629 = vmatpush.bf16.msra.mxu0 %v620
        %630 = vmatmul.bf16.gmra.mxu0 %v617
        %v631 = vpop.f32.mrf.mxu0
        %v632 = vadd.f32 0.0, %v631
        %v633 = vpop.f32.mrf.mxu0
        %634 = vdwg.mxu0
        %636 = vrot.lane.b32.xlu0 %v520, 8
        %v637 = vpop.permute.xlu0 %636
        %640 = vrot.lane.b32.xlu0 %v576, 16
        %v641 = vpop.permute.xlu0 %640
        %644 = vrot.lane.b32.xlu0 %v632, 24
        %v645 = vpop.permute.xlu0 %644
        %v647 = vsel %vm412, %v463, %v637
        %vm648 = vcmask 130048
        %v649 = vsel %vm648, %v647, %v641
        %vm650 = vcmask 195584
        %v651 = vsel %vm650, %v649, %v645
        %v652 = vpack.c.bf16 %v651, %v651
        %v653 = vld [vmem:[#allocation6] sm:$0xf]
        %v654 = vld [vmem:[#allocation6 + $0x4] sm:$0xf]
        %v655 = vld [vmem:[#allocation6 + $0x8] sm:$0xf]
        %v656 = vld [vmem:[#allocation6 + $0xc] sm:$0xf]
        %v657 = vld [vmem:[#allocation7] sm:$0x1]
        %v659 = vperm.slane %v657, 0
        %v665 = vunpack.c.l.b16 %v653
        %v666 = vunpack.c.l.b16 %v654
        %v667 = vunpack.c.l.b16 %v655
        %v668 = vunpack.c.l.b16 %v656
        %v669 = vpack.c.b16 %v666, %v665
        %v670 = vpack.c.b16 %v668, %v667
        %v674 = vsel %vm389, %v652, 0
        %676 = vmatpush.bf16.msra.mxu0 0
        %677 = vmatpush.bf16.msra.mxu0 0
        %678 = vmatpush.bf16.msra.mxu0 0
        %679 = vmatpush.bf16.msra.mxu0 0
        %680 = vmatpush.bf16.msra.mxu0 0
        %681 = vmatpush.bf16.msra.mxu0 0
        %682 = vmatpush.bf16.msra.mxu0 %v670
        %683 = vmatpush.bf16.msra.mxu0 %v669
        %684 = vmatmul.bf16.gmra.mxu0 %v674
        %v685 = vpop.f32.mrf.mxu0
        %v686 = vadd.f32 %v659, %v685
        %v687 = vpop.f32.mrf.mxu0
        %688 = vdwg.mxu0
        %v689 = vadd.f32 %v367, %v686
        %v690 = vld [vmem:[#allocation9] sm:$0x1]
        %v691 = vld [vmem:[#allocation10] sm:$0x1]
        %v692 = vsel %vm389, %v689, 0.0
        %693 = vadd.xlane.f32.xlu0 %v692
        %v694 = vpop.xlane.xlu0 %693
        %v695 = vrcp.pop 32.0
        %v696 = vmul.f32 32.0, %v695
        %v697 = vsub.f32 1.0, %v696
        %v698 = vmul.f32 %v695, %v697
        %v699 = vadd.f32 %v695, %v698
        %vm700 = vweird.f32 %v695
        %v701 = vsel %vm700, %v695, %v699
        %v702 = vmul.f32 %v694, %v701
        %v703 = vsub.f32 %v689, %v702
        %v704 = vmul.f32 %v703, %v703
        %v705 = vsel %vm389, %v704, 0.0
        %706 = vadd.xlane.f32.xlu0 %v705
        %v707 = vpop.xlane.xlu0 %706
        %v708 = vmul.f32 %v707, %v701
        %v709 = vadd.f32 %v708, 1e-05
        %v710 = vrsqrt.pop %v709
        %v711 = vmul.f32 %v710, %v709
        %v712 = vmul.f32 %v711, %v710
        %v713 = vmul.f32 0.5, %v712
        %v714 = vsub.f32 1.5, %v713
        %v715 = vmul.f32 %v710, %v714
        %vm716 = vweird.f32 %v709
        %vm717 = vweird.f32 %v710
        %vm718 = vmor %vm716, %vm717
        %v719 = vsel %vm718, %v710, %v715
        %v720 = vmul.f32 %v703, %v719
        %v722 = vperm.slane %v690, 0
        %v724 = vmul.f32 %v720, %v722
        %v726 = vperm.slane %v691, 0
        %v728 = vadd.f32 %v724, %v726
        %729 = vst.msk [vmem:[%s365] sm:$0xff] %vm389, %v728
        %p730 = scmp.lt.s32.totalorder %s22, 1
        %s731 = scalar_select %p730, %s22, 1
        %s732 = smul.addr %s731, 8
        %s733 = scalar_lea.vmem %s7, %s732
        // Predicated region
        $region73: #{transformer_model_forward.7} parent=47 // pred_check
          %p734 = pneg %p192
        $region74: #{transformer_model_forward.7} parent=47 // pred_check_branch
          %736 = sbr.rel (%p734) target = $region76
        $region75: #{transformer_model_forward.7} parent=47 // pred_region
          _
        $region76: #{transformer_model_forward.7} parent=47 // pred_fallthru
          _
      $region48: #{transformer_model_forward.7} parent=5 // pred_fallthru
        _
      %p737 = scmp.le.s32.totalorder 2, %s17
      // Predicated region
      $region77: #{transformer_model_forward.7} parent=5 // pred_check
        %p738 = pneg %p737
      $region78: #{transformer_model_forward.7} parent=5 // pred_check_branch
        %740 = sbr.rel (%p738) target = $region80
      $region79: #{transformer_model_forward.7} parent=5 // pred_region
        %s741 = ssub.s32 %s17, 2
        // Predicated region
        $region81: #{transformer_model_forward.7} parent=79 // pred_check
          %p742 = pneg %p198
        $region82: #{transformer_model_forward.7} parent=79 // pred_check_branch
          %744 = sbr.rel (%p742) target = $region84
        $region83: #{transformer_model_forward.7} parent=79 // pred_region
          %p745 = scmp.lt.s32.totalorder %s23, 1
          %s746 = scalar_select %p745, %s23, 1
          %s747 = smul.addr %s746, 8
          %s748 = scalar_lea.vmem %s7, %s747
        $region84: #{transformer_model_forward.7} parent=79 // pred_fallthru
          _
      $region80: #{transformer_model_forward.7} parent=5 // pred_fallthru
        _
    $region6: #{transformer_model_forward.7} parent=1 // loop_footer
      %s21 = sadd.s32 1, %s17
    $region7: #{transformer_model_forward.7} parent=1 // loop_footer_branch
      %16 = sbr.rel target = $region3
    $region8: #{transformer_model_forward.7} parent=1 // loop_exit
      _
    %749 = vsyncpa [#allocation3], 1
    %s750 = scalar_lea.sflag [#allocation3], 1
    %751 = vsyncpa %s750, 1
    %752 = vsyncpa [#allocation5], 1
    %753 = vsyncpa [#allocation8], 1
    %754 = vsyncpa [#allocation11], 1

// kernel: transformer_model_forward.11
$region0: #{transformer_model_forward.11}
  #allocation0 [shape = 'u32[]', space=smem, size = 0x4, offset = 0x4, fixed_abs, tag = 'smem constant byte address 0x4 - core index']
  #allocation1 [shape = 'u32[72,128]{1,0:T(1,128)}', space=vmem, size = 0x9000, scoped, tag = 'internal scratch']
  %s0 = inlined_call_operand.vmem [shape: f32[16,32], index: 0, kind: input, shape index: {}]
  %s1 = inlined_call_operand.vmem [shape: bf16[32,3], index: 1, kind: input, shape index: {}]
  %s2 = inlined_call_operand.vmem [shape: f32[1,3], index: 2, kind: input, shape index: {}]
  %s3 = inlined_call_operand.vmem [shape: f32[16,3], index: 3, kind: output, shape index: {}]
  %s4 = sld [smem:[#allocation0]]
  $region22: #{transformer_model_forward.11} parent=0
    _
  %s6 = ssub.s32 1, %s4
  %s7 = scalar_select 0, %s6, %s4
  // Predicated region
  $region2: #{transformer_model_forward.11} parent=0 // pred_check
    _
  $region3: #{transformer_model_forward.11} parent=0 // pred_check_branch
    %9 = sbr.rel (0) target = $region5
  $region4: #{transformer_model_forward.11} parent=0 // pred_region
    _
  $region5: #{transformer_model_forward.11} parent=0 // pred_fallthru
    _
  // Predicated region
  $region6: #{transformer_model_forward.11} parent=0 // pred_check
    _
  $region7: #{transformer_model_forward.11} parent=0 // pred_check_branch
    %11 = sbr.rel (0) target = $region9
  $region8: #{transformer_model_forward.11} parent=0 // pred_region
    _
  $region9: #{transformer_model_forward.11} parent=0 // pred_fallthru
    _
  // Predicated region
  $region10: #{transformer_model_forward.11} parent=0 // pred_check
    _
  $region11: #{transformer_model_forward.11} parent=0 // pred_check_branch
    %13 = sbr.rel (0) target = $region13
  $region12: #{transformer_model_forward.11} parent=0 // pred_region
    _
  $region13: #{transformer_model_forward.11} parent=0 // pred_fallthru
    _
  %v15 = vld [vmem:[%s0] sm:$0xff]
  %v16 = vld [vmem:[%s0 + $0x8] sm:$0xff]
  %v17 = vpack.c.bf16 %v16, %v15
  %v18 = vld [vmem:[%s1] sm:$0xf]
  %v19 = vld [vmem:[%s1 + $0x4] sm:$0xf]
  %v20 = vld [vmem:[%s1 + $0x8] sm:$0xf]
  %v21 = vld [vmem:[%s1 + $0xc] sm:$0xf]
  %v22 = vld [vmem:[%s2] sm:$0x1]
  %v24 = vperm.slane %v22, 0
  %v30 = vunpack.c.l.b16 %v18
  %v31 = vunpack.c.l.b16 %v19
  %v32 = vunpack.c.l.b16 %v20
  %v33 = vunpack.c.l.b16 %v21
  %v34 = vpack.c.b16 %v31, %v30
  %v35 = vpack.c.b16 %v33, %v32
  %vm38 = vcmask 261120
  %v40 = vsel %vm38, %v17, 0
  %42 = vmatpush.bf16.msra.mxu0 0
  %43 = vmatpush.bf16.msra.mxu0 0
  %44 = vmatpush.bf16.msra.mxu0 0
  %45 = vmatpush.bf16.msra.mxu0 0
  %46 = vmatpush.bf16.msra.mxu0 0
  %47 = vmatpush.bf16.msra.mxu0 0
  %48 = vmatpush.bf16.msra.mxu0 %v35
  %49 = vmatpush.bf16.msra.mxu0 %v34
  %50 = vmatmul.bf16.gmra.mxu0 %v40
  %v51 = vpop.f32.mrf.mxu0
  %v52 = vadd.f32 %v24, %v51
  %v53 = vpop.f32.mrf.mxu0
  %v54 = vadd.f32 %v24, %v53
  %55 = vdwg.mxu0
  %vm56 = vcmask 23552
  %57 = vst.msk [vmem:[%s3] sm:$0xff] %vm56, %v52
  %58 = vst.msk [vmem:[%s3 + $0x8] sm:$0xff] %vm56, %v54
  // Predicated region
  $region14: #{transformer_model_forward.11} parent=0 // pred_check
    _
  $region15: #{transformer_model_forward.11} parent=0 // pred_check_branch
    %60 = sbr.rel (0) target = $region17
  $region16: #{transformer_model_forward.11} parent=0 // pred_region
    _
  $region17: #{transformer_model_forward.11} parent=0 // pred_fallthru
    _
  // Predicated region
  $region18: #{transformer_model_forward.11} parent=0 // pred_check
    _
  $region19: #{transformer_model_forward.11} parent=0 // pred_check_branch
    %62 = sbr.rel (0) target = $region21
  $region20: #{transformer_model_forward.11} parent=0 // pred_region
    _
  $region21: #{transformer_model_forward.11} parent=0 // pred_fallthru
    _

// kernel: transformer_model_forward.9
$region0: #{transformer_model_forward.9}
  #allocation0 [shape = 'u32[]', space=smem, size = 0x4, offset = 0x4, fixed_abs, tag = 'smem constant byte address 0x4 - core index']
  #allocation1 [shape = 'u32[72,128]{1,0:T(1,128)}', space=vmem, size = 0x9000, scoped, tag = 'internal scratch']
  %s0 = inlined_call_operand.vmem [shape: f32[2,8,32], index: 0, kind: input, shape index: {}]
  %s1 = inlined_call_operand.vmem [shape: bf16[32,96], index: 1, kind: input, shape index: {}]
  %s2 = inlined_call_operand.hbm [shape: f32[1,96], index: 2, kind: input, shape index: {}]
  %s3 = inlined_call_operand.vmem [shape: bf16[32,32], index: 3, kind: input, shape index: {}]
  %s4 = inlined_call_operand.hbm [shape: f32[1,32], index: 4, kind: input, shape index: {}]
  %s5 = inlined_call_operand.hbm [shape: f32[1,32], index: 5, kind: input, shape index: {}]
  %s6 = inlined_call_operand.hbm [shape: f32[1,32], index: 6, kind: input, shape index: {}]
  %s7 = inlined_call_operand.vmem [shape: f32[2,8,32], index: 7, kind: output, shape index: {}]
  %s8 = sld [smem:[#allocation0]]
  $region77: #{transformer_model_forward.9} parent=0
    _
  %s10 = ssub.s32 1, %s8
  %s11 = scalar_select 0, %s10, %s8
  $region1: #{transformer_model_forward.9} parent=0
    #allocation2 [shape = 'u8[512]{0}', space=vmem, size = 0x400, scoped, tag = 'input window, operand 2, single buffered']
    #allocation3 [shape = 's32[2]{0}', space=sflag, size = 0x8, scoped, tag = 'scoped memory for transformer_model_forward.9']
    #allocation4 [shape = 'u8[512]{0}', space=vmem, size = 0x400, scoped, tag = 'input window, operand 4, single buffered']
    #allocation5 [shape = 's32[1]{0}', space=sflag, size = 0x4, scoped, tag = 'scoped memory for transformer_model_forward.9']
    #allocation6 [shape = 'u8[512]{0}', space=vmem, size = 0x400, scoped, tag = 'input window, operand 5, single buffered']
    #allocation7 [shape = 'u8[512]{0}', space=vmem, size = 0x400, scoped, tag = 'input window, operand 6, single buffered']
    #allocation8 [shape = 's32[1]{0}', space=sflag, size = 0x4, scoped, tag = 'scoped memory for transformer_model_forward.9']
    %12 = vsyncpa [#allocation3], 0
    %13 = vsyncpa [#allocation5], 0
    %14 = vsyncpa [#allocation8], 0
    loop: start=0, step=1, limit=4
    $region2: #{transformer_model_forward.9} parent=1 // loop_pre_header
      _
    $region3: #{transformer_model_forward.9} parent=1 // loop_header
      %s16 = sphi 0, %s20
      %p17 = scmp.ge.s32.totalorder %s16, 4
      %s26 = sphi 0, %s28
      %s29 = sphi 0, %s26
      %s30 = sphi 0, %s29
      %s46 = sphi 0, %s30
      %s50 = sphi 0, %s50
      %s52 = sphi 0, %s50
      %s53 = sphi 0, %s52
      %s67 = sphi 0, %s53
      %s71 = sphi 0, %s71
      %s73 = sphi 0, %s71
      %s74 = sphi 0, %s73
      %s88 = sphi 0, %s74
      %s92 = sphi 0, %s92
      %s94 = sphi 0, %s92
      %s95 = sphi 0, %s94
      %s109 = sphi 0, %s95
      %s113 = sphi 0, %s113
      %s115 = sphi 0, %s113
      %s116 = sphi 0, %s115
      %s130 = sphi 0, %s116
      %s134 = sphi 0, %s134
      %s136 = sphi 0, %s134
      %s137 = sphi 0, %s136
      %s151 = sphi 0, %s137
      %s155 = sphi 0, %s155
      %s157 = sphi 0, %s155
      %s158 = sphi 0, %s157
      %s172 = sphi 0, %s158
      %s178 = sphi 0, %s180
      %s181 = sphi 0, %s178
      %s182 = sphi 0, %s181
      %s198 = sphi 0, %s182
    $region4: #{transformer_model_forward.9} parent=1 // loop_header_branch
      %19 = sbr.rel (%p17) target = $region8
    $region5: #{transformer_model_forward.9} parent=1 // loop_body
      %s21 = ssub.s32 %s16, 1
      %s22 = ssub.s32 %s16, 2
      %s23 = sadd.s32 %s16, 1
      %s24 = ssub.s32 %s16, %s23
      %p25 = scmp.eq.s32.totalorder %s24, 0
      %s27 = sadd.s32 %s26, 1
      %s28 = scalar_select %p25, %s26, %s27
      %p31 = pneg %p25
      %p32 = scmp.eq.s32.totalorder %s16, 1
      %p33 = por %p31, %p32
      %p34 = scmp.ne.s32.totalorder %s26, %s29
      %p35 = scmp.eq.s32.totalorder %s16, 0
      %p36 = por %p34, %p35
      %p37 = scmp.ne.s32.totalorder %s26, %s29
      %p38 = scmp.eq.s32.totalorder %s21, 1
      %p39 = por %p37, %p38
      %p40 = scmp.ne.s32.totalorder %s29, %s30
      %p41 = scmp.eq.s32.totalorder %s21, 0
      %p42 = por %p40, %p41
      %p43 = scmp.ne.s32.totalorder %s29, %s30
      %p44 = scmp.eq.s32.totalorder %s22, 1
      %p45 = por %p43, %p44
      %p47 = scmp.ne.s32.totalorder %s30, %s46
      %p48 = scmp.eq.s32.totalorder %s22, 0
      %p49 = por %p47, %p48
      %s51 = sadd.s32 %s50, 1
      %p54 = scmp.eq.s32.totalorder %s16, 1
      %p55 = scmp.ne.s32.totalorder %s50, %s52
      %p56 = scmp.eq.s32.totalorder %s16, 0
      %p57 = por %p55, %p56
      %p58 = scmp.ne.s32.totalorder %s50, %s52
      %p59 = scmp.eq.s32.totalorder %s21, 1
      %p60 = por %p58, %p59
      %p61 = scmp.ne.s32.totalorder %s52, %s53
      %p62 = scmp.eq.s32.totalorder %s21, 0
      %p63 = por %p61, %p62
      %p64 = scmp.ne.s32.totalorder %s52, %s53
      %p65 = scmp.eq.s32.totalorder %s22, 1
      %p66 = por %p64, %p65
      %p68 = scmp.ne.s32.totalorder %s53, %s67
      %p69 = scmp.eq.s32.totalorder %s22, 0
      %p70 = por %p68, %p69
      %s72 = sadd.s32 %s71, 1
      %p75 = scmp.eq.s32.totalorder %s16, 1
      %p76 = scmp.ne.s32.totalorder %s71, %s73
      %p77 = scmp.eq.s32.totalorder %s16, 0
      %p78 = por %p76, %p77
      %p79 = scmp.ne.s32.totalorder %s71, %s73
      %p80 = scmp.eq.s32.totalorder %s21, 1
      %p81 = por %p79, %p80
      %p82 = scmp.ne.s32.totalorder %s73, %s74
      %p83 = scmp.eq.s32.totalorder %s21, 0
      %p84 = por %p82, %p83
      %p85 = scmp.ne.s32.totalorder %s73, %s74
      %p86 = scmp.eq.s32.totalorder %s22, 1
      %p87 = por %p85, %p86
      %p89 = scmp.ne.s32.totalorder %s74, %s88
      %p90 = scmp.eq.s32.totalorder %s22, 0
      %p91 = por %p89, %p90
      %s93 = sadd.s32 %s92, 1
      %p96 = scmp.eq.s32.totalorder %s16, 1
      %p97 = scmp.ne.s32.totalorder %s92, %s94
      %p98 = scmp.eq.s32.totalorder %s16, 0
      %p99 = por %p97, %p98
      %p100 = scmp.ne.s32.totalorder %s92, %s94
      %p101 = scmp.eq.s32.totalorder %s21, 1
      %p102 = por %p100, %p101
      %p103 = scmp.ne.s32.totalorder %s94, %s95
      %p104 = scmp.eq.s32.totalorder %s21, 0
      %p105 = por %p103, %p104
      %p106 = scmp.ne.s32.totalorder %s94, %s95
      %p107 = scmp.eq.s32.totalorder %s22, 1
      %p108 = por %p106, %p107
      %p110 = scmp.ne.s32.totalorder %s95, %s109
      %p111 = scmp.eq.s32.totalorder %s22, 0
      %p112 = por %p110, %p111
      %s114 = sadd.s32 %s113, 1
      %p117 = scmp.eq.s32.totalorder %s16, 1
      %p118 = scmp.ne.s32.totalorder %s113, %s115
      %p119 = scmp.eq.s32.totalorder %s16, 0
      %p120 = por %p118, %p119
      %p121 = scmp.ne.s32.totalorder %s113, %s115
      %p122 = scmp.eq.s32.totalorder %s21, 1
      %p123 = por %p121, %p122
      %p124 = scmp.ne.s32.totalorder %s115, %s116
      %p125 = scmp.eq.s32.totalorder %s21, 0
      %p126 = por %p124, %p125
      %p127 = scmp.ne.s32.totalorder %s115, %s116
      %p128 = scmp.eq.s32.totalorder %s22, 1
      %p129 = por %p127, %p128
      %p131 = scmp.ne.s32.totalorder %s116, %s130
      %p132 = scmp.eq.s32.totalorder %s22, 0
      %p133 = por %p131, %p132
      %s135 = sadd.s32 %s134, 1
      %p138 = scmp.eq.s32.totalorder %s16, 1
      %p139 = scmp.ne.s32.totalorder %s134, %s136
      %p140 = scmp.eq.s32.totalorder %s16, 0
      %p141 = por %p139, %p140
      %p142 = scmp.ne.s32.totalorder %s134, %s136
      %p143 = scmp.eq.s32.totalorder %s21, 1
      %p144 = por %p142, %p143
      %p145 = scmp.ne.s32.totalorder %s136, %s137
      %p146 = scmp.eq.s32.totalorder %s21, 0
      %p147 = por %p145, %p146
      %p148 = scmp.ne.s32.totalorder %s136, %s137
      %p149 = scmp.eq.s32.totalorder %s22, 1
      %p150 = por %p148, %p149
      %p152 = scmp.ne.s32.totalorder %s137, %s151
      %p153 = scmp.eq.s32.totalorder %s22, 0
      %p154 = por %p152, %p153
      %s156 = sadd.s32 %s155, 1
      %p159 = scmp.eq.s32.totalorder %s16, 1
      %p160 = scmp.ne.s32.totalorder %s155, %s157
      %p161 = scmp.eq.s32.totalorder %s16, 0
      %p162 = por %p160, %p161
      %p163 = scmp.ne.s32.totalorder %s155, %s157
      %p164 = scmp.eq.s32.totalorder %s21, 1
      %p165 = por %p163, %p164
      %p166 = scmp.ne.s32.totalorder %s157, %s158
      %p167 = scmp.eq.s32.totalorder %s21, 0
      %p168 = por %p166, %p167
      %p169 = scmp.ne.s32.totalorder %s157, %s158
      %p170 = scmp.eq.s32.totalorder %s22, 1
      %p171 = por %p169, %p170
      %p173 = scmp.ne.s32.totalorder %s158, %s172
      %p174 = scmp.eq.s32.totalorder %s22, 0
      %p175 = por %p173, %p174
      %s176 = ssub.s32 %s16, %s23
      %p177 = scmp.eq.s32.totalorder %s176, 0
      %s179 = sadd.s32 %s178, 1
      %s180 = scalar_select %p177, %s178, %s179
      %p183 = pneg %p177
      %p184 = scmp.eq.s32.totalorder %s16, 1
      %p185 = por %p183, %p184
      %p186 = scmp.ne.s32.totalorder %s178, %s181
      %p187 = scmp.eq.s32.totalorder %s16, 0
      %p188 = por %p186, %p187
      %p189 = scmp.ne.s32.totalorder %s178, %s181
      %p190 = scmp.eq.s32.totalorder %s21, 1
      %p191 = por %p189, %p190
      %p192 = scmp.ne.s32.totalorder %s181, %s182
      %p193 = scmp.eq.s32.totalorder %s21, 0
      %p194 = por %p192, %p193
      %p195 = scmp.ne.s32.totalorder %s181, %s182
      %p196 = scmp.eq.s32.totalorder %s22, 1
      %p197 = por %p195, %p196
      %p199 = scmp.ne.s32.totalorder %s182, %s198
      %p200 = scmp.eq.s32.totalorder %s22, 0
      %p201 = por %p199, %p200
      %p202 = scmp.le.s32.totalorder 1, %s16
      %p203 = scmp.lt.s32.totalorder %s16, 3
      %p204 = pnand %p202, %p203
      %p205 = pneg %p204
      // Predicated region
      $region9: #{transformer_model_forward.9} parent=5 // pred_check
        _
      $region10: #{transformer_model_forward.9} parent=5 // pred_check_branch
        %207 = sbr.rel (%p204) target = $region12
      $region11: #{transformer_model_forward.9} parent=5 // pred_region
        %s208 = ssub.s32 %s16, 1
        // Predicated region
        $region13: #{transformer_model_forward.9} parent=11 // pred_check
          %p209 = pneg %p63
        $region14: #{transformer_model_forward.9} parent=11 // pred_check_branch
          %211 = sbr.rel (%p209) target = $region16
        $region15: #{transformer_model_forward.9} parent=11 // pred_region
          _
        $region16: #{transformer_model_forward.9} parent=11 // pred_fallthru
          _
        // Predicated region
        $region17: #{transformer_model_forward.9} parent=11 // pred_check
          %p212 = pneg %p84
        $region18: #{transformer_model_forward.9} parent=11 // pred_check_branch
          %214 = sbr.rel (%p212) target = $region20
        $region19: #{transformer_model_forward.9} parent=11 // pred_region
          %216 = vsyncadd [#allocation3], 0
          %s218 = sshll.u32 %s2, 4
          %s219 = int_to_ptr.hbm [resolvable:$true] %s218
          %s220 = sshll.u32 [#allocation2], 4
          %s221 = int_to_ptr.vmem [resolvable:$true] %s220
          %223 = dma.hbm_to_vmem [thread:$0]  %s219, 16, %s221, [#allocation3]
        $region20: #{transformer_model_forward.9} parent=11 // pred_fallthru
          _
        // Predicated region
        $region21: #{transformer_model_forward.9} parent=11 // pred_check
          %p224 = pneg %p105
        $region22: #{transformer_model_forward.9} parent=11 // pred_check_branch
          %226 = sbr.rel (%p224) target = $region24
        $region23: #{transformer_model_forward.9} parent=11 // pred_region
          _
        $region24: #{transformer_model_forward.9} parent=11 // pred_fallthru
          _
        // Predicated region
        $region25: #{transformer_model_forward.9} parent=11 // pred_check
          %p227 = pneg %p126
        $region26: #{transformer_model_forward.9} parent=11 // pred_check_branch
          %229 = sbr.rel (%p227) target = $region28
        $region27: #{transformer_model_forward.9} parent=11 // pred_region
          %231 = vsyncadd [#allocation5], 0
          %s233 = sshll.u32 %s4, 4
          %s234 = int_to_ptr.hbm [resolvable:$true] %s233
          %s235 = sshll.u32 [#allocation4], 4
          %s236 = int_to_ptr.vmem [resolvable:$true] %s235
          %238 = dma.hbm_to_vmem [thread:$0]  %s234, 16, %s236, [#allocation5]
        $region28: #{transformer_model_forward.9} parent=11 // pred_fallthru
          _
        // Predicated region
        $region29: #{transformer_model_forward.9} parent=11 // pred_check
          %p239 = pneg %p147
        $region30: #{transformer_model_forward.9} parent=11 // pred_check_branch
          %241 = sbr.rel (%p239) target = $region32
        $region31: #{transformer_model_forward.9} parent=11 // pred_region
          %243 = vsyncadd [#allocation5], 0
          %s245 = sshll.u32 %s5, 4
          %s246 = int_to_ptr.hbm [resolvable:$true] %s245
          %s247 = sshll.u32 [#allocation6], 4
          %s248 = int_to_ptr.vmem [resolvable:$true] %s247
          %250 = dma.hbm_to_vmem [thread:$0]  %s246, 16, %s248, [#allocation5]
        $region32: #{transformer_model_forward.9} parent=11 // pred_fallthru
          _
        // Predicated region
        $region33: #{transformer_model_forward.9} parent=11 // pred_check
          %p251 = pneg %p168
        $region34: #{transformer_model_forward.9} parent=11 // pred_check_branch
          %253 = sbr.rel (%p251) target = $region36
        $region35: #{transformer_model_forward.9} parent=11 // pred_region
          %255 = vsyncadd [#allocation8], 0
          %s257 = sshll.u32 %s6, 4
          %s258 = int_to_ptr.hbm [resolvable:$true] %s257
          %s259 = sshll.u32 [#allocation7], 4
          %s260 = int_to_ptr.vmem [resolvable:$true] %s259
          %262 = dma.hbm_to_vmem [thread:$0]  %s258, 16, %s260, [#allocation8]
        $region36: #{transformer_model_forward.9} parent=11 // pred_fallthru
          _
      $region12: #{transformer_model_forward.9} parent=5 // pred_fallthru
        _
      %p263 = scmp.lt.s32.totalorder %s16, 2
      // Predicated region
      $region37: #{transformer_model_forward.9} parent=5 // pred_check
        %p264 = pneg %p263
      $region38: #{transformer_model_forward.9} parent=5 // pred_check_branch
        %266 = sbr.rel (%p264) target = $region40
      $region39: #{transformer_model_forward.9} parent=5 // pred_region
        // Predicated region
        $region41: #{transformer_model_forward.9} parent=39 // pred_check
          %p267 = pneg %p36
        $region42: #{transformer_model_forward.9} parent=39 // pred_check_branch
          %269 = sbr.rel (%p267) target = $region44
        $region43: #{transformer_model_forward.9} parent=39 // pred_region
          %p270 = scmp.lt.s32.totalorder %s16, 1
          %s271 = scalar_select %p270, %s16, 1
          %s272 = smul.addr %s271, 8
          %s273 = scalar_lea.vmem %s0, %s272
        $region44: #{transformer_model_forward.9} parent=39 // pred_fallthru
          _
      $region40: #{transformer_model_forward.9} parent=5 // pred_fallthru
        _
      %p274 = scmp.le.s32.totalorder 1, %s16
      %p275 = scmp.lt.s32.totalorder %s16, 3
      %p276 = pnand %p274, %p275
      %p277 = pneg %p276
      // Predicated region
      $region45: #{transformer_model_forward.9} parent=5 // pred_check
        _
      $region46: #{transformer_model_forward.9} parent=5 // pred_check_branch
        %279 = sbr.rel (%p276) target = $region48
      $region47: #{transformer_model_forward.9} parent=5 // pred_region
        %s280 = ssub.s32 %s16, 1
        // Predicated region
        $region49: #{transformer_model_forward.9} parent=47 // pred_check
          %p281 = pneg %p84
        $region50: #{transformer_model_forward.9} parent=47 // pred_check_branch
          %283 = sbr.rel (%p281) target = $region52
        $region51: #{transformer_model_forward.9} parent=47 // pred_region
          %285 = dma.done [#allocation3], 16
        $region52: #{transformer_model_forward.9} parent=47 // pred_fallthru
          _
        // Predicated region
        $region53: #{transformer_model_forward.9} parent=47 // pred_check
          %p286 = pneg %p126
        $region54: #{transformer_model_forward.9} parent=47 // pred_check_branch
          %288 = sbr.rel (%p286) target = $region56
        $region55: #{transformer_model_forward.9} parent=47 // pred_region
          %290 = dma.done [#allocation5], 16
        $region56: #{transformer_model_forward.9} parent=47 // pred_fallthru
          _
        // Predicated region
        $region57: #{transformer_model_forward.9} parent=47 // pred_check
          %p291 = pneg %p147
        $region58: #{transformer_model_forward.9} parent=47 // pred_check_branch
          %293 = sbr.rel (%p291) target = $region60
        $region59: #{transformer_model_forward.9} parent=47 // pred_region
          %295 = dma.done [#allocation5], 16
        $region60: #{transformer_model_forward.9} parent=47 // pred_fallthru
          _
        // Predicated region
        $region61: #{transformer_model_forward.9} parent=47 // pred_check
          %p296 = pneg %p168
        $region62: #{transformer_model_forward.9} parent=47 // pred_check_branch
          %298 = sbr.rel (%p296) target = $region64
        $region63: #{transformer_model_forward.9} parent=47 // pred_region
          %300 = dma.done [#allocation8], 16
        $region64: #{transformer_model_forward.9} parent=47 // pred_fallthru
          _
        %p301 = scmp.lt.s32.totalorder %s21, 1
        %s302 = scalar_select %p301, %s21, 1
        %s303 = smul.addr %s302, 8
        %s304 = scalar_lea.vmem %s0, %s303
        %p305 = pneg %p42
        %p306 = pneg %p39
        %p307 = pneg %p63
        %p308 = pneg %p60
        %p309 = pneg %p84
        %p310 = pneg %p81
        %p311 = pneg %p105
        %p312 = pneg %p102
        %p313 = pneg %p126
        %p314 = pneg %p123
        %p315 = pneg %p147
        %p316 = pneg %p144
        %p317 = pneg %p168
        %p318 = pneg %p165
        %p319 = pneg %p194
        %p320 = pneg %p191
        %p321 = scmp.lt.s32.totalorder %s21, 1
        %s322 = scalar_select %p321, %s21, 1
        %s323 = smul.addr %s322, 8
        %s324 = scalar_lea.vmem %s7, %s323
        %p325 = scmp.lt.s32.totalorder %s21, 1
        %s326 = scalar_select %p325, %s21, 1
        %s327 = smul.addr %s326, 8
        %s328 = scalar_lea.vmem %s0, %s327
        %p329 = scmp.lt.s32.totalorder %s21, 1
        %s330 = scalar_select %p329, %s21, 1
        %s331 = smul.addr %s330, 8
        %s332 = scalar_lea.vmem %s7, %s331
        %v334 = vld [vmem:[%s328] sm:$0xff]
        %v335 = vpack.c.bf16 %v334, %v334
        %v336 = vld [vmem:[%s1] sm:$0xf]
        %v337 = vld [vmem:[%s1 + $0x4] sm:$0xf]
        %v338 = vld [vmem:[%s1 + $0x8] sm:$0xf]
        %v339 = vld [vmem:[%s1 + $0xc] sm:$0xf]
        %v340 = vld [vmem:[#allocation2] sm:$0x1]
        %v342 = vperm.slane %v340, 0
        %v348 = vunpack.c.l.b16 %v336
        %v349 = vunpack.c.l.b16 %v337
        %v350 = vunpack.c.l.b16 %v338
        %v351 = vunpack.c.l.b16 %v339
        %v352 = vpack.c.b16 %v349, %v348
        %v353 = vpack.c.b16 %v351, %v350
        %vm356 = vcmask 261120
        %v358 = vsel %vm356, %v335, 0
        %360 = vmatpush.bf16.msra.mxu0 0
        %361 = vmatpush.bf16.msra.mxu0 0
        %362 = vmatpush.bf16.msra.mxu0 0
        %363 = vmatpush.bf16.msra.mxu0 0
        %364 = vmatpush.bf16.msra.mxu0 0
        %365 = vmatpush.bf16.msra.mxu0 0
        %366 = vmatpush.bf16.msra.mxu0 %v353
        %367 = vmatpush.bf16.msra.mxu0 %v352
        %368 = vmatmul.bf16.gmra.mxu0 %v358
        %v369 = vpop.f32.mrf.mxu0
        %v370 = vadd.f32 %v342, %v369
        %v371 = vpop.f32.mrf.mxu0
        %372 = vdwg.mxu0
        %v373 = vmul.f32 %v370, 0.35355338
        %v374 = vpack.c.bf16 %v373, %v373
        %v375 = vpack.c.bf16 %v370, %v370
        %377 = vrot.lane.b32.xlu0 %v375, 96
        %v378 = vpop.permute.xlu0 %377
        %vm379 = vcmask 64512
        %v381 = vsel %vm379, %v374, 0
        %v384 = vsel %vm379, %v378, 0
        %386 = vmatpush.bf16.xpose.msra.mxu0 0
        %387 = vmatpush.bf16.xpose.msra.mxu0 0
        %388 = vmatpush.bf16.xpose.msra.mxu0 0
        %389 = vmatpush.bf16.xpose.msra.mxu0 0
        %390 = vmatpush.bf16.xpose.msra.mxu0 0
        %391 = vmatpush.bf16.xpose.msra.mxu0 0
        %392 = vmatpush.bf16.xpose.msra.mxu0 0
        %393 = vmatpush.bf16.xpose.msra.mxu0 %v384
        %394 = vmatmul.bf16.gmra.mxu0 %v381
        %v395 = vpop.f32.mrf.mxu0
        %v396 = vadd.f32 0.0, %v395
        %v397 = vpop.f32.mrf.mxu0
        %398 = vdwg.mxu0
        %v399 = vsel %vm379, %v396, -inf
        %400 = vmax.xlane.f32.xlu0 %v399
        %v401 = vpop.xlane.xlu0 %400
        %v402 = vsub.f32 %v396, %v401
        %v403 = vmul.f32 %v402, 1.442695
        %v404 = vpow.pop %v403
        %v405 = vsel %vm379, %v404, 0.0
        %406 = vadd.xlane.f32.xlu0 %v405
        %v407 = vpop.xlane.xlu0 %406
        %v408 = vrcp.pop %v407
        %v409 = vmul.f32 %v404, %v408
        %v410 = vpack.c.bf16 %v409, %v409
        %411 = vrot.lane.b32.xlu0 %v375, 64
        %v412 = vpop.permute.xlu0 %411
        %v414 = vsel %vm379, %v410, 0
        %vm416 = vcmask 1043456
        %v418 = vsel %vm416, %v412, 0
        %420 = vmatpush.bf16.msra.mxu0 0
        %421 = vmatpush.bf16.msra.mxu0 0
        %422 = vmatpush.bf16.msra.mxu0 0
        %423 = vmatpush.bf16.msra.mxu0 0
        %424 = vmatpush.bf16.msra.mxu0 0
        %425 = vmatpush.bf16.msra.mxu0 0
        %426 = vmatpush.bf16.msra.mxu0 0
        %427 = vmatpush.bf16.msra.mxu0 %v418
        %428 = vmatmul.bf16.gmra.mxu0 %v414
        %v429 = vpop.f32.mrf.mxu0
        %v430 = vadd.f32 0.0, %v429
        %v431 = vpop.f32.mrf.mxu0
        %432 = vdwg.mxu0
        %434 = vrot.lane.b32.xlu0 %v374, 120
        %v435 = vpop.permute.xlu0 %434
        %436 = vrot.lane.b32.xlu0 %v375, 88
        %v437 = vpop.permute.xlu0 %436
        %v439 = vsel %vm379, %v435, 0
        %v442 = vsel %vm379, %v437, 0
        %444 = vmatpush.bf16.xpose.msra.mxu0 0
        %445 = vmatpush.bf16.xpose.msra.mxu0 0
        %446 = vmatpush.bf16.xpose.msra.mxu0 0
        %447 = vmatpush.bf16.xpose.msra.mxu0 0
        %448 = vmatpush.bf16.xpose.msra.mxu0 0
        %449 = vmatpush.bf16.xpose.msra.mxu0 0
        %450 = vmatpush.bf16.xpose.msra.mxu0 0
        %451 = vmatpush.bf16.xpose.msra.mxu0 %v442
        %452 = vmatmul.bf16.gmra.mxu0 %v439
        %v453 = vpop.f32.mrf.mxu0
        %v454 = vadd.f32 0.0, %v453
        %v455 = vpop.f32.mrf.mxu0
        %456 = vdwg.mxu0
        %v457 = vsel %vm379, %v454, -inf
        %458 = vmax.xlane.f32.xlu0 %v457
        %v459 = vpop.xlane.xlu0 %458
        %v460 = vsub.f32 %v454, %v459
        %v461 = vmul.f32 %v460, 1.442695
        %v462 = vpow.pop %v461
        %v463 = vsel %vm379, %v462, 0.0
        %464 = vadd.xlane.f32.xlu0 %v463
        %v465 = vpop.xlane.xlu0 %464
        %v466 = vrcp.pop %v465
        %v467 = vmul.f32 %v462, %v466
        %v468 = vpack.c.bf16 %v467, %v467
        %469 = vrot.lane.b32.xlu0 %v375, 56
        %v470 = vpop.permute.xlu0 %469
        %v472 = vsel %vm379, %v468, 0
        %v475 = vsel %vm416, %v470, 0
        %477 = vmatpush.bf16.msra.mxu0 0
        %478 = vmatpush.bf16.msra.mxu0 0
        %479 = vmatpush.bf16.msra.mxu0 0
        %480 = vmatpush.bf16.msra.mxu0 0
        %481 = vmatpush.bf16.msra.mxu0 0
        %482 = vmatpush.bf16.msra.mxu0 0
        %483 = vmatpush.bf16.msra.mxu0 0
        %484 = vmatpush.bf16.msra.mxu0 %v475
        %485 = vmatmul.bf16.gmra.mxu0 %v472
        %v486 = vpop.f32.mrf.mxu0
        %v487 = vadd.f32 0.0, %v486
        %v488 = vpop.f32.mrf.mxu0
        %489 = vdwg.mxu0
        %490 = vrot.lane.b32.xlu0 %v374, 112
        %v491 = vpop.permute.xlu0 %490
        %492 = vrot.lane.b32.xlu0 %v375, 80
        %v493 = vpop.permute.xlu0 %492
        %v495 = vsel %vm379, %v491, 0
        %v498 = vsel %vm379, %v493, 0
        %500 = vmatpush.bf16.xpose.msra.mxu0 0
        %501 = vmatpush.bf16.xpose.msra.mxu0 0
        %502 = vmatpush.bf16.xpose.msra.mxu0 0
        %503 = vmatpush.bf16.xpose.msra.mxu0 0
        %504 = vmatpush.bf16.xpose.msra.mxu0 0
        %505 = vmatpush.bf16.xpose.msra.mxu0 0
        %506 = vmatpush.bf16.xpose.msra.mxu0 0
        %507 = vmatpush.bf16.xpose.msra.mxu0 %v498
        %508 = vmatmul.bf16.gmra.mxu0 %v495
        %v509 = vpop.f32.mrf.mxu0
        %v510 = vadd.f32 0.0, %v509
        %v511 = vpop.f32.mrf.mxu0
        %512 = vdwg.mxu0
        %v513 = vsel %vm379, %v510, -inf
        %514 = vmax.xlane.f32.xlu0 %v513
        %v515 = vpop.xlane.xlu0 %514
        %v516 = vsub.f32 %v510, %v515
        %v517 = vmul.f32 %v516, 1.442695
        %v518 = vpow.pop %v517
        %v519 = vsel %vm379, %v518, 0.0
        %520 = vadd.xlane.f32.xlu0 %v519
        %v521 = vpop.xlane.xlu0 %520
        %v522 = vrcp.pop %v521
        %v523 = vmul.f32 %v518, %v522
        %v524 = vpack.c.bf16 %v523, %v523
        %525 = vrot.lane.b32.xlu0 %v375, 48
        %v526 = vpop.permute.xlu0 %525
        %v528 = vsel %vm379, %v524, 0
        %v531 = vsel %vm416, %v526, 0
        %533 = vmatpush.bf16.msra.mxu0 0
        %534 = vmatpush.bf16.msra.mxu0 0
        %535 = vmatpush.bf16.msra.mxu0 0
        %536 = vmatpush.bf16.msra.mxu0 0
        %537 = vmatpush.bf16.msra.mxu0 0
        %538 = vmatpush.bf16.msra.mxu0 0
        %539 = vmatpush.bf16.msra.mxu0 0
        %540 = vmatpush.bf16.msra.mxu0 %v531
        %541 = vmatmul.bf16.gmra.mxu0 %v528
        %v542 = vpop.f32.mrf.mxu0
        %v543 = vadd.f32 0.0, %v542
        %v544 = vpop.f32.mrf.mxu0
        %545 = vdwg.mxu0
        %546 = vrot.lane.b32.xlu0 %v374, 104
        %v547 = vpop.permute.xlu0 %546
        %548 = vrot.lane.b32.xlu0 %v375, 72
        %v549 = vpop.permute.xlu0 %548
        %v551 = vsel %vm379, %v547, 0
        %v554 = vsel %vm379, %v549, 0
        %556 = vmatpush.bf16.xpose.msra.mxu0 0
        %557 = vmatpush.bf16.xpose.msra.mxu0 0
        %558 = vmatpush.bf16.xpose.msra.mxu0 0
        %559 = vmatpush.bf16.xpose.msra.mxu0 0
        %560 = vmatpush.bf16.xpose.msra.mxu0 0
        %561 = vmatpush.bf16.xpose.msra.mxu0 0
        %562 = vmatpush.bf16.xpose.msra.mxu0 0
        %563 = vmatpush.bf16.xpose.msra.mxu0 %v554
        %564 = vmatmul.bf16.gmra.mxu0 %v551
        %v565 = vpop.f32.mrf.mxu0
        %v566 = vadd.f32 0.0, %v565
        %v567 = vpop.f32.mrf.mxu0
        %568 = vdwg.mxu0
        %v569 = vsel %vm379, %v566, -inf
        %570 = vmax.xlane.f32.xlu0 %v569
        %v571 = vpop.xlane.xlu0 %570
        %v572 = vsub.f32 %v566, %v571
        %v573 = vmul.f32 %v572, 1.442695
        %v574 = vpow.pop %v573
        %v575 = vsel %vm379, %v574, 0.0
        %576 = vadd.xlane.f32.xlu0 %v575
        %v577 = vpop.xlane.xlu0 %576
        %v578 = vrcp.pop %v577
        %v579 = vmul.f32 %v574, %v578
        %v580 = vpack.c.bf16 %v579, %v579
        %581 = vrot.lane.b32.xlu0 %v375, 40
        %v582 = vpop.permute.xlu0 %581
        %v584 = vsel %vm379, %v580, 0
        %v587 = vsel %vm416, %v582, 0
        %589 = vmatpush.bf16.msra.mxu0 0
        %590 = vmatpush.bf16.msra.mxu0 0
        %591 = vmatpush.bf16.msra.mxu0 0
        %592 = vmatpush.bf16.msra.mxu0 0
        %593 = vmatpush.bf16.msra.mxu0 0
        %594 = vmatpush.bf16.msra.mxu0 0
        %595 = vmatpush.bf16.msra.mxu0 0
        %596 = vmatpush.bf16.msra.mxu0 %v587
        %597 = vmatmul.bf16.gmra.mxu0 %v584
        %v598 = vpop.f32.mrf.mxu0
        %v599 = vadd.f32 0.0, %v598
        %v600 = vpop.f32.mrf.mxu0
        %601 = vdwg.mxu0
        %603 = vrot.lane.b32.xlu0 %v487, 8
        %v604 = vpop.permute.xlu0 %603
        %607 = vrot.lane.b32.xlu0 %v543, 16
        %v608 = vpop.permute.xlu0 %607
        %611 = vrot.lane.b32.xlu0 %v599, 24
        %v612 = vpop.permute.xlu0 %611
        %v614 = vsel %vm379, %v430, %v604
        %vm615 = vcmask 130048
        %v616 = vsel %vm615, %v614, %v608
        %vm617 = vcmask 195584
        %v618 = vsel %vm617, %v616, %v612
        %v619 = vpack.c.bf16 %v618, %v618
        %v620 = vld [vmem:[%s3] sm:$0xf]
        %v621 = vld [vmem:[%s3 + $0x4] sm:$0xf]
        %v622 = vld [vmem:[%s3 + $0x8] sm:$0xf]
        %v623 = vld [vmem:[%s3 + $0xc] sm:$0xf]
        %v624 = vld [vmem:[#allocation4] sm:$0x1]
        %v626 = vperm.slane %v624, 0
        %v632 = vunpack.c.l.b16 %v620
        %v633 = vunpack.c.l.b16 %v621
        %v634 = vunpack.c.l.b16 %v622
        %v635 = vunpack.c.l.b16 %v623
        %v636 = vpack.c.b16 %v633, %v632
        %v637 = vpack.c.b16 %v635, %v634
        %v641 = vsel %vm356, %v619, 0
        %643 = vmatpush.bf16.msra.mxu0 0
        %644 = vmatpush.bf16.msra.mxu0 0
        %645 = vmatpush.bf16.msra.mxu0 0
        %646 = vmatpush.bf16.msra.mxu0 0
        %647 = vmatpush.bf16.msra.mxu0 0
        %648 = vmatpush.bf16.msra.mxu0 0
        %649 = vmatpush.bf16.msra.mxu0 %v637
        %650 = vmatpush.bf16.msra.mxu0 %v636
        %651 = vmatmul.bf16.gmra.mxu0 %v641
        %v652 = vpop.f32.mrf.mxu0
        %v653 = vadd.f32 %v626, %v652
        %v654 = vpop.f32.mrf.mxu0
        %655 = vdwg.mxu0
        %v656 = vadd.f32 %v334, %v653
        %v657 = vld [vmem:[#allocation6] sm:$0x1]
        %v658 = vld [vmem:[#allocation7] sm:$0x1]
        %v659 = vsel %vm356, %v656, 0.0
        %660 = vadd.xlane.f32.xlu0 %v659
        %v661 = vpop.xlane.xlu0 %660
        %v662 = vrcp.pop 32.0
        %v663 = vmul.f32 32.0, %v662
        %v664 = vsub.f32 1.0, %v663
        %v665 = vmul.f32 %v662, %v664
        %v666 = vadd.f32 %v662, %v665
        %vm667 = vweird.f32 %v662
        %v668 = vsel %vm667, %v662, %v666
        %v669 = vmul.f32 %v661, %v668
        %v670 = vsub.f32 %v656, %v669
        %v671 = vmul.f32 %v670, %v670
        %v672 = vsel %vm356, %v671, 0.0
        %673 = vadd.xlane.f32.xlu0 %v672
        %v674 = vpop.xlane.xlu0 %673
        %v675 = vmul.f32 %v674, %v668
        %v676 = vadd.f32 %v675, 1e-05
        %v677 = vrsqrt.pop %v676
        %v678 = vmul.f32 %v677, %v676
        %v679 = vmul.f32 %v678, %v677
        %v680 = vmul.f32 0.5, %v679
        %v681 = vsub.f32 1.5, %v680
        %v682 = vmul.f32 %v677, %v681
        %vm683 = vweird.f32 %v676
        %vm684 = vweird.f32 %v677
        %vm685 = vmor %vm683, %vm684
        %v686 = vsel %vm685, %v677, %v682
        %v687 = vmul.f32 %v670, %v686
        %v689 = vperm.slane %v657, 0
        %v691 = vmul.f32 %v687, %v689
        %v693 = vperm.slane %v658, 0
        %v695 = vadd.f32 %v691, %v693
        %696 = vst.msk [vmem:[%s332] sm:$0xff] %vm356, %v695
        %p697 = scmp.lt.s32.totalorder %s21, 1
        %s698 = scalar_select %p697, %s21, 1
        %s699 = smul.addr %s698, 8
        %s700 = scalar_lea.vmem %s7, %s699
        // Predicated region
        $region65: #{transformer_model_forward.9} parent=47 // pred_check
          %p701 = pneg %p191
        $region66: #{transformer_model_forward.9} parent=47 // pred_check_branch
          %703 = sbr.rel (%p701) target = $region68
        $region67: #{transformer_model_forward.9} parent=47 // pred_region
          _
        $region68: #{transformer_model_forward.9} parent=47 // pred_fallthru
          _
      $region48: #{transformer_model_forward.9} parent=5 // pred_fallthru
        _
      %p704 = scmp.le.s32.totalorder 2, %s16
      // Predicated region
      $region69: #{transformer_model_forward.9} parent=5 // pred_check
        %p705 = pneg %p704
      $region70: #{transformer_model_forward.9} parent=5 // pred_check_branch
        %707 = sbr.rel (%p705) target = $region72
      $region71: #{transformer_model_forward.9} parent=5 // pred_region
        %s708 = ssub.s32 %s16, 2
        // Predicated region
        $region73: #{transformer_model_forward.9} parent=71 // pred_check
          %p709 = pneg %p197
        $region74: #{transformer_model_forward.9} parent=71 // pred_check_branch
          %711 = sbr.rel (%p709) target = $region76
        $region75: #{transformer_model_forward.9} parent=71 // pred_region
          %p712 = scmp.lt.s32.totalorder %s22, 1
          %s713 = scalar_select %p712, %s22, 1
          %s714 = smul.addr %s713, 8
          %s715 = scalar_lea.vmem %s7, %s714
        $region76: #{transformer_model_forward.9} parent=71 // pred_fallthru
          _
      $region72: #{transformer_model_forward.9} parent=5 // pred_fallthru
        _
    $region6: #{transformer_model_forward.9} parent=1 // loop_footer
      %s20 = sadd.s32 1, %s16
    $region7: #{transformer_model_forward.9} parent=1 // loop_footer_branch
      %15 = sbr.rel target = $region3
    $region8: #{transformer_model_forward.9} parent=1 // loop_exit
      _
    %716 = vsyncpa [#allocation3], 1
    %s717 = scalar_lea.sflag [#allocation3], 1
    %718 = vsyncpa %s717, 1
    %719 = vsyncpa [#allocation5], 1
    %720 = vsyncpa [#allocation8], 1

// kernel: transformer_model_forward.10
$region0: #{transformer_model_forward.10}
  #allocation0 [shape = 'u32[]', space=smem, size = 0x4, offset = 0x4, fixed_abs, tag = 'smem constant byte address 0x4 - core index']
  #allocation1 [shape = 'u32[72,128]{1,0:T(1,128)}', space=vmem, size = 0x9000, scoped, tag = 'internal scratch']
  %s0 = inlined_call_operand.vmem [shape: f32[16,32], index: 0, kind: input, shape index: {}]
  %s1 = inlined_call_operand.vmem [shape: bf16[32,64], index: 1, kind: input, shape index: {}]
  %s2 = inlined_call_operand.vmem [shape: f32[1,64], index: 2, kind: input, shape index: {}]
  %s3 = inlined_call_operand.vmem [shape: bf16[64,32], index: 3, kind: input, shape index: {}]
  %s4 = inlined_call_operand.vmem [shape: f32[1,32], index: 4, kind: input, shape index: {}]
  %s5 = inlined_call_operand.vmem [shape: f32[1,32], index: 5, kind: input, shape index: {}]
  %s6 = inlined_call_operand.vmem [shape: f32[1,32], index: 6, kind: input, shape index: {}]
  %s7 = inlined_call_operand.vmem [shape: f32[16,32], index: 7, kind: output, shape index: {}]
  %s8 = sld [smem:[#allocation0]]
  $region38: #{transformer_model_forward.10} parent=0
    _
  %s10 = ssub.s32 1, %s8
  %s11 = scalar_select 0, %s10, %s8
  // Predicated region
  $region2: #{transformer_model_forward.10} parent=0 // pred_check
    _
  $region3: #{transformer_model_forward.10} parent=0 // pred_check_branch
    %13 = sbr.rel (0) target = $region5
  $region4: #{transformer_model_forward.10} parent=0 // pred_region
    _
  $region5: #{transformer_model_forward.10} parent=0 // pred_fallthru
    _
  // Predicated region
  $region6: #{transformer_model_forward.10} parent=0 // pred_check
    _
  $region7: #{transformer_model_forward.10} parent=0 // pred_check_branch
    %15 = sbr.rel (0) target = $region9
  $region8: #{transformer_model_forward.10} parent=0 // pred_region
    _
  $region9: #{transformer_model_forward.10} parent=0 // pred_fallthru
    _
  // Predicated region
  $region10: #{transformer_model_forward.10} parent=0 // pred_check
    _
  $region11: #{transformer_model_forward.10} parent=0 // pred_check_branch
    %17 = sbr.rel (0) target = $region13
  $region12: #{transformer_model_forward.10} parent=0 // pred_region
    _
  $region13: #{transformer_model_forward.10} parent=0 // pred_fallthru
    _
  // Predicated region
  $region14: #{transformer_model_forward.10} parent=0 // pred_check
    _
  $region15: #{transformer_model_forward.10} parent=0 // pred_check_branch
    %19 = sbr.rel (0) target = $region17
  $region16: #{transformer_model_forward.10} parent=0 // pred_region
    _
  $region17: #{transformer_model_forward.10} parent=0 // pred_fallthru
    _
  // Predicated region
  $region18: #{transformer_model_forward.10} parent=0 // pred_check
    _
  $region19: #{transformer_model_forward.10} parent=0 // pred_check_branch
    %21 = sbr.rel (0) target = $region21
  $region20: #{transformer_model_forward.10} parent=0 // pred_region
    _
  $region21: #{transformer_model_forward.10} parent=0 // pred_fallthru
    _
  // Predicated region
  $region22: #{transformer_model_forward.10} parent=0 // pred_check
    _
  $region23: #{transformer_model_forward.10} parent=0 // pred_check_branch
    %23 = sbr.rel (0) target = $region25
  $region24: #{transformer_model_forward.10} parent=0 // pred_region
    _
  $region25: #{transformer_model_forward.10} parent=0 // pred_fallthru
    _
  // Predicated region
  $region26: #{transformer_model_forward.10} parent=0 // pred_check
    _
  $region27: #{transformer_model_forward.10} parent=0 // pred_check_branch
    %25 = sbr.rel (0) target = $region29
  $region28: #{transformer_model_forward.10} parent=0 // pred_region
    _
  $region29: #{transformer_model_forward.10} parent=0 // pred_fallthru
    _
  %v27 = vld [vmem:[%s0] sm:$0xff]
  %v28 = vld [vmem:[%s0 + $0x8] sm:$0xff]
  %v29 = vpack.c.bf16 %v28, %v27
  %v30 = vld [vmem:[%s1] sm:$0xf]
  %v31 = vld [vmem:[%s1 + $0x4] sm:$0xf]
  %v32 = vld [vmem:[%s1 + $0x8] sm:$0xf]
  %v33 = vld [vmem:[%s1 + $0xc] sm:$0xf]
  %v34 = vld [vmem:[%s2] sm:$0x1]
  %v36 = vperm.slane %v34, 0
  %v42 = vunpack.c.l.b16 %v30
  %v43 = vunpack.c.l.b16 %v31
  %v44 = vunpack.c.l.b16 %v32
  %v45 = vunpack.c.l.b16 %v33
  %v46 = vpack.c.b16 %v43, %v42
  %v47 = vpack.c.b16 %v45, %v44
  %vm50 = vcmask 261120
  %v52 = vsel %vm50, %v29, 0
  %54 = vmatpush.bf16.msra.mxu0 0
  %55 = vmatpush.bf16.msra.mxu0 0
  %56 = vmatpush.bf16.msra.mxu0 0
  %57 = vmatpush.bf16.msra.mxu0 0
  %58 = vmatpush.bf16.msra.mxu0 0
  %59 = vmatpush.bf16.msra.mxu0 0
  %60 = vmatpush.bf16.msra.mxu0 %v47
  %61 = vmatpush.bf16.msra.mxu0 %v46
  %62 = vmatmul.bf16.gmra.mxu0 %v52
  %v63 = vpop.f32.mrf.mxu0
  %v64 = vadd.f32 %v36, %v63
  %v65 = vpop.f32.mrf.mxu0
  %v66 = vadd.f32 %v36, %v65
  %67 = vdwg.mxu0
  %v68 = vmax.f32 %v64, 0.0
  %v69 = vmax.f32 %v66, 0.0
  %v70 = vpack.c.bf16 %v69, %v68
  %v71 = vld [vmem:[%s3] sm:$0xf]
  %v72 = vld [vmem:[%s3 + $0x4] sm:$0xf]
  %v73 = vld [vmem:[%s3 + $0x8] sm:$0xf]
  %v74 = vld [vmem:[%s3 + $0xc] sm:$0xf]
  %v75 = vld [vmem:[%s3 + $0x10] sm:$0xf]
  %v76 = vld [vmem:[%s3 + $0x14] sm:$0xf]
  %v77 = vld [vmem:[%s3 + $0x18] sm:$0xf]
  %v78 = vld [vmem:[%s3 + $0x1c] sm:$0xf]
  %v79 = vld [vmem:[%s4] sm:$0x1]
  %v81 = vperm.slane %v79, 0
  %v91 = vunpack.c.l.b16 %v71
  %v92 = vunpack.c.l.b16 %v72
  %v93 = vunpack.c.l.b16 %v73
  %v94 = vunpack.c.l.b16 %v74
  %v95 = vunpack.c.l.b16 %v75
  %v96 = vunpack.c.l.b16 %v76
  %v97 = vunpack.c.l.b16 %v77
  %v98 = vunpack.c.l.b16 %v78
  %v99 = vpack.c.b16 %v92, %v91
  %v100 = vpack.c.b16 %v94, %v93
  %v101 = vpack.c.b16 %v96, %v95
  %v102 = vpack.c.b16 %v98, %v97
  %vm107 = vcmask 523264
  %v109 = vsel %vm107, %v70, 0
  %111 = vmatpush.bf16.msra.mxu0 0
  %112 = vmatpush.bf16.msra.mxu0 0
  %113 = vmatpush.bf16.msra.mxu0 0
  %114 = vmatpush.bf16.msra.mxu0 0
  %115 = vmatpush.bf16.msra.mxu0 %v102
  %116 = vmatpush.bf16.msra.mxu0 %v101
  %117 = vmatpush.bf16.msra.mxu0 %v100
  %118 = vmatpush.bf16.msra.mxu0 %v99
  %119 = vmatmul.bf16.gmra.mxu0 %v109
  %v120 = vpop.f32.mrf.mxu0
  %v121 = vadd.f32 %v81, %v120
  %v122 = vpop.f32.mrf.mxu0
  %v123 = vadd.f32 %v81, %v122
  %124 = vdwg.mxu0
  %v125 = vadd.f32 %v27, %v121
  %v126 = vadd.f32 %v28, %v123
  %v127 = vld [vmem:[%s5] sm:$0x1]
  %v128 = vld [vmem:[%s6] sm:$0x1]
  %v129 = vsel %vm50, %v125, 0.0
  %130 = vadd.xlane.f32.xlu0 %v129
  %v131 = vpop.xlane.xlu0 %130
  %v132 = vsel %vm50, %v126, 0.0
  %133 = vadd.xlane.f32.xlu0 %v132
  %v134 = vpop.xlane.xlu0 %133
  %v135 = vrcp.pop 32.0
  %v136 = vmul.f32 32.0, %v135
  %v137 = vsub.f32 1.0, %v136
  %v138 = vmul.f32 %v135, %v137
  %v139 = vadd.f32 %v135, %v138
  %vm140 = vweird.f32 %v135
  %v141 = vsel %vm140, %v135, %v139
  %v142 = vmul.f32 %v131, %v141
  %v143 = vmul.f32 %v134, %v141
  %v144 = vsub.f32 %v125, %v142
  %v145 = vsub.f32 %v126, %v143
  %v146 = vmul.f32 %v144, %v144
  %v147 = vmul.f32 %v145, %v145
  %v148 = vsel %vm50, %v146, 0.0
  %149 = vadd.xlane.f32.xlu0 %v148
  %v150 = vpop.xlane.xlu0 %149
  %v151 = vsel %vm50, %v147, 0.0
  %152 = vadd.xlane.f32.xlu0 %v151
  %v153 = vpop.xlane.xlu0 %152
  %v154 = vmul.f32 %v150, %v141
  %v155 = vmul.f32 %v153, %v141
  %v156 = vadd.f32 %v154, 1e-05
  %v157 = vadd.f32 %v155, 1e-05
  %v158 = vrsqrt.pop %v156
  %v159 = vmul.f32 %v158, %v156
  %v160 = vmul.f32 %v159, %v158
  %v161 = vmul.f32 0.5, %v160
  %v162 = vsub.f32 1.5, %v161
  %v163 = vmul.f32 %v158, %v162
  %vm164 = vweird.f32 %v156
  %vm165 = vweird.f32 %v158
  %vm166 = vmor %vm164, %vm165
  %v167 = vsel %vm166, %v158, %v163
  %v168 = vrsqrt.pop %v157
  %v169 = vmul.f32 %v168, %v157
  %v170 = vmul.f32 %v169, %v168
  %v171 = vmul.f32 0.5, %v170
  %v172 = vsub.f32 1.5, %v171
  %v173 = vmul.f32 %v168, %v172
  %vm174 = vweird.f32 %v157
  %vm175 = vweird.f32 %v168
  %vm176 = vmor %vm174, %vm175
  %v177 = vsel %vm176, %v168, %v173
  %v178 = vmul.f32 %v144, %v167
  %v179 = vmul.f32 %v145, %v177
  %v181 = vperm.slane %v127, 0
  %v183 = vmul.f32 %v178, %v181
  %v184 = vmul.f32 %v179, %v181
  %v186 = vperm.slane %v128, 0
  %v188 = vadd.f32 %v183, %v186
  %v189 = vadd.f32 %v184, %v186
  %190 = vst.msk [vmem:[%s7] sm:$0xff] %vm50, %v188
  %191 = vst.msk [vmem:[%s7 + $0x8] sm:$0xff] %vm50, %v189
  // Predicated region
  $region30: #{transformer_model_forward.10} parent=0 // pred_check
    _
  $region31: #{transformer_model_forward.10} parent=0 // pred_check_branch
    %193 = sbr.rel (0) target = $region33
  $region32: #{transformer_model_forward.10} parent=0 // pred_region
    _
  $region33: #{transformer_model_forward.10} parent=0 // pred_fallthru
    _
  // Predicated region
  $region34: #{transformer_model_forward.10} parent=0 // pred_check
    _
  $region35: #{transformer_model_forward.10} parent=0 // pred_check_branch
    %195 = sbr.rel (0) target = $region37
  $region36: #{transformer_model_forward.10} parent=0 // pred_region
    _
  $region37: #{transformer_model_forward.10} parent=0 // pred_fallthru
    _

</llo_original>
